<compile_context>
chip_gen: v7x
topology: tpu7x:2x2x1
jax: 0.10.0
libtpu: 0.0.40
codegen_flags: <defaults>
</compile_context>

<pallas_src>
import functools

import jax
import jax.numpy as jnp
import numpy as np
from jax import lax
from jax.experimental import pallas as pl
from jax.experimental.pallas import tpu as pltpu

EPS = 1e-5


def resnet_block_kernel(x_ref, w1_ref, w2_ref, o_ref, pad_ref, *opt_scratch,
                        compute_dtype, use_im2col):
    # x_ref:   (H, W, C)      f32   unpadded input image (one image per step)
    # w*_ref:  (9*C, C)       compute_dtype (tap-major weight slab, bias dropped)
    # o_ref:   (H, W, C)      f32
    # pad_ref: (H+2, W+2, C)  f32   reused reflect-pad scratch (x, then h)
    # opt_scratch: [(H, W, 9*C) compute_dtype]  im2col scratch (small-C path only)
    H, W, C = o_ref.shape
    HW = H * W
    inv_hw = 1.0 / float(HW)
    patches_ref = opt_scratch[0] if use_im2col else None

    def reflect_pad(img):
        # Interior + 4 edge writes (ReflectionPad2d(1)); corners come out right
        # because the column writes read the already-written padded rows.
        pad_ref[1:H + 1, 1:W + 1, :] = img
        pad_ref[0:1, 1:W + 1, :] = img[1:2]                    # top    = row 1
        pad_ref[H + 1:H + 2, 1:W + 1, :] = img[H - 2:H - 1]    # bottom = row H-2
        pad_ref[:, 0:1, :] = pad_ref[:, 2:3, :]                # left   = col 2
        pad_ref[:, W + 1:W + 2, :] = pad_ref[:, W - 1:W, :]    # right  = col W-1

    def conv_im2col(w_ref):
        # Small-C path: one wide-K (9C) MXU contraction, im2col scratch fill.
        for dy in range(3):
            for dx in range(3):
                tap = dy * 3 + dx
                patches_ref[:, :, tap * C:(tap + 1) * C] = (
                    pad_ref[dy:dy + H, dx:dx + W, :].astype(compute_dtype))
        p = patches_ref[...].reshape(HW, 9 * C)
        y = jnp.dot(p, w_ref[...], preferred_element_type=jnp.float32)
        return y.reshape(H, W, C)

    def conv_pertap(w_ref):
        # Production path (C >= 128): no im2col scratch.  Convolve over the
        # padded width; kx shifts via pltpu.roll on the flattened row axis
        # (row wrap only pollutes the discarded pad columns); f32 accumulate.
        rows = H * (W + 2)
        acc = None
        for dy in range(3):
            band = pad_ref[dy:dy + H, :, :].reshape(rows, C)        # f32, read once
            for dx in range(3):
                tap = dy * 3 + dx
                w_tap = w_ref[tap * C:(tap + 1) * C, :]
                shift = (1 - dx) % rows                              # {1, 0, rows-1}
                b = pltpu.roll(band, shift, axis=0) if shift else band
                z = jnp.dot(b.astype(compute_dtype), w_tap,
                            preferred_element_type=jnp.float32)
                acc = z if acc is None else acc + z
        # Drop the two junk pad columns, keep the (H, W) interior.
        return acc.reshape(H, W + 2, C)[:, 1:W + 1, :]

    conv = conv_im2col if use_im2col else conv_pertap

    def instance_norm(y, *, relu):
        # Biased single-pass stats in f32; rsqrt lands in the EUP slot.
        # ReLU is folded into the normalize/write pass (conv1).
        s1 = jnp.sum(jnp.sum(y, axis=0), axis=0, keepdims=True)      # (1, C)
        s2 = jnp.sum(jnp.sum(y * y, axis=0), axis=0, keepdims=True)  # (1, C)
        mu = s1 * inv_hw
        var = jnp.maximum(s2 * inv_hw - mu * mu, 0.0)
        out = (y - mu) * lax.rsqrt(var + EPS)
        return jnp.maximum(out, 0.0) if relu else out

    # ---- conv1 -> IN -> ReLU ------------------------------------------------
    x = x_ref[...]                         # read once: used for pad + residual
    reflect_pad(x)
    h = instance_norm(conv(w1_ref), relu=True)

    # ---- conv2 -> IN (pad scratch reused for the padded activation) ---------
    reflect_pad(h)
    y2 = instance_norm(conv(w2_ref), relu=False)

    # ---- residual add (f32, aligned read of the unpadded input block) -------
    o_ref[...] = x + y2


def _vmem_capacity_bytes():
    try:
        return int(getattr(pltpu.get_tpu_info(), "vmem_capacity_bytes"))
    except Exception:
        return 64 << 20      # conservative fallback (fits every generation)


def resnet_block_nhwc(x_nhwc, w1, b1, w2, b2, *, use_bf16=True, conv_mode="auto"):
    """x_nhwc: (N, H, W, C) f32; w*: (Cout, Cin, 3, 3) PyTorch layout; b*: (C,).

    conv_mode: "auto" (per-tap for C >= 128, im2col otherwise), "im2col",
    or "pertap".  On v5e, forcing "pertap" is recommended even for small C.
    """
    N, H, W, C = x_nhwc.shape
    if H < 2 or W < 2:
        raise ValueError("ReflectionPad2d(1) requires H >= 2 and W >= 2")
    # b1/b2 are exactly cancelled by the affine=False InstanceNorm that follows
    # each conv, so they are never loaded into the kernel (pure dead work).
    del b1, b2

    cdt = jnp.bfloat16 if use_bf16 else jnp.float32
    cbytes = 2 if use_bf16 else 4
    if conv_mode == "auto":
        use_im2col = C < 128
    elif conv_mode == "im2col":
        use_im2col = True
    elif conv_mode == "pertap":
        use_im2col = False
    else:
        raise ValueError(f"unknown conv_mode: {conv_mode}")

    def prep_w(w):
        # (Cout, Cin, ky, kx) -> (ky, kx, Cin, Cout) -> (9*Cin, Cout), tap-major.
        return jnp.transpose(w, (2, 3, 1, 0)).reshape(9 * C, C).astype(cdt)

    w1m, w2m = prep_w(w1), prep_w(w2)
    x32 = x_nhwc.astype(jnp.float32)

    # Generation-aware VMEM budget (per grid step, with headroom).
    cap = _vmem_capacity_bytes()
    per_step = (2 * H * W * C * 4                       # input block (x2 buffers)
                + 2 * H * W * C * 4                     # output block (x2 buffers)
                + 2 * 2 * 9 * C * C * cbytes            # two weight slabs (x2)
                + (H + 2) * (W + 2) * C * 4             # reflect-pad scratch
                + (H * W * 9 * C * cbytes if use_im2col
                   else H * (W + 2) * C * 4)            # im2col scratch / f32 acc
                + 6 * H * W * C * 4)                    # compiler temporaries
    vmem_limit = int(min(max(int(1.5 * per_step), 32 << 20), int(0.85 * cap)))

    flops = int(N * 2 * (2 * H * W * 9 * C * C))
    bytes_accessed = int(4 * (x32.size + N * H * W * C) + 2 * 9 * C * C * cbytes)
    cost = pl.CostEstimate(flops=flops, transcendentals=int(2 * N * C),
                           bytes_accessed=bytes_accessed)

    scratch = [pltpu.VMEM((H + 2, W + 2, C), jnp.float32)]   # reused pad scratch
    if use_im2col:
        scratch.append(pltpu.VMEM((H, W, 9 * C), cdt))       # im2col (small C only)

    kernel = functools.partial(resnet_block_kernel,
                               compute_dtype=cdt, use_im2col=use_im2col)

    out = pl.pallas_call(
        kernel,
        out_shape=jax.ShapeDtypeStruct((N, H, W, C), jnp.float32),
        grid=(N,),
        in_specs=[
            pl.BlockSpec((None, H, W, C), lambda n: (n, 0, 0, 0)),
            pl.BlockSpec((9 * C, C), lambda n: (0, 0)),
            pl.BlockSpec((9 * C, C), lambda n: (0, 0)),
        ],
        out_specs=pl.BlockSpec((None, H, W, C), lambda n: (n, 0, 0, 0)),
        scratch_shapes=scratch,
        compiler_params=pltpu.CompilerParams(
            dimension_semantics=("parallel",),
            vmem_limit_bytes=vmem_limit),
        cost_estimate=cost,
    )(x32, w1m, w2m)
    return out


def resnet_block(x_nchw, w1, b1, w2, b2, *, use_bf16=True, conv_mode="auto"):
    """NCHW interface matching the PyTorch module (transposes are plumbing)."""
    x_nhwc = jnp.transpose(x_nchw, (0, 2, 3, 1)).astype(jnp.float32)
    out = resnet_block_nhwc(x_nhwc, w1, b1, w2, b2,
                            use_bf16=use_bf16, conv_mode=conv_mode)
    return jnp.transpose(out, (0, 3, 1, 2))


# ---------------- pure-JAX reference (for correctness check) ----------------
def _ref_conv3x3(x_nchw, w, b):
    xp = jnp.pad(x_nchw, ((0, 0), (0, 0), (1, 1), (1, 1)), mode="reflect")
    y = lax.conv_general_dilated(
        xp, w, window_strides=(1, 1), padding="VALID",
        dimension_numbers=("NCHW", "OIHW", "NCHW"))
    return y + b[None, :, None, None]


def _ref_instance_norm(x_nchw):
    mu = jnp.mean(x_nchw, axis=(2, 3), keepdims=True)
    var = jnp.mean((x_nchw - mu) ** 2, axis=(2, 3), keepdims=True)
    return (x_nchw - mu) / jnp.sqrt(var + EPS)


def resnet_block_ref(x, w1, b1, w2, b2):
    h = jnp.maximum(_ref_instance_norm(_ref_conv3x3(x, w1, b1)), 0.0)
    h = _ref_instance_norm(_ref_conv3x3(h, w2, b2))
    return x + h


if __name__ == "__main__":
    N, C, H, W = 2, 4, 16, 16
    key = jax.random.PRNGKey(0)
    kx, kw1, kb1, kw2, kb2 = jax.random.split(key, 5)

    x = jax.random.normal(kx, (N, C, H, W), dtype=jnp.float32)
    fan_in = C * 3 * 3
    bound = 1.0 / np.sqrt(fan_in)
    w1 = jax.random.uniform(kw1, (C, C, 3, 3), jnp.float32, -bound, bound)
    b1 = jax.random.uniform(kb1, (C,), jnp.float32, -bound, bound)
    w2 = jax.random.uniform(kw2, (C, C, 3, 3), jnp.float32, -bound, bound)
    b2 = jax.random.uniform(kb2, (C,), jnp.float32, -bound, bound)

    ref = jax.block_until_ready(resnet_block_ref(x, w1, b1, w2, b2))

    # Exact-semantics checks for both conv paths (f32 MXU operands).
    out_im2col = jax.block_until_ready(
        resnet_block(x, w1, b1, w2, b2, use_bf16=False, conv_mode="im2col"))
    assert out_im2col.shape == (N, C, H, W)
    np.testing.assert_allclose(np.asarray(out_im2col), np.asarray(ref),
                               rtol=1e-4, atol=1e-4)

    out_pertap = jax.block_until_ready(
        resnet_block(x, w1, b1, w2, b2, use_bf16=False, conv_mode="pertap"))
    np.testing.assert_allclose(np.asarray(out_pertap), np.asarray(ref),
                               rtol=1e-4, atol=1e-4)

    # Production-dtype checks (bf16 MXU operands, f32 accumulate/norm/residual).
    out_bf16_auto = jax.block_until_ready(
        resnet_block(x, w1, b1, w2, b2, use_bf16=True, conv_mode="auto"))
    np.testing.assert_allclose(np.asarray(out_bf16_auto), np.asarray(ref),
                               rtol=2e-2, atol=2e-2)

    out_bf16_pertap = jax.block_until_ready(
        resnet_block(x, w1, b1, w2, b2, use_bf16=True, conv_mode="pertap"))
    np.testing.assert_allclose(np.asarray(out_bf16_pertap), np.asarray(ref),
                               rtol=2e-2, atol=2e-2)

    print("KERNEL_OK")
</pallas_src>

<mosaic_0001>
module attributes {stable_mosaic.version = 11 : i64} {
  func.func @resnet_block_kernel(%arg0: i32, %arg1: memref<1x16x16x4xf32, #tpu.memory_space<vmem>>, %arg2: memref<36x4xf32, #tpu.memory_space<vmem>>, %arg3: memref<36x4xf32, #tpu.memory_space<vmem>>, %arg4: memref<1x16x16x4xf32, #tpu.memory_space<vmem>>, %arg5: memref<18x18x4xf32, #tpu.memory_space<vmem>>, %arg6: memref<16x16x36xf32, #tpu.memory_space<vmem>>) attributes {dimension_semantics = [#tpu.dimension_semantics<parallel>], iteration_bounds = array<i64: 2>, scalar_prefetch = 0 : i64, scratch_operands = 2 : i64, tpu.core_type = #tpu.core_type<tc>, window_params = [{transform_indices = @transform_0, window_bounds = array<i64: 1, 16, 16, 4>}, {pipeline_mode = #tpu.pipeline_mode<synchronous>, transform_indices = @transform_1, window_bounds = array<i64: 36, 4>}, {pipeline_mode = #tpu.pipeline_mode<synchronous>, transform_indices = @transform_2, window_bounds = array<i64: 36, 4>}, {transform_indices = @transform_3, window_bounds = array<i64: 1, 16, 16, 4>}]} {
    %c0 = arith.constant 0 : index
    %c0_0 = arith.constant 0 : index
    %c0_1 = arith.constant 0 : index
    %c0_2 = arith.constant 0 : index
    %0 = vector.load %arg1[%c0, %c0_0, %c0_1, %c0_2] : memref<1x16x16x4xf32, #tpu.memory_space<vmem>>, vector<1x16x16x4xf32>
    %1 = vector.shape_cast %0 : vector<1x16x16x4xf32> to vector<16x16x4xf32>
    %c1 = arith.constant 1 : index
    %c1_3 = arith.constant 1 : index
    %c0_4 = arith.constant 0 : index
    %2 = vector.load %arg5[%c1, %c1_3, %c0_4] : memref<18x18x4xf32, #tpu.memory_space<vmem>>, vector<16x16x4xf32>
    tpu.vector_store %arg5[%c1, %c1_3, %c0_4], %1 {strides = array<i32>} : memref<18x18x4xf32, #tpu.memory_space<vmem>>, vector<16x16x4xf32>,
    %3 = vector.extract_strided_slice %1 {offsets = [1, 0, 0], sizes = [1, 16, 4], strides = [1, 1, 1]} : vector<16x16x4xf32> to vector<1x16x4xf32>
    %c0_5 = arith.constant 0 : index
    %c1_6 = arith.constant 1 : index
    %c0_7 = arith.constant 0 : index
    %4 = vector.load %arg5[%c0_5, %c1_6, %c0_7] : memref<18x18x4xf32, #tpu.memory_space<vmem>>, vector<1x16x4xf32>
    tpu.vector_store %arg5[%c0_5, %c1_6, %c0_7], %3 {strides = array<i32>} : memref<18x18x4xf32, #tpu.memory_space<vmem>>, vector<1x16x4xf32>,
    %5 = vector.extract_strided_slice %1 {offsets = [14, 0, 0], sizes = [1, 16, 4], strides = [1, 1, 1]} : vector<16x16x4xf32> to vector<1x16x4xf32>
    %c17 = arith.constant 17 : index
    %c1_8 = arith.constant 1 : index
    %c0_9 = arith.constant 0 : index
    %6 = vector.load %arg5[%c17, %c1_8, %c0_9] : memref<18x18x4xf32, #tpu.memory_space<vmem>>, vector<1x16x4xf32>
    tpu.vector_store %arg5[%c17, %c1_8, %c0_9], %5 {strides = array<i32>} : memref<18x18x4xf32, #tpu.memory_space<vmem>>, vector<1x16x4xf32>,
    %c0_10 = arith.constant 0 : index
    %c2 = arith.constant 2 : index
    %c0_11 = arith.constant 0 : index
    %7 = vector.load %arg5[%c0_10, %c2, %c0_11] : memref<18x18x4xf32, #tpu.memory_space<vmem>>, vector<18x1x4xf32>
    %c0_12 = arith.constant 0 : index
    %c0_13 = arith.constant 0 : index
    %c0_14 = arith.constant 0 : index
    %8 = vector.load %arg5[%c0_12, %c0_13, %c0_14] : memref<18x18x4xf32, #tpu.memory_space<vmem>>, vector<18x1x4xf32>
    tpu.vector_store %arg5[%c0_12, %c0_13, %c0_14], %7 {strides = array<i32>} : memref<18x18x4xf32, #tpu.memory_space<vmem>>, vector<18x1x4xf32>,
    %c0_15 = arith.constant 0 : index
    %c15 = arith.constant 15 : index
    %c0_16 = arith.constant 0 : index
    %9 = vector.load %arg5[%c0_15, %c15, %c0_16] : memref<18x18x4xf32, #tpu.memory_space<vmem>>, vector<18x1x4xf32>
    %c0_17 = arith.constant 0 : index
    %c17_18 = arith.constant 17 : index
    %c0_19 = arith.constant 0 : index
    %10 = vector.load %arg5[%c0_17, %c17_18, %c0_19] : memref<18x18x4xf32, #tpu.memory_space<vmem>>, vector<18x1x4xf32>
    tpu.vector_store %arg5[%c0_17, %c17_18, %c0_19], %9 {strides = array<i32>} : memref<18x18x4xf32, #tpu.memory_space<vmem>>, vector<18x1x4xf32>,
    %c0_20 = arith.constant 0 : index
    %c0_21 = arith.constant 0 : index
    %c0_22 = arith.constant 0 : index
    %11 = vector.load %arg5[%c0_20, %c0_21, %c0_22] : memref<18x18x4xf32, #tpu.memory_space<vmem>>, vector<16x16x4xf32>
    %c0_23 = arith.constant 0 : index
    %c0_24 = arith.constant 0 : index
    %c0_25 = arith.constant 0 : index
    %12 = vector.load %arg6[%c0_23, %c0_24, %c0_25] : memref<16x16x36xf32, #tpu.memory_space<vmem>>, vector<16x16x4xf32>
    tpu.vector_store %arg6[%c0_23, %c0_24, %c0_25], %11 {strides = array<i32>} : memref<16x16x36xf32, #tpu.memory_space<vmem>>, vector<16x16x4xf32>,
    %c0_26 = arith.constant 0 : index
    %c1_27 = arith.constant 1 : index
    %c0_28 = arith.constant 0 : index
    %13 = vector.load %arg5[%c0_26, %c1_27, %c0_28] : memref<18x18x4xf32, #tpu.memory_space<vmem>>, vector<16x16x4xf32>
    %c0_29 = arith.constant 0 : index
    %c0_30 = arith.constant 0 : index
    %c4 = arith.constant 4 : index
    %14 = vector.load %arg6[%c0_29, %c0_30, %c4] : memref<16x16x36xf32, #tpu.memory_space<vmem>>, vector<16x16x4xf32>
    tpu.vector_store %arg6[%c0_29, %c0_30, %c4], %13 {strides = array<i32>} : memref<16x16x36xf32, #tpu.memory_space<vmem>>, vector<16x16x4xf32>,
    %c0_31 = arith.constant 0 : index
    %c2_32 = arith.constant 2 : index
    %c0_33 = arith.constant 0 : index
    %15 = vector.load %arg5[%c0_31, %c2_32, %c0_33] : memref<18x18x4xf32, #tpu.memory_space<vmem>>, vector<16x16x4xf32>
    %c0_34 = arith.constant 0 : index
    %c0_35 = arith.constant 0 : index
    %c8 = arith.constant 8 : index
    %16 = vector.load %arg6[%c0_34, %c0_35, %c8] : memref<16x16x36xf32, #tpu.memory_space<vmem>>, vector<16x16x4xf32>
    tpu.vector_store %arg6[%c0_34, %c0_35, %c8], %15 {strides = array<i32>} : memref<16x16x36xf32, #tpu.memory_space<vmem>>, vector<16x16x4xf32>,
    %c1_36 = arith.constant 1 : index
    %c0_37 = arith.constant 0 : index
    %c0_38 = arith.constant 0 : index
    %17 = vector.load %arg5[%c1_36, %c0_37, %c0_38] : memref<18x18x4xf32, #tpu.memory_space<vmem>>, vector<16x16x4xf32>
    %c0_39 = arith.constant 0 : index
    %c0_40 = arith.constant 0 : index
    %c12 = arith.constant 12 : index
    %18 = vector.load %arg6[%c0_39, %c0_40, %c12] : memref<16x16x36xf32, #tpu.memory_space<vmem>>, vector<16x16x4xf32>
    tpu.vector_store %arg6[%c0_39, %c0_40, %c12], %17 {strides = array<i32>} : memref<16x16x36xf32, #tpu.memory_space<vmem>>, vector<16x16x4xf32>,
    %c1_41 = arith.constant 1 : index
    %c1_42 = arith.constant 1 : index
    %c0_43 = arith.constant 0 : index
    %19 = vector.load %arg5[%c1_41, %c1_42, %c0_43] : memref<18x18x4xf32, #tpu.memory_space<vmem>>, vector<16x16x4xf32>
    %c0_44 = arith.constant 0 : index
    %c0_45 = arith.constant 0 : index
    %c16 = arith.constant 16 : index
    %20 = vector.load %arg6[%c0_44, %c0_45, %c16] : memref<16x16x36xf32, #tpu.memory_space<vmem>>, vector<16x16x4xf32>
    tpu.vector_store %arg6[%c0_44, %c0_45, %c16], %19 {strides = array<i32>} : memref<16x16x36xf32, #tpu.memory_space<vmem>>, vector<16x16x4xf32>,
    %c1_46 = arith.constant 1 : index
    %c2_47 = arith.constant 2 : index
    %c0_48 = arith.constant 0 : index
    %21 = vector.load %arg5[%c1_46, %c2_47, %c0_48] : memref<18x18x4xf32, #tpu.memory_space<vmem>>, vector<16x16x4xf32>
    %c0_49 = arith.constant 0 : index
    %c0_50 = arith.constant 0 : index
    %c20 = arith.constant 20 : index
    %22 = vector.load %arg6[%c0_49, %c0_50, %c20] : memref<16x16x36xf32, #tpu.memory_space<vmem>>, vector<16x16x4xf32>
    tpu.vector_store %arg6[%c0_49, %c0_50, %c20], %21 {strides = array<i32>} : memref<16x16x36xf32, #tpu.memory_space<vmem>>, vector<16x16x4xf32>,
    %c2_51 = arith.constant 2 : index
    %c0_52 = arith.constant 0 : index
    %c0_53 = arith.constant 0 : index
    %23 = vector.load %arg5[%c2_51, %c0_52, %c0_53] : memref<18x18x4xf32, #tpu.memory_space<vmem>>, vector<16x16x4xf32>
    %c0_54 = arith.constant 0 : index
    %c0_55 = arith.constant 0 : index
    %c24 = arith.constant 24 : index
    %24 = vector.load %arg6[%c0_54, %c0_55, %c24] : memref<16x16x36xf32, #tpu.memory_space<vmem>>, vector<16x16x4xf32>
    tpu.vector_store %arg6[%c0_54, %c0_55, %c24], %23 {strides = array<i32>} : memref<16x16x36xf32, #tpu.memory_space<vmem>>, vector<16x16x4xf32>,
    %c2_56 = arith.constant 2 : index
    %c1_57 = arith.constant 1 : index
    %c0_58 = arith.constant 0 : index
    %25 = vector.load %arg5[%c2_56, %c1_57, %c0_58] : memref<18x18x4xf32, #tpu.memory_space<vmem>>, vector<16x16x4xf32>
    %c0_59 = arith.constant 0 : index
    %c0_60 = arith.constant 0 : index
    %c28 = arith.constant 28 : index
    %26 = vector.load %arg6[%c0_59, %c0_60, %c28] : memref<16x16x36xf32, #tpu.memory_space<vmem>>, vector<16x16x4xf32>
    tpu.vector_store %arg6[%c0_59, %c0_60, %c28], %25 {strides = array<i32>} : memref<16x16x36xf32, #tpu.memory_space<vmem>>, vector<16x16x4xf32>,
    %c2_61 = arith.constant 2 : index
    %c2_62 = arith.constant 2 : index
    %c0_63 = arith.constant 0 : index
    %27 = vector.load %arg5[%c2_61, %c2_62, %c0_63] : memref<18x18x4xf32, #tpu.memory_space<vmem>>, vector<16x16x4xf32>
    %c0_64 = arith.constant 0 : index
    %c0_65 = arith.constant 0 : index
    %c32 = arith.constant 32 : index
    %28 = vector.load %arg6[%c0_64, %c0_65, %c32] : memref<16x16x36xf32, #tpu.memory_space<vmem>>, vector<16x16x4xf32>
    tpu.vector_store %arg6[%c0_64, %c0_65, %c32], %27 {strides = array<i32>} : memref<16x16x36xf32, #tpu.memory_space<vmem>>, vector<16x16x4xf32>,
    %c0_66 = arith.constant 0 : index
    %c0_67 = arith.constant 0 : index
    %c0_68 = arith.constant 0 : index
    %29 = vector.load %arg6[%c0_66, %c0_67, %c0_68] : memref<16x16x36xf32, #tpu.memory_space<vmem>>, vector<16x16x36xf32>
    %30 = vector.shape_cast %29 : vector<16x16x36xf32> to vector<256x36xf32>
    %c0_69 = arith.constant 0 : index
    %c0_70 = arith.constant 0 : index
    %31 = vector.load %arg2[%c0_69, %c0_70] : memref<36x4xf32, #tpu.memory_space<vmem>>, vector<36x4xf32>
    %cst = arith.constant dense<0.000000e+00> : vector<256x4xf32>
    %32 = tpu.matmul %30, %31, %cst {dimension_numbers = #tpu.dot_dimension_numbers<[1], [0], [0], [1], [0, 0, 1, 1], [], []>} : vector<256x36xf32>, vector<36x4xf32>, vector<256x4xf32> -> vector<256x4xf32>
    %33 = vector.shape_cast %32 : vector<256x4xf32> to vector<16x16x4xf32>
    %cst_71 = arith.constant dense<0.000000e+00> : vector<16x4xf32>
    %34 = vector.multi_reduction <add>, %33, %cst_71 [0] : vector<16x16x4xf32> to vector<16x4xf32>
    %cst_72 = arith.constant dense<0.000000e+00> : vector<4xf32>
    %35 = vector.multi_reduction <add>, %34, %cst_72 [0] : vector<16x4xf32> to vector<4xf32>
    %36 = vector.shape_cast %35 : vector<4xf32> to vector<1x4xf32>
    %37 = arith.mulf %33, %33 : vector<16x16x4xf32>
    %cst_73 = arith.constant dense<0.000000e+00> : vector<16x4xf32>
    %38 = vector.multi_reduction <add>, %37, %cst_73 [0] : vector<16x16x4xf32> to vector<16x4xf32>
    %cst_74 = arith.constant dense<0.000000e+00> : vector<4xf32>
    %39 = vector.multi_reduction <add>, %38, %cst_74 [0] : vector<16x4xf32> to vector<4xf32>
    %40 = vector.shape_cast %39 : vector<4xf32> to vector<1x4xf32>
    %cst_75 = arith.constant 3.906250e-03 : f32
    %41 = vector.broadcast %cst_75 : f32 to vector<1x4xf32>
    %42 = arith.mulf %36, %41 : vector<1x4xf32>
    %cst_76 = arith.constant 3.906250e-03 : f32
    %43 = vector.broadcast %cst_76 : f32 to vector<1x4xf32>
    %44 = arith.mulf %40, %43 : vector<1x4xf32>
    %45 = arith.mulf %42, %42 : vector<1x4xf32>
    %46 = arith.subf %44, %45 : vector<1x4xf32>
    %cst_77 = arith.constant 0.000000e+00 : f32
    %47 = vector.broadcast %cst_77 : f32 to vector<1x4xf32>
    %48 = arith.maximumf %46, %47 : vector<1x4xf32>
    %49 = vector.shape_cast %42 : vector<1x4xf32> to vector<1x1x4xf32>
    %50 = vector.broadcast %49 : vector<1x1x4xf32> to vector<16x16x4xf32>
    %51 = arith.subf %33, %50 : vector<16x16x4xf32>
    %cst_78 = arith.constant 9.99999974E-6 : f32
    %52 = vector.broadcast %cst_78 : f32 to vector<1x4xf32>
    %53 = arith.addf %48, %52 : vector<1x4xf32>
    %54 = math.rsqrt %53 : vector<1x4xf32>
    %55 = vector.shape_cast %54 : vector<1x4xf32> to vector<1x1x4xf32>
    %56 = vector.broadcast %55 : vector<1x1x4xf32> to vector<16x16x4xf32>
    %57 = arith.mulf %51, %56 : vector<16x16x4xf32>
    %cst_79 = arith.constant 0.000000e+00 : f32
    %58 = vector.broadcast %cst_79 : f32 to vector<16x16x4xf32>
    %59 = arith.maximumf %57, %58 : vector<16x16x4xf32>
    %c1_80 = arith.constant 1 : index
    %c1_81 = arith.constant 1 : index
    %c0_82 = arith.constant 0 : index
    %60 = vector.load %arg5[%c1_80, %c1_81, %c0_82] : memref<18x18x4xf32, #tpu.memory_space<vmem>>, vector<16x16x4xf32>
    tpu.vector_store %arg5[%c1_80, %c1_81, %c0_82], %59 {strides = array<i32>} : memref<18x18x4xf32, #tpu.memory_space<vmem>>, vector<16x16x4xf32>,
    %61 = vector.extract_strided_slice %59 {offsets = [1, 0, 0], sizes = [1, 16, 4], strides = [1, 1, 1]} : vector<16x16x4xf32> to vector<1x16x4xf32>
    %c0_83 = arith.constant 0 : index
    %c1_84 = arith.constant 1 : index
    %c0_85 = arith.constant 0 : index
    %62 = vector.load %arg5[%c0_83, %c1_84, %c0_85] : memref<18x18x4xf32, #tpu.memory_space<vmem>>, vector<1x16x4xf32>
    tpu.vector_store %arg5[%c0_83, %c1_84, %c0_85], %61 {strides = array<i32>} : memref<18x18x4xf32, #tpu.memory_space<vmem>>, vector<1x16x4xf32>,
    %63 = vector.extract_strided_slice %59 {offsets = [14, 0, 0], sizes = [1, 16, 4], strides = [1, 1, 1]} : vector<16x16x4xf32> to vector<1x16x4xf32>
    %c17_86 = arith.constant 17 : index
    %c1_87 = arith.constant 1 : index
    %c0_88 = arith.constant 0 : index
    %64 = vector.load %arg5[%c17_86, %c1_87, %c0_88] : memref<18x18x4xf32, #tpu.memory_space<vmem>>, vector<1x16x4xf32>
    tpu.vector_store %arg5[%c17_86, %c1_87, %c0_88], %63 {strides = array<i32>} : memref<18x18x4xf32, #tpu.memory_space<vmem>>, vector<1x16x4xf32>,
    %c0_89 = arith.constant 0 : index
    %c2_90 = arith.constant 2 : index
    %c0_91 = arith.constant 0 : index
    %65 = vector.load %arg5[%c0_89, %c2_90, %c0_91] : memref<18x18x4xf32, #tpu.memory_space<vmem>>, vector<18x1x4xf32>
    %c0_92 = arith.constant 0 : index
    %c0_93 = arith.constant 0 : index
    %c0_94 = arith.constant 0 : index
    %66 = vector.load %arg5[%c0_92, %c0_93, %c0_94] : memref<18x18x4xf32, #tpu.memory_space<vmem>>, vector<18x1x4xf32>
    tpu.vector_store %arg5[%c0_92, %c0_93, %c0_94], %65 {strides = array<i32>} : memref<18x18x4xf32, #tpu.memory_space<vmem>>, vector<18x1x4xf32>,
    %c0_95 = arith.constant 0 : index
    %c15_96 = arith.constant 15 : index
    %c0_97 = arith.constant 0 : index
    %67 = vector.load %arg5[%c0_95, %c15_96, %c0_97] : memref<18x18x4xf32, #tpu.memory_space<vmem>>, vector<18x1x4xf32>
    %c0_98 = arith.constant 0 : index
    %c17_99 = arith.constant 17 : index
    %c0_100 = arith.constant 0 : index
    %68 = vector.load %arg5[%c0_98, %c17_99, %c0_100] : memref<18x18x4xf32, #tpu.memory_space<vmem>>, vector<18x1x4xf32>
    tpu.vector_store %arg5[%c0_98, %c17_99, %c0_100], %67 {strides = array<i32>} : memref<18x18x4xf32, #tpu.memory_space<vmem>>, vector<18x1x4xf32>,
    %c0_101 = arith.constant 0 : index
    %c0_102 = arith.constant 0 : index
    %c0_103 = arith.constant 0 : index
    %69 = vector.load %arg5[%c0_101, %c0_102, %c0_103] : memref<18x18x4xf32, #tpu.memory_space<vmem>>, vector<16x16x4xf32>
    %c0_104 = arith.constant 0 : index
    %c0_105 = arith.constant 0 : index
    %c0_106 = arith.constant 0 : index
    %70 = vector.load %arg6[%c0_104, %c0_105, %c0_106] : memref<16x16x36xf32, #tpu.memory_space<vmem>>, vector<16x16x4xf32>
    tpu.vector_store %arg6[%c0_104, %c0_105, %c0_106], %69 {strides = array<i32>} : memref<16x16x36xf32, #tpu.memory_space<vmem>>, vector<16x16x4xf32>,
    %c0_107 = arith.constant 0 : index
    %c1_108 = arith.constant 1 : index
    %c0_109 = arith.constant 0 : index
    %71 = vector.load %arg5[%c0_107, %c1_108, %c0_109] : memref<18x18x4xf32, #tpu.memory_space<vmem>>, vector<16x16x4xf32>
    %c0_110 = arith.constant 0 : index
    %c0_111 = arith.constant 0 : index
    %c4_112 = arith.constant 4 : index
    %72 = vector.load %arg6[%c0_110, %c0_111, %c4_112] : memref<16x16x36xf32, #tpu.memory_space<vmem>>, vector<16x16x4xf32>
    tpu.vector_store %arg6[%c0_110, %c0_111, %c4_112], %71 {strides = array<i32>} : memref<16x16x36xf32, #tpu.memory_space<vmem>>, vector<16x16x4xf32>,
    %c0_113 = arith.constant 0 : index
    %c2_114 = arith.constant 2 : index
    %c0_115 = arith.constant 0 : index
    %73 = vector.load %arg5[%c0_113, %c2_114, %c0_115] : memref<18x18x4xf32, #tpu.memory_space<vmem>>, vector<16x16x4xf32>
    %c0_116 = arith.constant 0 : index
    %c0_117 = arith.constant 0 : index
    %c8_118 = arith.constant 8 : index
    %74 = vector.load %arg6[%c0_116, %c0_117, %c8_118] : memref<16x16x36xf32, #tpu.memory_space<vmem>>, vector<16x16x4xf32>
    tpu.vector_store %arg6[%c0_116, %c0_117, %c8_118], %73 {strides = array<i32>} : memref<16x16x36xf32, #tpu.memory_space<vmem>>, vector<16x16x4xf32>,
    %c1_119 = arith.constant 1 : index
    %c0_120 = arith.constant 0 : index
    %c0_121 = arith.constant 0 : index
    %75 = vector.load %arg5[%c1_119, %c0_120, %c0_121] : memref<18x18x4xf32, #tpu.memory_space<vmem>>, vector<16x16x4xf32>
    %c0_122 = arith.constant 0 : index
    %c0_123 = arith.constant 0 : index
    %c12_124 = arith.constant 12 : index
    %76 = vector.load %arg6[%c0_122, %c0_123, %c12_124] : memref<16x16x36xf32, #tpu.memory_space<vmem>>, vector<16x16x4xf32>
    tpu.vector_store %arg6[%c0_122, %c0_123, %c12_124], %75 {strides = array<i32>} : memref<16x16x36xf32, #tpu.memory_space<vmem>>, vector<16x16x4xf32>,
    %c1_125 = arith.constant 1 : index
    %c1_126 = arith.constant 1 : index
    %c0_127 = arith.constant 0 : index
    %77 = vector.load %arg5[%c1_125, %c1_126, %c0_127] : memref<18x18x4xf32, #tpu.memory_space<vmem>>, vector<16x16x4xf32>
    %c0_128 = arith.constant 0 : index
    %c0_129 = arith.constant 0 : index
    %c16_130 = arith.constant 16 : index
    %78 = vector.load %arg6[%c0_128, %c0_129, %c16_130] : memref<16x16x36xf32, #tpu.memory_space<vmem>>, vector<16x16x4xf32>
    tpu.vector_store %arg6[%c0_128, %c0_129, %c16_130], %77 {strides = array<i32>} : memref<16x16x36xf32, #tpu.memory_space<vmem>>, vector<16x16x4xf32>,
    %c1_131 = arith.constant 1 : index
    %c2_132 = arith.constant 2 : index
    %c0_133 = arith.constant 0 : index
    %79 = vector.load %arg5[%c1_131, %c2_132, %c0_133] : memref<18x18x4xf32, #tpu.memory_space<vmem>>, vector<16x16x4xf32>
    %c0_134 = arith.constant 0 : index
    %c0_135 = arith.constant 0 : index
    %c20_136 = arith.constant 20 : index
    %80 = vector.load %arg6[%c0_134, %c0_135, %c20_136] : memref<16x16x36xf32, #tpu.memory_space<vmem>>, vector<16x16x4xf32>
    tpu.vector_store %arg6[%c0_134, %c0_135, %c20_136], %79 {strides = array<i32>} : memref<16x16x36xf32, #tpu.memory_space<vmem>>, vector<16x16x4xf32>,
    %c2_137 = arith.constant 2 : index
    %c0_138 = arith.constant 0 : index
    %c0_139 = arith.constant 0 : index
    %81 = vector.load %arg5[%c2_137, %c0_138, %c0_139] : memref<18x18x4xf32, #tpu.memory_space<vmem>>, vector<16x16x4xf32>
    %c0_140 = arith.constant 0 : index
    %c0_141 = arith.constant 0 : index
    %c24_142 = arith.constant 24 : index
    %82 = vector.load %arg6[%c0_140, %c0_141, %c24_142] : memref<16x16x36xf32, #tpu.memory_space<vmem>>, vector<16x16x4xf32>
    tpu.vector_store %arg6[%c0_140, %c0_141, %c24_142], %81 {strides = array<i32>} : memref<16x16x36xf32, #tpu.memory_space<vmem>>, vector<16x16x4xf32>,
    %c2_143 = arith.constant 2 : index
    %c1_144 = arith.constant 1 : index
    %c0_145 = arith.constant 0 : index
    %83 = vector.load %arg5[%c2_143, %c1_144, %c0_145] : memref<18x18x4xf32, #tpu.memory_space<vmem>>, vector<16x16x4xf32>
    %c0_146 = arith.constant 0 : index
    %c0_147 = arith.constant 0 : index
    %c28_148 = arith.constant 28 : index
    %84 = vector.load %arg6[%c0_146, %c0_147, %c28_148] : memref<16x16x36xf32, #tpu.memory_space<vmem>>, vector<16x16x4xf32>
    tpu.vector_store %arg6[%c0_146, %c0_147, %c28_148], %83 {strides = array<i32>} : memref<16x16x36xf32, #tpu.memory_space<vmem>>, vector<16x16x4xf32>,
    %c2_149 = arith.constant 2 : index
    %c2_150 = arith.constant 2 : index
    %c0_151 = arith.constant 0 : index
    %85 = vector.load %arg5[%c2_149, %c2_150, %c0_151] : memref<18x18x4xf32, #tpu.memory_space<vmem>>, vector<16x16x4xf32>
    %c0_152 = arith.constant 0 : index
    %c0_153 = arith.constant 0 : index
    %c32_154 = arith.constant 32 : index
    %86 = vector.load %arg6[%c0_152, %c0_153, %c32_154] : memref<16x16x36xf32, #tpu.memory_space<vmem>>, vector<16x16x4xf32>
    tpu.vector_store %arg6[%c0_152, %c0_153, %c32_154], %85 {strides = array<i32>} : memref<16x16x36xf32, #tpu.memory_space<vmem>>, vector<16x16x4xf32>,
    %c0_155 = arith.constant 0 : index
    %c0_156 = arith.constant 0 : index
    %c0_157 = arith.constant 0 : index
    %87 = vector.load %arg6[%c0_155, %c0_156, %c0_157] : memref<16x16x36xf32, #tpu.memory_space<vmem>>, vector<16x16x36xf32>
    %88 = vector.shape_cast %87 : vector<16x16x36xf32> to vector<256x36xf32>
    %c0_158 = arith.constant 0 : index
    %c0_159 = arith.constant 0 : index
    %89 = vector.load %arg3[%c0_158, %c0_159] : memref<36x4xf32, #tpu.memory_space<vmem>>, vector<36x4xf32>
    %cst_160 = arith.constant dense<0.000000e+00> : vector<256x4xf32>
    %90 = tpu.matmul %88, %89, %cst_160 {dimension_numbers = #tpu.dot_dimension_numbers<[1], [0], [0], [1], [0, 0, 1, 1], [], []>} : vector<256x36xf32>, vector<36x4xf32>, vector<256x4xf32> -> vector<256x4xf32>
    %91 = vector.shape_cast %90 : vector<256x4xf32> to vector<16x16x4xf32>
    %cst_161 = arith.constant dense<0.000000e+00> : vector<16x4xf32>
    %92 = vector.multi_reduction <add>, %91, %cst_161 [0] : vector<16x16x4xf32> to vector<16x4xf32>
    %cst_162 = arith.constant dense<0.000000e+00> : vector<4xf32>
    %93 = vector.multi_reduction <add>, %92, %cst_162 [0] : vector<16x4xf32> to vector<4xf32>
    %94 = vector.shape_cast %93 : vector<4xf32> to vector<1x4xf32>
    %95 = arith.mulf %91, %91 : vector<16x16x4xf32>
    %cst_163 = arith.constant dense<0.000000e+00> : vector<16x4xf32>
    %96 = vector.multi_reduction <add>, %95, %cst_163 [0] : vector<16x16x4xf32> to vector<16x4xf32>
    %cst_164 = arith.constant dense<0.000000e+00> : vector<4xf32>
    %97 = vector.multi_reduction <add>, %96, %cst_164 [0] : vector<16x4xf32> to vector<4xf32>
    %98 = vector.shape_cast %97 : vector<4xf32> to vector<1x4xf32>
    %cst_165 = arith.constant 3.906250e-03 : f32
    %99 = vector.broadcast %cst_165 : f32 to vector<1x4xf32>
    %100 = arith.mulf %94, %99 : vector<1x4xf32>
    %cst_166 = arith.constant 3.906250e-03 : f32
    %101 = vector.broadcast %cst_166 : f32 to vector<1x4xf32>
    %102 = arith.mulf %98, %101 : vector<1x4xf32>
    %103 = arith.mulf %100, %100 : vector<1x4xf32>
    %104 = arith.subf %102, %103 : vector<1x4xf32>
    %cst_167 = arith.constant 0.000000e+00 : f32
    %105 = vector.broadcast %cst_167 : f32 to vector<1x4xf32>
    %106 = arith.maximumf %104, %105 : vector<1x4xf32>
    %107 = vector.shape_cast %100 : vector<1x4xf32> to vector<1x1x4xf32>
    %108 = vector.broadcast %107 : vector<1x1x4xf32> to vector<16x16x4xf32>
    %109 = arith.subf %91, %108 : vector<16x16x4xf32>
    %cst_168 = arith.constant 9.99999974E-6 : f32
    %110 = vector.broadcast %cst_168 : f32 to vector<1x4xf32>
    %111 = arith.addf %106, %110 : vector<1x4xf32>
    %112 = math.rsqrt %111 : vector<1x4xf32>
    %113 = vector.shape_cast %112 : vector<1x4xf32> to vector<1x1x4xf32>
    %114 = vector.broadcast %113 : vector<1x1x4xf32> to vector<16x16x4xf32>
    %115 = arith.mulf %109, %114 : vector<16x16x4xf32>
    %116 = arith.addf %1, %115 : vector<16x16x4xf32>
    %c0_169 = arith.constant 0 : index
    %c0_170 = arith.constant 0 : index
    %c0_171 = arith.constant 0 : index
    %c0_172 = arith.constant 0 : index
    %117 = vector.load %arg4[%c0_169, %c0_170, %c0_171, %c0_172] : memref<1x16x16x4xf32, #tpu.memory_space<vmem>>, vector<1x16x16x4xf32>
    %118 = vector.shape_cast %117 : vector<1x16x16x4xf32> to vector<16x16x4xf32>
    %119 = vector.shape_cast %116 : vector<16x16x4xf32> to vector<1x16x16x4xf32>
    tpu.vector_store %arg4[%c0_169, %c0_170, %c0_171, %c0_172], %119 {strides = array<i32>} : memref<1x16x16x4xf32, #tpu.memory_space<vmem>>, vector<1x16x16x4xf32>,
    return
  }
  func.func @transform_0(%arg0: i32) -> (i32, i32, i32, i32) {
    %c0_i32 = arith.constant 0 : i32
    %c0_i32_0 = arith.constant 0 : i32
    %c0_i32_1 = arith.constant 0 : i32
    %c0_i32_2 = arith.constant 0 : i32
    return %arg0, %c0_i32, %c0_i32_0, %c0_i32_1 : i32, i32, i32, i32
  }
  func.func @transform_1(%arg0: i32) -> (i32, i32) {
    %c0_i32 = arith.constant 0 : i32
    %c0_i32_0 = arith.constant 0 : i32
    %c0_i32_1 = arith.constant 0 : i32
    return %c0_i32, %c0_i32_0 : i32, i32
  }
  func.func @transform_2(%arg0: i32) -> (i32, i32) {
    %c0_i32 = arith.constant 0 : i32
    %c0_i32_0 = arith.constant 0 : i32
    %c0_i32_1 = arith.constant 0 : i32
    return %c0_i32, %c0_i32_0 : i32, i32
  }
  func.func @transform_3(%arg0: i32) -> (i32, i32, i32, i32) {
    %c0_i32 = arith.constant 0 : i32
    %c0_i32_0 = arith.constant 0 : i32
    %c0_i32_1 = arith.constant 0 : i32
    %c0_i32_2 = arith.constant 0 : i32
    return %arg0, %c0_i32, %c0_i32_0, %c0_i32_1 : i32, i32, i32, i32
  }
}

</mosaic_0001>

<llo_original>
// kernel: tpu_custom_call.1
$region0: #{tpu_custom_call.1}
  #allocation0 [shape = 'u32[]', space=smem, size = 0x4, offset = 0x4, fixed_abs, tag = 'smem constant byte address 0x4 - core index']
  #allocation1 [shape = 'u32[144,128]{1,0:T(1,128)}', space=vmem, size = 0x12000, scoped, tag = 'internal scratch']
  #allocation2 [shape = 'f32[18,18,4]{2,1,0:T(8,128)}', space=vmem, size = 0x36000, scoped, tag = 'scratch operand']
  #allocation3 [shape = 'f32[16,16,36]{2,1,0:T(8,128)}', space=vmem, size = 0x20000, scoped, tag = 'scratch operand']
  %s0 = inlined_call_operand.vmem [shape: f32[2,16,16,4], index: 0, kind: input, shape index: {}]
  %s1 = inlined_call_operand.vmem [shape: f32[36,4], index: 1, kind: input, shape index: {}]
  %s2 = inlined_call_operand.vmem [shape: f32[36,4], index: 2, kind: input, shape index: {}]
  %s3 = inlined_call_operand.vmem [shape: f32[2,16,16,4], index: 3, kind: output, shape index: {}]
  %s4 = sld [smem:[#allocation0]]
  $region45: #{tpu_custom_call.1} parent=0
    _
  %s6 = ssub.s32 1, %s4
  %s7 = scalar_select 0, %s6, %s4
  loop: start=0, step=1, limit=4
  $region2: #{tpu_custom_call.1} parent=0 // loop_pre_header
    _
  $region3: #{tpu_custom_call.1} parent=0 // loop_header
    %s9 = sphi 0, %s13
    %p10 = scmp.ge.s32.totalorder %s9, 4
    %s19 = sphi 0, %s21
    %s22 = sphi 0, %s19
    %s23 = sphi 0, %s22
    %s39 = sphi 0, %s23
    %s43 = sphi 0, %s43
    %s45 = sphi 0, %s43
    %s46 = sphi 0, %s45
    %s60 = sphi 0, %s46
    %s64 = sphi 0, %s64
    %s66 = sphi 0, %s64
    %s67 = sphi 0, %s66
    %s81 = sphi 0, %s67
    %s87 = sphi 0, %s89
    %s90 = sphi 0, %s87
    %s91 = sphi 0, %s90
    %s107 = sphi 0, %s91
  $region4: #{tpu_custom_call.1} parent=0 // loop_header_branch
    %12 = sbr.rel (%p10) target = $region8
  $region5: #{tpu_custom_call.1} parent=0 // loop_body
    %s14 = ssub.s32 %s9, 1
    %s15 = ssub.s32 %s9, 2
    %s16 = sadd.s32 %s9, 1
    %s17 = ssub.s32 %s9, %s16
    %p18 = scmp.eq.s32.totalorder %s17, 0
    %s20 = sadd.s32 %s19, 1
    %s21 = scalar_select %p18, %s19, %s20
    %p24 = pneg %p18
    %p25 = scmp.eq.s32.totalorder %s9, 1
    %p26 = por %p24, %p25
    %p27 = scmp.ne.s32.totalorder %s19, %s22
    %p28 = scmp.eq.s32.totalorder %s9, 0
    %p29 = por %p27, %p28
    %p30 = scmp.ne.s32.totalorder %s19, %s22
    %p31 = scmp.eq.s32.totalorder %s14, 1
    %p32 = por %p30, %p31
    %p33 = scmp.ne.s32.totalorder %s22, %s23
    %p34 = scmp.eq.s32.totalorder %s14, 0
    %p35 = por %p33, %p34
    %p36 = scmp.ne.s32.totalorder %s22, %s23
    %p37 = scmp.eq.s32.totalorder %s15, 1
    %p38 = por %p36, %p37
    %p40 = scmp.ne.s32.totalorder %s23, %s39
    %p41 = scmp.eq.s32.totalorder %s15, 0
    %p42 = por %p40, %p41
    %s44 = sadd.s32 %s43, 1
    %p47 = scmp.eq.s32.totalorder %s9, 1
    %p48 = scmp.ne.s32.totalorder %s43, %s45
    %p49 = scmp.eq.s32.totalorder %s9, 0
    %p50 = por %p48, %p49
    %p51 = scmp.ne.s32.totalorder %s43, %s45
    %p52 = scmp.eq.s32.totalorder %s14, 1
    %p53 = por %p51, %p52
    %p54 = scmp.ne.s32.totalorder %s45, %s46
    %p55 = scmp.eq.s32.totalorder %s14, 0
    %p56 = por %p54, %p55
    %p57 = scmp.ne.s32.totalorder %s45, %s46
    %p58 = scmp.eq.s32.totalorder %s15, 1
    %p59 = por %p57, %p58
    %p61 = scmp.ne.s32.totalorder %s46, %s60
    %p62 = scmp.eq.s32.totalorder %s15, 0
    %p63 = por %p61, %p62
    %s65 = sadd.s32 %s64, 1
    %p68 = scmp.eq.s32.totalorder %s9, 1
    %p69 = scmp.ne.s32.totalorder %s64, %s66
    %p70 = scmp.eq.s32.totalorder %s9, 0
    %p71 = por %p69, %p70
    %p72 = scmp.ne.s32.totalorder %s64, %s66
    %p73 = scmp.eq.s32.totalorder %s14, 1
    %p74 = por %p72, %p73
    %p75 = scmp.ne.s32.totalorder %s66, %s67
    %p76 = scmp.eq.s32.totalorder %s14, 0
    %p77 = por %p75, %p76
    %p78 = scmp.ne.s32.totalorder %s66, %s67
    %p79 = scmp.eq.s32.totalorder %s15, 1
    %p80 = por %p78, %p79
    %p82 = scmp.ne.s32.totalorder %s67, %s81
    %p83 = scmp.eq.s32.totalorder %s15, 0
    %p84 = por %p82, %p83
    %s85 = ssub.s32 %s9, %s16
    %p86 = scmp.eq.s32.totalorder %s85, 0
    %s88 = sadd.s32 %s87, 1
    %s89 = scalar_select %p86, %s87, %s88
    %p92 = pneg %p86
    %p93 = scmp.eq.s32.totalorder %s9, 1
    %p94 = por %p92, %p93
    %p95 = scmp.ne.s32.totalorder %s87, %s90
    %p96 = scmp.eq.s32.totalorder %s9, 0
    %p97 = por %p95, %p96
    %p98 = scmp.ne.s32.totalorder %s87, %s90
    %p99 = scmp.eq.s32.totalorder %s14, 1
    %p100 = por %p98, %p99
    %p101 = scmp.ne.s32.totalorder %s90, %s91
    %p102 = scmp.eq.s32.totalorder %s14, 0
    %p103 = por %p101, %p102
    %p104 = scmp.ne.s32.totalorder %s90, %s91
    %p105 = scmp.eq.s32.totalorder %s15, 1
    %p106 = por %p104, %p105
    %p108 = scmp.ne.s32.totalorder %s91, %s107
    %p109 = scmp.eq.s32.totalorder %s15, 0
    %p110 = por %p108, %p109
    %p111 = scmp.le.s32.totalorder 1, %s9
    %p112 = scmp.lt.s32.totalorder %s9, 3
    %p113 = pnand %p111, %p112
    %p114 = pneg %p113
    // Predicated region
    $region9: #{tpu_custom_call.1} parent=5 // pred_check
      _
    $region10: #{tpu_custom_call.1} parent=5 // pred_check_branch
      %116 = sbr.rel (%p113) target = $region12
    $region11: #{tpu_custom_call.1} parent=5 // pred_region
      %s117 = ssub.s32 %s9, 1
      // Predicated region
      $region13: #{tpu_custom_call.1} parent=11 // pred_check
        %p118 = pneg %p56
      $region14: #{tpu_custom_call.1} parent=11 // pred_check_branch
        %120 = sbr.rel (%p118) target = $region16
      $region15: #{tpu_custom_call.1} parent=11 // pred_region
        _
      $region16: #{tpu_custom_call.1} parent=11 // pred_fallthru
        _
      // Predicated region
      $region17: #{tpu_custom_call.1} parent=11 // pred_check
        %p121 = pneg %p77
      $region18: #{tpu_custom_call.1} parent=11 // pred_check_branch
        %123 = sbr.rel (%p121) target = $region20
      $region19: #{tpu_custom_call.1} parent=11 // pred_region
        _
      $region20: #{tpu_custom_call.1} parent=11 // pred_fallthru
        _
    $region12: #{tpu_custom_call.1} parent=5 // pred_fallthru
      _
    %p124 = scmp.lt.s32.totalorder %s9, 2
    // Predicated region
    $region21: #{tpu_custom_call.1} parent=5 // pred_check
      %p125 = pneg %p124
    $region22: #{tpu_custom_call.1} parent=5 // pred_check_branch
      %127 = sbr.rel (%p125) target = $region24
    $region23: #{tpu_custom_call.1} parent=5 // pred_region
      // Predicated region
      $region25: #{tpu_custom_call.1} parent=23 // pred_check
        %p128 = pneg %p29
      $region26: #{tpu_custom_call.1} parent=23 // pred_check_branch
        %130 = sbr.rel (%p128) target = $region28
      $region27: #{tpu_custom_call.1} parent=23 // pred_region
        %p131 = scmp.lt.s32.totalorder %s9, 1
        %s132 = scalar_select %p131, %s9, 1
        %s133 = smul.addr %s132, 32
        %s134 = smul.addr %s133, 8
        %s135 = scalar_lea.vmem %s0, %s134
      $region28: #{tpu_custom_call.1} parent=23 // pred_fallthru
        _
    $region24: #{tpu_custom_call.1} parent=5 // pred_fallthru
      _
    %p136 = scmp.le.s32.totalorder 1, %s9
    %p137 = scmp.lt.s32.totalorder %s9, 3
    %p138 = pnand %p136, %p137
    %p139 = pneg %p138
    // Predicated region
    $region29: #{tpu_custom_call.1} parent=5 // pred_check
      _
    $region30: #{tpu_custom_call.1} parent=5 // pred_check_branch
      %141 = sbr.rel (%p138) target = $region32
    $region31: #{tpu_custom_call.1} parent=5 // pred_region
      %s142 = ssub.s32 %s9, 1
      %p143 = scmp.lt.s32.totalorder %s14, 1
      %s144 = scalar_select %p143, %s14, 1
      %s145 = smul.addr %s144, 32
      %s146 = smul.addr %s145, 8
      %s147 = scalar_lea.vmem %s0, %s146
      %p148 = pneg %p35
      %p149 = pneg %p32
      %p150 = pneg %p56
      %p151 = pneg %p53
      %p152 = pneg %p77
      %p153 = pneg %p74
      %p154 = pneg %p103
      %p155 = pneg %p100
      %p156 = scmp.lt.s32.totalorder %s14, 1
      %s157 = scalar_select %p156, %s14, 1
      %s158 = smul.addr %s157, 32
      %s159 = smul.addr %s158, 8
      %s160 = scalar_lea.vmem %s3, %s159
      %p161 = scmp.lt.s32.totalorder %s14, 1
      %s162 = scalar_select %p161, %s14, 1
      %s163 = smul.addr %s162, 32
      %s164 = smul.addr %s163, 8
      %s165 = scalar_lea.vmem %s0, %s164
      %p166 = scmp.lt.s32.totalorder %s14, 1
      %s167 = scalar_select %p166, %s14, 1
      %s168 = smul.addr %s167, 32
      %s169 = smul.addr %s168, 8
      %s170 = scalar_lea.vmem %s3, %s169
      %v171 = vld [vmem:[%s165] sm:$0xff]
      %v172 = vld [vmem:[%s165 + $0x8] sm:$0xff]
      %v173 = vld [vmem:[%s165 + $0x10] sm:$0xff]
      %v174 = vld [vmem:[%s165 + $0x18] sm:$0xff]
      %v175 = vld [vmem:[%s165 + $0x20] sm:$0xff]
      %v176 = vld [vmem:[%s165 + $0x28] sm:$0xff]
      %v177 = vld [vmem:[%s165 + $0x30] sm:$0xff]
      %v178 = vld [vmem:[%s165 + $0x38] sm:$0xff]
      %v179 = vld [vmem:[%s165 + $0x40] sm:$0xff]
      %v180 = vld [vmem:[%s165 + $0x48] sm:$0xff]
      %v181 = vld [vmem:[%s165 + $0x50] sm:$0xff]
      %v182 = vld [vmem:[%s165 + $0x58] sm:$0xff]
      %v183 = vld [vmem:[%s165 + $0x60] sm:$0xff]
      %v184 = vld [vmem:[%s165 + $0x68] sm:$0xff]
      %v185 = vld [vmem:[%s165 + $0x70] sm:$0xff]
      %v186 = vld [vmem:[%s165 + $0x78] sm:$0xff]
      %v187 = vld [vmem:[%s165 + $0x80] sm:$0xff]
      %v188 = vld [vmem:[%s165 + $0x88] sm:$0xff]
      %v189 = vld [vmem:[%s165 + $0x90] sm:$0xff]
      %v190 = vld [vmem:[%s165 + $0x98] sm:$0xff]
      %v191 = vld [vmem:[%s165 + $0xa0] sm:$0xff]
      %v192 = vld [vmem:[%s165 + $0xa8] sm:$0xff]
      %v193 = vld [vmem:[%s165 + $0xb0] sm:$0xff]
      %v194 = vld [vmem:[%s165 + $0xb8] sm:$0xff]
      %v195 = vld [vmem:[%s165 + $0xc0] sm:$0xff]
      %v196 = vld [vmem:[%s165 + $0xc8] sm:$0xff]
      %v197 = vld [vmem:[%s165 + $0xd0] sm:$0xff]
      %v198 = vld [vmem:[%s165 + $0xd8] sm:$0xff]
      %v199 = vld [vmem:[%s165 + $0xe0] sm:$0xff]
      %v200 = vld [vmem:[%s165 + $0xe8] sm:$0xff]
      %v201 = vld [vmem:[%s165 + $0xf0] sm:$0xff]
      %v202 = vld [vmem:[%s165 + $0xf8] sm:$0xff]
      %s203 = scalar_lea.vmem [#allocation2], 24
      %vm204 = vcmask 31744
      %205 = vst.msk [vmem:[%s203 + $0x1] sm:$0xff] %vm204, %v171
      %206 = vst.msk [vmem:[%s203 + $0x9] sm:$0xff] %vm204, %v172
      %207 = vst.msk [vmem:[%s203 + $0x19] sm:$0xff] %vm204, %v173
      %208 = vst.msk [vmem:[%s203 + $0x21] sm:$0xff] %vm204, %v174
      %209 = vst.msk [vmem:[%s203 + $0x31] sm:$0xff] %vm204, %v175
      %210 = vst.msk [vmem:[%s203 + $0x39] sm:$0xff] %vm204, %v176
      %211 = vst.msk [vmem:[%s203 + $0x49] sm:$0xff] %vm204, %v177
      %212 = vst.msk [vmem:[%s203 + $0x51] sm:$0xff] %vm204, %v178
      %213 = vst.msk [vmem:[%s203 + $0x61] sm:$0xff] %vm204, %v179
      %214 = vst.msk [vmem:[%s203 + $0x69] sm:$0xff] %vm204, %v180
      %215 = vst.msk [vmem:[%s203 + $0x79] sm:$0xff] %vm204, %v181
      %216 = vst.msk [vmem:[%s203 + $0x81] sm:$0xff] %vm204, %v182
      %217 = vst.msk [vmem:[%s203 + $0x91] sm:$0xff] %vm204, %v183
      %218 = vst.msk [vmem:[%s203 + $0x99] sm:$0xff] %vm204, %v184
      %219 = vst.msk [vmem:[%s203 + $0xa9] sm:$0xff] %vm204, %v185
      %220 = vst.msk [vmem:[%s203 + $0xb1] sm:$0xff] %vm204, %v186
      %221 = vst.msk [vmem:[%s203 + $0xc1] sm:$0xff] %vm204, %v187
      %222 = vst.msk [vmem:[%s203 + $0xc9] sm:$0xff] %vm204, %v188
      %223 = vst.msk [vmem:[%s203 + $0xd9] sm:$0xff] %vm204, %v189
      %224 = vst.msk [vmem:[%s203 + $0xe1] sm:$0xff] %vm204, %v190
      %225 = vst.msk [vmem:[%s203 + $0xf1] sm:$0xff] %vm204, %v191
      %226 = vst.msk [vmem:[%s203 + $0xf9] sm:$0xff] %vm204, %v192
      %227 = vst.msk [vmem:[%s203 + $0x109] sm:$0xff] %vm204, %v193
      %228 = vst.msk [vmem:[%s203 + $0x111] sm:$0xff] %vm204, %v194
      %229 = vst.msk [vmem:[%s203 + $0x121] sm:$0xff] %vm204, %v195
      %230 = vst.msk [vmem:[%s203 + $0x129] sm:$0xff] %vm204, %v196
      %231 = vst.msk [vmem:[%s203 + $0x139] sm:$0xff] %vm204, %v197
      %232 = vst.msk [vmem:[%s203 + $0x141] sm:$0xff] %vm204, %v198
      %233 = vst.msk [vmem:[%s203 + $0x151] sm:$0xff] %vm204, %v199
      %234 = vst.msk [vmem:[%s203 + $0x159] sm:$0xff] %vm204, %v200
      %235 = vst.msk [vmem:[%s203 + $0x169] sm:$0xff] %vm204, %v201
      %236 = vst.msk [vmem:[%s203 + $0x171] sm:$0xff] %vm204, %v202
      %237 = vst.msk [vmem:[#allocation2 + $0x1] sm:$0xff] %vm204, %v173
      %238 = vst.msk [vmem:[#allocation2 + $0x9] sm:$0xff] %vm204, %v174
      %s239 = scalar_lea.vmem [#allocation2], 408
      %240 = vst.msk [vmem:[%s239 + $0x1] sm:$0xff] %vm204, %v199
      %241 = vst.msk [vmem:[%s239 + $0x9] sm:$0xff] %vm204, %v200
      %v242 = vld [vmem:[#allocation2 + $0x2] sm:$0x1]
      %v243 = vld [vmem:[#allocation2 + $0x1a] sm:$0x1]
      %v244 = vld [vmem:[#allocation2 + $0x32] sm:$0x1]
      %v245 = vld [vmem:[#allocation2 + $0x4a] sm:$0x1]
      %v246 = vld [vmem:[#allocation2 + $0x62] sm:$0x1]
      %v247 = vld [vmem:[#allocation2 + $0x7a] sm:$0x1]
      %v248 = vld [vmem:[#allocation2 + $0x92] sm:$0x1]
      %v249 = vld [vmem:[#allocation2 + $0xaa] sm:$0x1]
      %v250 = vld [vmem:[#allocation2 + $0xc2] sm:$0x1]
      %v251 = vld [vmem:[#allocation2 + $0xda] sm:$0x1]
      %v252 = vld [vmem:[#allocation2 + $0xf2] sm:$0x1]
      %v253 = vld [vmem:[#allocation2 + $0x10a] sm:$0x1]
      %v254 = vld [vmem:[#allocation2 + $0x122] sm:$0x1]
      %v255 = vld [vmem:[#allocation2 + $0x13a] sm:$0x1]
      %v256 = vld [vmem:[#allocation2 + $0x152] sm:$0x1]
      %v257 = vld [vmem:[#allocation2 + $0x16a] sm:$0x1]
      %v258 = vld [vmem:[#allocation2 + $0x182] sm:$0x1]
      %v259 = vld [vmem:[#allocation2 + $0x19a] sm:$0x1]
      %vm260 = vcmask 24576
      %261 = vst.msk [vmem:[#allocation2] sm:$0x1] %vm260, %v242
      %262 = vst.msk [vmem:[#allocation2 + $0x18] sm:$0x1] %vm260, %v243
      %263 = vst.msk [vmem:[#allocation2 + $0x30] sm:$0x1] %vm260, %v244
      %264 = vst.msk [vmem:[#allocation2 + $0x48] sm:$0x1] %vm260, %v245
      %265 = vst.msk [vmem:[#allocation2 + $0x60] sm:$0x1] %vm260, %v246
      %266 = vst.msk [vmem:[#allocation2 + $0x78] sm:$0x1] %vm260, %v247
      %267 = vst.msk [vmem:[#allocation2 + $0x90] sm:$0x1] %vm260, %v248
      %268 = vst.msk [vmem:[#allocation2 + $0xa8] sm:$0x1] %vm260, %v249
      %269 = vst.msk [vmem:[#allocation2 + $0xc0] sm:$0x1] %vm260, %v250
      %270 = vst.msk [vmem:[#allocation2 + $0xd8] sm:$0x1] %vm260, %v251
      %271 = vst.msk [vmem:[#allocation2 + $0xf0] sm:$0x1] %vm260, %v252
      %272 = vst.msk [vmem:[#allocation2 + $0x108] sm:$0x1] %vm260, %v253
      %273 = vst.msk [vmem:[#allocation2 + $0x120] sm:$0x1] %vm260, %v254
      %274 = vst.msk [vmem:[#allocation2 + $0x138] sm:$0x1] %vm260, %v255
      %275 = vst.msk [vmem:[#allocation2 + $0x150] sm:$0x1] %vm260, %v256
      %276 = vst.msk [vmem:[#allocation2 + $0x168] sm:$0x1] %vm260, %v257
      %277 = vst.msk [vmem:[#allocation2 + $0x180] sm:$0x1] %vm260, %v258
      %278 = vst.msk [vmem:[#allocation2 + $0x198] sm:$0x1] %vm260, %v259
      %v279 = vld [vmem:[#allocation2 + $0xf] sm:$0x1]
      %v280 = vld [vmem:[#allocation2 + $0x27] sm:$0x1]
      %v281 = vld [vmem:[#allocation2 + $0x3f] sm:$0x1]
      %v282 = vld [vmem:[#allocation2 + $0x57] sm:$0x1]
      %v283 = vld [vmem:[#allocation2 + $0x6f] sm:$0x1]
      %v284 = vld [vmem:[#allocation2 + $0x87] sm:$0x1]
      %v285 = vld [vmem:[#allocation2 + $0x9f] sm:$0x1]
      %v286 = vld [vmem:[#allocation2 + $0xb7] sm:$0x1]
      %v287 = vld [vmem:[#allocation2 + $0xcf] sm:$0x1]
      %v288 = vld [vmem:[#allocation2 + $0xe7] sm:$0x1]
      %v289 = vld [vmem:[#allocation2 + $0xff] sm:$0x1]
      %v290 = vld [vmem:[#allocation2 + $0x117] sm:$0x1]
      %v291 = vld [vmem:[#allocation2 + $0x12f] sm:$0x1]
      %v292 = vld [vmem:[#allocation2 + $0x147] sm:$0x1]
      %v293 = vld [vmem:[#allocation2 + $0x15f] sm:$0x1]
      %v294 = vld [vmem:[#allocation2 + $0x177] sm:$0x1]
      %v295 = vld [vmem:[#allocation2 + $0x18f] sm:$0x1]
      %v296 = vld [vmem:[#allocation2 + $0x1a7] sm:$0x1]
      %297 = vst.msk [vmem:[#allocation2 + $0x11] sm:$0x1] %vm260, %v279
      %298 = vst.msk [vmem:[#allocation2 + $0x29] sm:$0x1] %vm260, %v280
      %299 = vst.msk [vmem:[#allocation2 + $0x41] sm:$0x1] %vm260, %v281
      %300 = vst.msk [vmem:[#allocation2 + $0x59] sm:$0x1] %vm260, %v282
      %301 = vst.msk [vmem:[#allocation2 + $0x71] sm:$0x1] %vm260, %v283
      %302 = vst.msk [vmem:[#allocation2 + $0x89] sm:$0x1] %vm260, %v284
      %303 = vst.msk [vmem:[#allocation2 + $0xa1] sm:$0x1] %vm260, %v285
      %304 = vst.msk [vmem:[#allocation2 + $0xb9] sm:$0x1] %vm260, %v286
      %305 = vst.msk [vmem:[#allocation2 + $0xd1] sm:$0x1] %vm260, %v287
      %306 = vst.msk [vmem:[#allocation2 + $0xe9] sm:$0x1] %vm260, %v288
      %307 = vst.msk [vmem:[#allocation2 + $0x101] sm:$0x1] %vm260, %v289
      %308 = vst.msk [vmem:[#allocation2 + $0x119] sm:$0x1] %vm260, %v290
      %309 = vst.msk [vmem:[#allocation2 + $0x131] sm:$0x1] %vm260, %v291
      %310 = vst.msk [vmem:[#allocation2 + $0x149] sm:$0x1] %vm260, %v292
      %311 = vst.msk [vmem:[#allocation2 + $0x161] sm:$0x1] %vm260, %v293
      %312 = vst.msk [vmem:[#allocation2 + $0x179] sm:$0x1] %vm260, %v294
      %313 = vst.msk [vmem:[#allocation2 + $0x191] sm:$0x1] %vm260, %v295
      %314 = vst.msk [vmem:[#allocation2 + $0x1a9] sm:$0x1] %vm260, %v296
      %v315 = vld [vmem:[#allocation2] sm:$0xff]
      %v316 = vld [vmem:[#allocation2 + $0x8] sm:$0xff]
      %v317 = vld [vmem:[#allocation2 + $0x18] sm:$0xff]
      %v318 = vld [vmem:[#allocation2 + $0x20] sm:$0xff]
      %v319 = vld [vmem:[#allocation2 + $0x30] sm:$0xff]
      %v320 = vld [vmem:[#allocation2 + $0x38] sm:$0xff]
      %v321 = vld [vmem:[#allocation2 + $0x48] sm:$0xff]
      %v322 = vld [vmem:[#allocation2 + $0x50] sm:$0xff]
      %v323 = vld [vmem:[#allocation2 + $0x60] sm:$0xff]
      %v324 = vld [vmem:[#allocation2 + $0x68] sm:$0xff]
      %v325 = vld [vmem:[#allocation2 + $0x78] sm:$0xff]
      %v326 = vld [vmem:[#allocation2 + $0x80] sm:$0xff]
      %v327 = vld [vmem:[#allocation2 + $0x90] sm:$0xff]
      %v328 = vld [vmem:[#allocation2 + $0x98] sm:$0xff]
      %v329 = vld [vmem:[#allocation2 + $0xa8] sm:$0xff]
      %v330 = vld [vmem:[#allocation2 + $0xb0] sm:$0xff]
      %v331 = vld [vmem:[#allocation2 + $0xc0] sm:$0xff]
      %v332 = vld [vmem:[#allocation2 + $0xc8] sm:$0xff]
      %v333 = vld [vmem:[#allocation2 + $0xd8] sm:$0xff]
      %v334 = vld [vmem:[#allocation2 + $0xe0] sm:$0xff]
      %v335 = vld [vmem:[#allocation2 + $0xf0] sm:$0xff]
      %v336 = vld [vmem:[#allocation2 + $0xf8] sm:$0xff]
      %v337 = vld [vmem:[#allocation2 + $0x108] sm:$0xff]
      %v338 = vld [vmem:[#allocation2 + $0x110] sm:$0xff]
      %v339 = vld [vmem:[#allocation2 + $0x120] sm:$0xff]
      %v340 = vld [vmem:[#allocation2 + $0x128] sm:$0xff]
      %v341 = vld [vmem:[#allocation2 + $0x138] sm:$0xff]
      %v342 = vld [vmem:[#allocation2 + $0x140] sm:$0xff]
      %v343 = vld [vmem:[#allocation2 + $0x150] sm:$0xff]
      %v344 = vld [vmem:[#allocation2 + $0x158] sm:$0xff]
      %v345 = vld [vmem:[#allocation2 + $0x168] sm:$0xff]
      %v346 = vld [vmem:[#allocation2 + $0x170] sm:$0xff]
      %347 = vst.msk [vmem:[#allocation3] sm:$0xff] %vm204, %v315
      %348 = vst.msk [vmem:[#allocation3 + $0x8] sm:$0xff] %vm204, %v316
      %349 = vst.msk [vmem:[#allocation3 + $0x10] sm:$0xff] %vm204, %v317
      %350 = vst.msk [vmem:[#allocation3 + $0x18] sm:$0xff] %vm204, %v318
      %351 = vst.msk [vmem:[#allocation3 + $0x20] sm:$0xff] %vm204, %v319
      %352 = vst.msk [vmem:[#allocation3 + $0x28] sm:$0xff] %vm204, %v320
      %353 = vst.msk [vmem:[#allocation3 + $0x30] sm:$0xff] %vm204, %v321
      %354 = vst.msk [vmem:[#allocation3 + $0x38] sm:$0xff] %vm204, %v322
      %355 = vst.msk [vmem:[#allocation3 + $0x40] sm:$0xff] %vm204, %v323
      %356 = vst.msk [vmem:[#allocation3 + $0x48] sm:$0xff] %vm204, %v324
      %357 = vst.msk [vmem:[#allocation3 + $0x50] sm:$0xff] %vm204, %v325
      %358 = vst.msk [vmem:[#allocation3 + $0x58] sm:$0xff] %vm204, %v326
      %359 = vst.msk [vmem:[#allocation3 + $0x60] sm:$0xff] %vm204, %v327
      %360 = vst.msk [vmem:[#allocation3 + $0x68] sm:$0xff] %vm204, %v328
      %361 = vst.msk [vmem:[#allocation3 + $0x70] sm:$0xff] %vm204, %v329
      %362 = vst.msk [vmem:[#allocation3 + $0x78] sm:$0xff] %vm204, %v330
      %363 = vst.msk [vmem:[#allocation3 + $0x80] sm:$0xff] %vm204, %v331
      %364 = vst.msk [vmem:[#allocation3 + $0x88] sm:$0xff] %vm204, %v332
      %365 = vst.msk [vmem:[#allocation3 + $0x90] sm:$0xff] %vm204, %v333
      %366 = vst.msk [vmem:[#allocation3 + $0x98] sm:$0xff] %vm204, %v334
      %367 = vst.msk [vmem:[#allocation3 + $0xa0] sm:$0xff] %vm204, %v335
      %368 = vst.msk [vmem:[#allocation3 + $0xa8] sm:$0xff] %vm204, %v336
      %369 = vst.msk [vmem:[#allocation3 + $0xb0] sm:$0xff] %vm204, %v337
      %370 = vst.msk [vmem:[#allocation3 + $0xb8] sm:$0xff] %vm204, %v338
      %371 = vst.msk [vmem:[#allocation3 + $0xc0] sm:$0xff] %vm204, %v339
      %372 = vst.msk [vmem:[#allocation3 + $0xc8] sm:$0xff] %vm204, %v340
      %373 = vst.msk [vmem:[#allocation3 + $0xd0] sm:$0xff] %vm204, %v341
      %374 = vst.msk [vmem:[#allocation3 + $0xd8] sm:$0xff] %vm204, %v342
      %375 = vst.msk [vmem:[#allocation3 + $0xe0] sm:$0xff] %vm204, %v343
      %376 = vst.msk [vmem:[#allocation3 + $0xe8] sm:$0xff] %vm204, %v344
      %377 = vst.msk [vmem:[#allocation3 + $0xf0] sm:$0xff] %vm204, %v345
      %378 = vst.msk [vmem:[#allocation3 + $0xf8] sm:$0xff] %vm204, %v346
      %v379 = vld [vmem:[#allocation2 + $0x1] sm:$0xff]
      %v380 = vld [vmem:[#allocation2 + $0x9] sm:$0xff]
      %v381 = vld [vmem:[#allocation2 + $0x19] sm:$0xff]
      %v382 = vld [vmem:[#allocation2 + $0x21] sm:$0xff]
      %v383 = vld [vmem:[#allocation2 + $0x31] sm:$0xff]
      %v384 = vld [vmem:[#allocation2 + $0x39] sm:$0xff]
      %v385 = vld [vmem:[#allocation2 + $0x49] sm:$0xff]
      %v386 = vld [vmem:[#allocation2 + $0x51] sm:$0xff]
      %v387 = vld [vmem:[#allocation2 + $0x61] sm:$0xff]
      %v388 = vld [vmem:[#allocation2 + $0x69] sm:$0xff]
      %v389 = vld [vmem:[#allocation2 + $0x79] sm:$0xff]
      %v390 = vld [vmem:[#allocation2 + $0x81] sm:$0xff]
      %v391 = vld [vmem:[#allocation2 + $0x91] sm:$0xff]
      %v392 = vld [vmem:[#allocation2 + $0x99] sm:$0xff]
      %v393 = vld [vmem:[#allocation2 + $0xa9] sm:$0xff]
      %v394 = vld [vmem:[#allocation2 + $0xb1] sm:$0xff]
      %v395 = vld [vmem:[#allocation2 + $0xc1] sm:$0xff]
      %v396 = vld [vmem:[#allocation2 + $0xc9] sm:$0xff]
      %v397 = vld [vmem:[#allocation2 + $0xd9] sm:$0xff]
      %v398 = vld [vmem:[#allocation2 + $0xe1] sm:$0xff]
      %v399 = vld [vmem:[#allocation2 + $0xf1] sm:$0xff]
      %v400 = vld [vmem:[#allocation2 + $0xf9] sm:$0xff]
      %v401 = vld [vmem:[#allocation2 + $0x109] sm:$0xff]
      %v402 = vld [vmem:[#allocation2 + $0x111] sm:$0xff]
      %v403 = vld [vmem:[#allocation2 + $0x121] sm:$0xff]
      %v404 = vld [vmem:[#allocation2 + $0x129] sm:$0xff]
      %v405 = vld [vmem:[#allocation2 + $0x139] sm:$0xff]
      %v406 = vld [vmem:[#allocation2 + $0x141] sm:$0xff]
      %v407 = vld [vmem:[#allocation2 + $0x151] sm:$0xff]
      %v408 = vld [vmem:[#allocation2 + $0x159] sm:$0xff]
      %v409 = vld [vmem:[#allocation2 + $0x169] sm:$0xff]
      %v410 = vld [vmem:[#allocation2 + $0x171] sm:$0xff]
      %443 = vrot.lane.b32.xlu0 %v379, 4
      %v444 = vpop.permute.xlu0 %443
      %445 = vrot.lane.b32.xlu0 %v380, 4
      %v446 = vpop.permute.xlu0 %445
      %447 = vrot.lane.b32.xlu0 %v381, 4
      %v448 = vpop.permute.xlu0 %447
      %449 = vrot.lane.b32.xlu0 %v382, 4
      %v450 = vpop.permute.xlu0 %449
      %451 = vrot.lane.b32.xlu0 %v383, 4
      %v452 = vpop.permute.xlu0 %451
      %453 = vrot.lane.b32.xlu0 %v384, 4
      %v454 = vpop.permute.xlu0 %453
      %455 = vrot.lane.b32.xlu0 %v385, 4
      %v456 = vpop.permute.xlu0 %455
      %457 = vrot.lane.b32.xlu0 %v386, 4
      %v458 = vpop.permute.xlu0 %457
      %459 = vrot.lane.b32.xlu0 %v387, 4
      %v460 = vpop.permute.xlu0 %459
      %461 = vrot.lane.b32.xlu0 %v388, 4
      %v462 = vpop.permute.xlu0 %461
      %463 = vrot.lane.b32.xlu0 %v389, 4
      %v464 = vpop.permute.xlu0 %463
      %465 = vrot.lane.b32.xlu0 %v390, 4
      %v466 = vpop.permute.xlu0 %465
      %467 = vrot.lane.b32.xlu0 %v391, 4
      %v468 = vpop.permute.xlu0 %467
      %469 = vrot.lane.b32.xlu0 %v392, 4
      %v470 = vpop.permute.xlu0 %469
      %471 = vrot.lane.b32.xlu0 %v393, 4
      %v472 = vpop.permute.xlu0 %471
      %473 = vrot.lane.b32.xlu0 %v394, 4
      %v474 = vpop.permute.xlu0 %473
      %475 = vrot.lane.b32.xlu0 %v395, 4
      %v476 = vpop.permute.xlu0 %475
      %477 = vrot.lane.b32.xlu0 %v396, 4
      %v478 = vpop.permute.xlu0 %477
      %479 = vrot.lane.b32.xlu0 %v397, 4
      %v480 = vpop.permute.xlu0 %479
      %481 = vrot.lane.b32.xlu0 %v398, 4
      %v482 = vpop.permute.xlu0 %481
      %483 = vrot.lane.b32.xlu0 %v399, 4
      %v484 = vpop.permute.xlu0 %483
      %485 = vrot.lane.b32.xlu0 %v400, 4
      %v486 = vpop.permute.xlu0 %485
      %487 = vrot.lane.b32.xlu0 %v401, 4
      %v488 = vpop.permute.xlu0 %487
      %489 = vrot.lane.b32.xlu0 %v402, 4
      %v490 = vpop.permute.xlu0 %489
      %491 = vrot.lane.b32.xlu0 %v403, 4
      %v492 = vpop.permute.xlu0 %491
      %493 = vrot.lane.b32.xlu0 %v404, 4
      %v494 = vpop.permute.xlu0 %493
      %495 = vrot.lane.b32.xlu0 %v405, 4
      %v496 = vpop.permute.xlu0 %495
      %497 = vrot.lane.b32.xlu0 %v406, 4
      %v498 = vpop.permute.xlu0 %497
      %499 = vrot.lane.b32.xlu0 %v407, 4
      %v500 = vpop.permute.xlu0 %499
      %501 = vrot.lane.b32.xlu0 %v408, 4
      %v502 = vpop.permute.xlu0 %501
      %503 = vrot.lane.b32.xlu0 %v409, 4
      %v504 = vpop.permute.xlu0 %503
      %505 = vrot.lane.b32.xlu0 %v410, 4
      %v506 = vpop.permute.xlu0 %505
      %vm539 = vcmask 64544
      %540 = vst.msk [vmem:[#allocation3] sm:$0xff] %vm539, %v444
      %541 = vst.msk [vmem:[#allocation3 + $0x8] sm:$0xff] %vm539, %v446
      %542 = vst.msk [vmem:[#allocation3 + $0x10] sm:$0xff] %vm539, %v448
      %543 = vst.msk [vmem:[#allocation3 + $0x18] sm:$0xff] %vm539, %v450
      %544 = vst.msk [vmem:[#allocation3 + $0x20] sm:$0xff] %vm539, %v452
      %545 = vst.msk [vmem:[#allocation3 + $0x28] sm:$0xff] %vm539, %v454
      %546 = vst.msk [vmem:[#allocation3 + $0x30] sm:$0xff] %vm539, %v456
      %547 = vst.msk [vmem:[#allocation3 + $0x38] sm:$0xff] %vm539, %v458
      %548 = vst.msk [vmem:[#allocation3 + $0x40] sm:$0xff] %vm539, %v460
      %549 = vst.msk [vmem:[#allocation3 + $0x48] sm:$0xff] %vm539, %v462
      %550 = vst.msk [vmem:[#allocation3 + $0x50] sm:$0xff] %vm539, %v464
      %551 = vst.msk [vmem:[#allocation3 + $0x58] sm:$0xff] %vm539, %v466
      %552 = vst.msk [vmem:[#allocation3 + $0x60] sm:$0xff] %vm539, %v468
      %553 = vst.msk [vmem:[#allocation3 + $0x68] sm:$0xff] %vm539, %v470
      %554 = vst.msk [vmem:[#allocation3 + $0x70] sm:$0xff] %vm539, %v472
      %555 = vst.msk [vmem:[#allocation3 + $0x78] sm:$0xff] %vm539, %v474
      %556 = vst.msk [vmem:[#allocation3 + $0x80] sm:$0xff] %vm539, %v476
      %557 = vst.msk [vmem:[#allocation3 + $0x88] sm:$0xff] %vm539, %v478
      %558 = vst.msk [vmem:[#allocation3 + $0x90] sm:$0xff] %vm539, %v480
      %559 = vst.msk [vmem:[#allocation3 + $0x98] sm:$0xff] %vm539, %v482
      %560 = vst.msk [vmem:[#allocation3 + $0xa0] sm:$0xff] %vm539, %v484
      %561 = vst.msk [vmem:[#allocation3 + $0xa8] sm:$0xff] %vm539, %v486
      %562 = vst.msk [vmem:[#allocation3 + $0xb0] sm:$0xff] %vm539, %v488
      %563 = vst.msk [vmem:[#allocation3 + $0xb8] sm:$0xff] %vm539, %v490
      %564 = vst.msk [vmem:[#allocation3 + $0xc0] sm:$0xff] %vm539, %v492
      %565 = vst.msk [vmem:[#allocation3 + $0xc8] sm:$0xff] %vm539, %v494
      %566 = vst.msk [vmem:[#allocation3 + $0xd0] sm:$0xff] %vm539, %v496
      %567 = vst.msk [vmem:[#allocation3 + $0xd8] sm:$0xff] %vm539, %v498
      %568 = vst.msk [vmem:[#allocation3 + $0xe0] sm:$0xff] %vm539, %v500
      %569 = vst.msk [vmem:[#allocation3 + $0xe8] sm:$0xff] %vm539, %v502
      %570 = vst.msk [vmem:[#allocation3 + $0xf0] sm:$0xff] %vm539, %v504
      %571 = vst.msk [vmem:[#allocation3 + $0xf8] sm:$0xff] %vm539, %v506
      %v572 = vld [vmem:[#allocation2 + $0x2] sm:$0xff]
      %v573 = vld [vmem:[#allocation2 + $0xa] sm:$0xff]
      %v574 = vld [vmem:[#allocation2 + $0x1a] sm:$0xff]
      %v575 = vld [vmem:[#allocation2 + $0x22] sm:$0xff]
      %v576 = vld [vmem:[#allocation2 + $0x32] sm:$0xff]
      %v577 = vld [vmem:[#allocation2 + $0x3a] sm:$0xff]
      %v578 = vld [vmem:[#allocation2 + $0x4a] sm:$0xff]
      %v579 = vld [vmem:[#allocation2 + $0x52] sm:$0xff]
      %v580 = vld [vmem:[#allocation2 + $0x62] sm:$0xff]
      %v581 = vld [vmem:[#allocation2 + $0x6a] sm:$0xff]
      %v582 = vld [vmem:[#allocation2 + $0x7a] sm:$0xff]
      %v583 = vld [vmem:[#allocation2 + $0x82] sm:$0xff]
      %v584 = vld [vmem:[#allocation2 + $0x92] sm:$0xff]
      %v585 = vld [vmem:[#allocation2 + $0x9a] sm:$0xff]
      %v586 = vld [vmem:[#allocation2 + $0xaa] sm:$0xff]
      %v587 = vld [vmem:[#allocation2 + $0xb2] sm:$0xff]
      %v588 = vld [vmem:[#allocation2 + $0xc2] sm:$0xff]
      %v589 = vld [vmem:[#allocation2 + $0xca] sm:$0xff]
      %v590 = vld [vmem:[#allocation2 + $0xda] sm:$0xff]
      %v591 = vld [vmem:[#allocation2 + $0xe2] sm:$0xff]
      %v592 = vld [vmem:[#allocation2 + $0xf2] sm:$0xff]
      %v593 = vld [vmem:[#allocation2 + $0xfa] sm:$0xff]
      %v594 = vld [vmem:[#allocation2 + $0x10a] sm:$0xff]
      %v595 = vld [vmem:[#allocation2 + $0x112] sm:$0xff]
      %v596 = vld [vmem:[#allocation2 + $0x122] sm:$0xff]
      %v597 = vld [vmem:[#allocation2 + $0x12a] sm:$0xff]
      %v598 = vld [vmem:[#allocation2 + $0x13a] sm:$0xff]
      %v599 = vld [vmem:[#allocation2 + $0x142] sm:$0xff]
      %v600 = vld [vmem:[#allocation2 + $0x152] sm:$0xff]
      %v601 = vld [vmem:[#allocation2 + $0x15a] sm:$0xff]
      %v602 = vld [vmem:[#allocation2 + $0x16a] sm:$0xff]
      %v603 = vld [vmem:[#allocation2 + $0x172] sm:$0xff]
      %636 = vrot.lane.b32.xlu0 %v572, 8
      %v637 = vpop.permute.xlu0 %636
      %638 = vrot.lane.b32.xlu0 %v573, 8
      %v639 = vpop.permute.xlu0 %638
      %640 = vrot.lane.b32.xlu0 %v574, 8
      %v641 = vpop.permute.xlu0 %640
      %642 = vrot.lane.b32.xlu0 %v575, 8
      %v643 = vpop.permute.xlu0 %642
      %644 = vrot.lane.b32.xlu0 %v576, 8
      %v645 = vpop.permute.xlu0 %644
      %646 = vrot.lane.b32.xlu0 %v577, 8
      %v647 = vpop.permute.xlu0 %646
      %648 = vrot.lane.b32.xlu0 %v578, 8
      %v649 = vpop.permute.xlu0 %648
      %650 = vrot.lane.b32.xlu0 %v579, 8
      %v651 = vpop.permute.xlu0 %650
      %652 = vrot.lane.b32.xlu0 %v580, 8
      %v653 = vpop.permute.xlu0 %652
      %654 = vrot.lane.b32.xlu0 %v581, 8
      %v655 = vpop.permute.xlu0 %654
      %656 = vrot.lane.b32.xlu0 %v582, 8
      %v657 = vpop.permute.xlu0 %656
      %658 = vrot.lane.b32.xlu0 %v583, 8
      %v659 = vpop.permute.xlu0 %658
      %660 = vrot.lane.b32.xlu0 %v584, 8
      %v661 = vpop.permute.xlu0 %660
      %662 = vrot.lane.b32.xlu0 %v585, 8
      %v663 = vpop.permute.xlu0 %662
      %664 = vrot.lane.b32.xlu0 %v586, 8
      %v665 = vpop.permute.xlu0 %664
      %666 = vrot.lane.b32.xlu0 %v587, 8
      %v667 = vpop.permute.xlu0 %666
      %668 = vrot.lane.b32.xlu0 %v588, 8
      %v669 = vpop.permute.xlu0 %668
      %670 = vrot.lane.b32.xlu0 %v589, 8
      %v671 = vpop.permute.xlu0 %670
      %672 = vrot.lane.b32.xlu0 %v590, 8
      %v673 = vpop.permute.xlu0 %672
      %674 = vrot.lane.b32.xlu0 %v591, 8
      %v675 = vpop.permute.xlu0 %674
      %676 = vrot.lane.b32.xlu0 %v592, 8
      %v677 = vpop.permute.xlu0 %676
      %678 = vrot.lane.b32.xlu0 %v593, 8
      %v679 = vpop.permute.xlu0 %678
      %680 = vrot.lane.b32.xlu0 %v594, 8
      %v681 = vpop.permute.xlu0 %680
      %682 = vrot.lane.b32.xlu0 %v595, 8
      %v683 = vpop.permute.xlu0 %682
      %684 = vrot.lane.b32.xlu0 %v596, 8
      %v685 = vpop.permute.xlu0 %684
      %686 = vrot.lane.b32.xlu0 %v597, 8
      %v687 = vpop.permute.xlu0 %686
      %688 = vrot.lane.b32.xlu0 %v598, 8
      %v689 = vpop.permute.xlu0 %688
      %690 = vrot.lane.b32.xlu0 %v599, 8
      %v691 = vpop.permute.xlu0 %690
      %692 = vrot.lane.b32.xlu0 %v600, 8
      %v693 = vpop.permute.xlu0 %692
      %694 = vrot.lane.b32.xlu0 %v601, 8
      %v695 = vpop.permute.xlu0 %694
      %696 = vrot.lane.b32.xlu0 %v602, 8
      %v697 = vpop.permute.xlu0 %696
      %698 = vrot.lane.b32.xlu0 %v603, 8
      %v699 = vpop.permute.xlu0 %698
      %vm732 = vcmask 97344
      %733 = vst.msk [vmem:[#allocation3] sm:$0xff] %vm732, %v637
      %734 = vst.msk [vmem:[#allocation3 + $0x8] sm:$0xff] %vm732, %v639
      %735 = vst.msk [vmem:[#allocation3 + $0x10] sm:$0xff] %vm732, %v641
      %736 = vst.msk [vmem:[#allocation3 + $0x18] sm:$0xff] %vm732, %v643
      %737 = vst.msk [vmem:[#allocation3 + $0x20] sm:$0xff] %vm732, %v645
      %738 = vst.msk [vmem:[#allocation3 + $0x28] sm:$0xff] %vm732, %v647
      %739 = vst.msk [vmem:[#allocation3 + $0x30] sm:$0xff] %vm732, %v649
      %740 = vst.msk [vmem:[#allocation3 + $0x38] sm:$0xff] %vm732, %v651
      %741 = vst.msk [vmem:[#allocation3 + $0x40] sm:$0xff] %vm732, %v653
      %742 = vst.msk [vmem:[#allocation3 + $0x48] sm:$0xff] %vm732, %v655
      %743 = vst.msk [vmem:[#allocation3 + $0x50] sm:$0xff] %vm732, %v657
      %744 = vst.msk [vmem:[#allocation3 + $0x58] sm:$0xff] %vm732, %v659
      %745 = vst.msk [vmem:[#allocation3 + $0x60] sm:$0xff] %vm732, %v661
      %746 = vst.msk [vmem:[#allocation3 + $0x68] sm:$0xff] %vm732, %v663
      %747 = vst.msk [vmem:[#allocation3 + $0x70] sm:$0xff] %vm732, %v665
      %748 = vst.msk [vmem:[#allocation3 + $0x78] sm:$0xff] %vm732, %v667
      %749 = vst.msk [vmem:[#allocation3 + $0x80] sm:$0xff] %vm732, %v669
      %750 = vst.msk [vmem:[#allocation3 + $0x88] sm:$0xff] %vm732, %v671
      %751 = vst.msk [vmem:[#allocation3 + $0x90] sm:$0xff] %vm732, %v673
      %752 = vst.msk [vmem:[#allocation3 + $0x98] sm:$0xff] %vm732, %v675
      %753 = vst.msk [vmem:[#allocation3 + $0xa0] sm:$0xff] %vm732, %v677
      %754 = vst.msk [vmem:[#allocation3 + $0xa8] sm:$0xff] %vm732, %v679
      %755 = vst.msk [vmem:[#allocation3 + $0xb0] sm:$0xff] %vm732, %v681
      %756 = vst.msk [vmem:[#allocation3 + $0xb8] sm:$0xff] %vm732, %v683
      %757 = vst.msk [vmem:[#allocation3 + $0xc0] sm:$0xff] %vm732, %v685
      %758 = vst.msk [vmem:[#allocation3 + $0xc8] sm:$0xff] %vm732, %v687
      %759 = vst.msk [vmem:[#allocation3 + $0xd0] sm:$0xff] %vm732, %v689
      %760 = vst.msk [vmem:[#allocation3 + $0xd8] sm:$0xff] %vm732, %v691
      %761 = vst.msk [vmem:[#allocation3 + $0xe0] sm:$0xff] %vm732, %v693
      %762 = vst.msk [vmem:[#allocation3 + $0xe8] sm:$0xff] %vm732, %v695
      %763 = vst.msk [vmem:[#allocation3 + $0xf0] sm:$0xff] %vm732, %v697
      %764 = vst.msk [vmem:[#allocation3 + $0xf8] sm:$0xff] %vm732, %v699
      %v765 = vld [vmem:[%s203] sm:$0xff]
      %v766 = vld [vmem:[%s203 + $0x8] sm:$0xff]
      %v767 = vld [vmem:[%s203 + $0x18] sm:$0xff]
      %v768 = vld [vmem:[%s203 + $0x20] sm:$0xff]
      %v769 = vld [vmem:[%s203 + $0x30] sm:$0xff]
      %v770 = vld [vmem:[%s203 + $0x38] sm:$0xff]
      %v771 = vld [vmem:[%s203 + $0x48] sm:$0xff]
      %v772 = vld [vmem:[%s203 + $0x50] sm:$0xff]
      %v773 = vld [vmem:[%s203 + $0x60] sm:$0xff]
      %v774 = vld [vmem:[%s203 + $0x68] sm:$0xff]
      %v775 = vld [vmem:[%s203 + $0x78] sm:$0xff]
      %v776 = vld [vmem:[%s203 + $0x80] sm:$0xff]
      %v777 = vld [vmem:[%s203 + $0x90] sm:$0xff]
      %v778 = vld [vmem:[%s203 + $0x98] sm:$0xff]
      %v779 = vld [vmem:[%s203 + $0xa8] sm:$0xff]
      %v780 = vld [vmem:[%s203 + $0xb0] sm:$0xff]
      %v781 = vld [vmem:[%s203 + $0xc0] sm:$0xff]
      %v782 = vld [vmem:[%s203 + $0xc8] sm:$0xff]
      %v783 = vld [vmem:[%s203 + $0xd8] sm:$0xff]
      %v784 = vld [vmem:[%s203 + $0xe0] sm:$0xff]
      %v785 = vld [vmem:[%s203 + $0xf0] sm:$0xff]
      %v786 = vld [vmem:[%s203 + $0xf8] sm:$0xff]
      %v787 = vld [vmem:[%s203 + $0x108] sm:$0xff]
      %v788 = vld [vmem:[%s203 + $0x110] sm:$0xff]
      %v789 = vld [vmem:[%s203 + $0x120] sm:$0xff]
      %v790 = vld [vmem:[%s203 + $0x128] sm:$0xff]
      %v791 = vld [vmem:[%s203 + $0x138] sm:$0xff]
      %v792 = vld [vmem:[%s203 + $0x140] sm:$0xff]
      %v793 = vld [vmem:[%s203 + $0x150] sm:$0xff]
      %v794 = vld [vmem:[%s203 + $0x158] sm:$0xff]
      %v795 = vld [vmem:[%s203 + $0x168] sm:$0xff]
      %v796 = vld [vmem:[%s203 + $0x170] sm:$0xff]
      %829 = vrot.lane.b32.xlu0 %v765, 12
      %v830 = vpop.permute.xlu0 %829
      %831 = vrot.lane.b32.xlu0 %v766, 12
      %v832 = vpop.permute.xlu0 %831
      %833 = vrot.lane.b32.xlu0 %v767, 12
      %v834 = vpop.permute.xlu0 %833
      %835 = vrot.lane.b32.xlu0 %v768, 12
      %v836 = vpop.permute.xlu0 %835
      %837 = vrot.lane.b32.xlu0 %v769, 12
      %v838 = vpop.permute.xlu0 %837
      %839 = vrot.lane.b32.xlu0 %v770, 12
      %v840 = vpop.permute.xlu0 %839
      %841 = vrot.lane.b32.xlu0 %v771, 12
      %v842 = vpop.permute.xlu0 %841
      %843 = vrot.lane.b32.xlu0 %v772, 12
      %v844 = vpop.permute.xlu0 %843
      %845 = vrot.lane.b32.xlu0 %v773, 12
      %v846 = vpop.permute.xlu0 %845
      %847 = vrot.lane.b32.xlu0 %v774, 12
      %v848 = vpop.permute.xlu0 %847
      %849 = vrot.lane.b32.xlu0 %v775, 12
      %v850 = vpop.permute.xlu0 %849
      %851 = vrot.lane.b32.xlu0 %v776, 12
      %v852 = vpop.permute.xlu0 %851
      %853 = vrot.lane.b32.xlu0 %v777, 12
      %v854 = vpop.permute.xlu0 %853
      %855 = vrot.lane.b32.xlu0 %v778, 12
      %v856 = vpop.permute.xlu0 %855
      %857 = vrot.lane.b32.xlu0 %v779, 12
      %v858 = vpop.permute.xlu0 %857
      %859 = vrot.lane.b32.xlu0 %v780, 12
      %v860 = vpop.permute.xlu0 %859
      %861 = vrot.lane.b32.xlu0 %v781, 12
      %v862 = vpop.permute.xlu0 %861
      %863 = vrot.lane.b32.xlu0 %v782, 12
      %v864 = vpop.permute.xlu0 %863
      %865 = vrot.lane.b32.xlu0 %v783, 12
      %v866 = vpop.permute.xlu0 %865
      %867 = vrot.lane.b32.xlu0 %v784, 12
      %v868 = vpop.permute.xlu0 %867
      %869 = vrot.lane.b32.xlu0 %v785, 12
      %v870 = vpop.permute.xlu0 %869
      %871 = vrot.lane.b32.xlu0 %v786, 12
      %v872 = vpop.permute.xlu0 %871
      %873 = vrot.lane.b32.xlu0 %v787, 12
      %v874 = vpop.permute.xlu0 %873
      %875 = vrot.lane.b32.xlu0 %v788, 12
      %v876 = vpop.permute.xlu0 %875
      %877 = vrot.lane.b32.xlu0 %v789, 12
      %v878 = vpop.permute.xlu0 %877
      %879 = vrot.lane.b32.xlu0 %v790, 12
      %v880 = vpop.permute.xlu0 %879
      %881 = vrot.lane.b32.xlu0 %v791, 12
      %v882 = vpop.permute.xlu0 %881
      %883 = vrot.lane.b32.xlu0 %v792, 12
      %v884 = vpop.permute.xlu0 %883
      %885 = vrot.lane.b32.xlu0 %v793, 12
      %v886 = vpop.permute.xlu0 %885
      %887 = vrot.lane.b32.xlu0 %v794, 12
      %v888 = vpop.permute.xlu0 %887
      %889 = vrot.lane.b32.xlu0 %v795, 12
      %v890 = vpop.permute.xlu0 %889
      %891 = vrot.lane.b32.xlu0 %v796, 12
      %v892 = vpop.permute.xlu0 %891
      %vm925 = vcmask 130144
      %926 = vst.msk [vmem:[#allocation3] sm:$0xff] %vm925, %v830
      %927 = vst.msk [vmem:[#allocation3 + $0x8] sm:$0xff] %vm925, %v832
      %928 = vst.msk [vmem:[#allocation3 + $0x10] sm:$0xff] %vm925, %v834
      %929 = vst.msk [vmem:[#allocation3 + $0x18] sm:$0xff] %vm925, %v836
      %930 = vst.msk [vmem:[#allocation3 + $0x20] sm:$0xff] %vm925, %v838
      %931 = vst.msk [vmem:[#allocation3 + $0x28] sm:$0xff] %vm925, %v840
      %932 = vst.msk [vmem:[#allocation3 + $0x30] sm:$0xff] %vm925, %v842
      %933 = vst.msk [vmem:[#allocation3 + $0x38] sm:$0xff] %vm925, %v844
      %934 = vst.msk [vmem:[#allocation3 + $0x40] sm:$0xff] %vm925, %v846
      %935 = vst.msk [vmem:[#allocation3 + $0x48] sm:$0xff] %vm925, %v848
      %936 = vst.msk [vmem:[#allocation3 + $0x50] sm:$0xff] %vm925, %v850
      %937 = vst.msk [vmem:[#allocation3 + $0x58] sm:$0xff] %vm925, %v852
      %938 = vst.msk [vmem:[#allocation3 + $0x60] sm:$0xff] %vm925, %v854
      %939 = vst.msk [vmem:[#allocation3 + $0x68] sm:$0xff] %vm925, %v856
      %940 = vst.msk [vmem:[#allocation3 + $0x70] sm:$0xff] %vm925, %v858
      %941 = vst.msk [vmem:[#allocation3 + $0x78] sm:$0xff] %vm925, %v860
      %942 = vst.msk [vmem:[#allocation3 + $0x80] sm:$0xff] %vm925, %v862
      %943 = vst.msk [vmem:[#allocation3 + $0x88] sm:$0xff] %vm925, %v864
      %944 = vst.msk [vmem:[#allocation3 + $0x90] sm:$0xff] %vm925, %v866
      %945 = vst.msk [vmem:[#allocation3 + $0x98] sm:$0xff] %vm925, %v868
      %946 = vst.msk [vmem:[#allocation3 + $0xa0] sm:$0xff] %vm925, %v870
      %947 = vst.msk [vmem:[#allocation3 + $0xa8] sm:$0xff] %vm925, %v872
      %948 = vst.msk [vmem:[#allocation3 + $0xb0] sm:$0xff] %vm925, %v874
      %949 = vst.msk [vmem:[#allocation3 + $0xb8] sm:$0xff] %vm925, %v876
      %950 = vst.msk [vmem:[#allocation3 + $0xc0] sm:$0xff] %vm925, %v878
      %951 = vst.msk [vmem:[#allocation3 + $0xc8] sm:$0xff] %vm925, %v880
      %952 = vst.msk [vmem:[#allocation3 + $0xd0] sm:$0xff] %vm925, %v882
      %953 = vst.msk [vmem:[#allocation3 + $0xd8] sm:$0xff] %vm925, %v884
      %954 = vst.msk [vmem:[#allocation3 + $0xe0] sm:$0xff] %vm925, %v886
      %955 = vst.msk [vmem:[#allocation3 + $0xe8] sm:$0xff] %vm925, %v888
      %956 = vst.msk [vmem:[#allocation3 + $0xf0] sm:$0xff] %vm925, %v890
      %957 = vst.msk [vmem:[#allocation3 + $0xf8] sm:$0xff] %vm925, %v892
      %v958 = vld [vmem:[%s203 + $0x1] sm:$0xff]
      %v959 = vld [vmem:[%s203 + $0x9] sm:$0xff]
      %v960 = vld [vmem:[%s203 + $0x19] sm:$0xff]
      %v961 = vld [vmem:[%s203 + $0x21] sm:$0xff]
      %v962 = vld [vmem:[%s203 + $0x31] sm:$0xff]
      %v963 = vld [vmem:[%s203 + $0x39] sm:$0xff]
      %v964 = vld [vmem:[%s203 + $0x49] sm:$0xff]
      %v965 = vld [vmem:[%s203 + $0x51] sm:$0xff]
      %v966 = vld [vmem:[%s203 + $0x61] sm:$0xff]
      %v967 = vld [vmem:[%s203 + $0x69] sm:$0xff]
      %v968 = vld [vmem:[%s203 + $0x79] sm:$0xff]
      %v969 = vld [vmem:[%s203 + $0x81] sm:$0xff]
      %v970 = vld [vmem:[%s203 + $0x91] sm:$0xff]
      %v971 = vld [vmem:[%s203 + $0x99] sm:$0xff]
      %v972 = vld [vmem:[%s203 + $0xa9] sm:$0xff]
      %v973 = vld [vmem:[%s203 + $0xb1] sm:$0xff]
      %v974 = vld [vmem:[%s203 + $0xc1] sm:$0xff]
      %v975 = vld [vmem:[%s203 + $0xc9] sm:$0xff]
      %v976 = vld [vmem:[%s203 + $0xd9] sm:$0xff]
      %v977 = vld [vmem:[%s203 + $0xe1] sm:$0xff]
      %v978 = vld [vmem:[%s203 + $0xf1] sm:$0xff]
      %v979 = vld [vmem:[%s203 + $0xf9] sm:$0xff]
      %v980 = vld [vmem:[%s203 + $0x109] sm:$0xff]
      %v981 = vld [vmem:[%s203 + $0x111] sm:$0xff]
      %v982 = vld [vmem:[%s203 + $0x121] sm:$0xff]
      %v983 = vld [vmem:[%s203 + $0x129] sm:$0xff]
      %v984 = vld [vmem:[%s203 + $0x139] sm:$0xff]
      %v985 = vld [vmem:[%s203 + $0x141] sm:$0xff]
      %v986 = vld [vmem:[%s203 + $0x151] sm:$0xff]
      %v987 = vld [vmem:[%s203 + $0x159] sm:$0xff]
      %v988 = vld [vmem:[%s203 + $0x169] sm:$0xff]
      %v989 = vld [vmem:[%s203 + $0x171] sm:$0xff]
      %1022 = vrot.lane.b32.xlu0 %v958, 16
      %v1023 = vpop.permute.xlu0 %1022
      %1024 = vrot.lane.b32.xlu0 %v959, 16
      %v1025 = vpop.permute.xlu0 %1024
      %1026 = vrot.lane.b32.xlu0 %v960, 16
      %v1027 = vpop.permute.xlu0 %1026
      %1028 = vrot.lane.b32.xlu0 %v961, 16
      %v1029 = vpop.permute.xlu0 %1028
      %1030 = vrot.lane.b32.xlu0 %v962, 16
      %v1031 = vpop.permute.xlu0 %1030
      %1032 = vrot.lane.b32.xlu0 %v963, 16
      %v1033 = vpop.permute.xlu0 %1032
      %1034 = vrot.lane.b32.xlu0 %v964, 16
      %v1035 = vpop.permute.xlu0 %1034
      %1036 = vrot.lane.b32.xlu0 %v965, 16
      %v1037 = vpop.permute.xlu0 %1036
      %1038 = vrot.lane.b32.xlu0 %v966, 16
      %v1039 = vpop.permute.xlu0 %1038
      %1040 = vrot.lane.b32.xlu0 %v967, 16
      %v1041 = vpop.permute.xlu0 %1040
      %1042 = vrot.lane.b32.xlu0 %v968, 16
      %v1043 = vpop.permute.xlu0 %1042
      %1044 = vrot.lane.b32.xlu0 %v969, 16
      %v1045 = vpop.permute.xlu0 %1044
      %1046 = vrot.lane.b32.xlu0 %v970, 16
      %v1047 = vpop.permute.xlu0 %1046
      %1048 = vrot.lane.b32.xlu0 %v971, 16
      %v1049 = vpop.permute.xlu0 %1048
      %1050 = vrot.lane.b32.xlu0 %v972, 16
      %v1051 = vpop.permute.xlu0 %1050
      %1052 = vrot.lane.b32.xlu0 %v973, 16
      %v1053 = vpop.permute.xlu0 %1052
      %1054 = vrot.lane.b32.xlu0 %v974, 16
      %v1055 = vpop.permute.xlu0 %1054
      %1056 = vrot.lane.b32.xlu0 %v975, 16
      %v1057 = vpop.permute.xlu0 %1056
      %1058 = vrot.lane.b32.xlu0 %v976, 16
      %v1059 = vpop.permute.xlu0 %1058
      %1060 = vrot.lane.b32.xlu0 %v977, 16
      %v1061 = vpop.permute.xlu0 %1060
      %1062 = vrot.lane.b32.xlu0 %v978, 16
      %v1063 = vpop.permute.xlu0 %1062
      %1064 = vrot.lane.b32.xlu0 %v979, 16
      %v1065 = vpop.permute.xlu0 %1064
      %1066 = vrot.lane.b32.xlu0 %v980, 16
      %v1067 = vpop.permute.xlu0 %1066
      %1068 = vrot.lane.b32.xlu0 %v981, 16
      %v1069 = vpop.permute.xlu0 %1068
      %1070 = vrot.lane.b32.xlu0 %v982, 16
      %v1071 = vpop.permute.xlu0 %1070
      %1072 = vrot.lane.b32.xlu0 %v983, 16
      %v1073 = vpop.permute.xlu0 %1072
      %1074 = vrot.lane.b32.xlu0 %v984, 16
      %v1075 = vpop.permute.xlu0 %1074
      %1076 = vrot.lane.b32.xlu0 %v985, 16
      %v1077 = vpop.permute.xlu0 %1076
      %1078 = vrot.lane.b32.xlu0 %v986, 16
      %v1079 = vpop.permute.xlu0 %1078
      %1080 = vrot.lane.b32.xlu0 %v987, 16
      %v1081 = vpop.permute.xlu0 %1080
      %1082 = vrot.lane.b32.xlu0 %v988, 16
      %v1083 = vpop.permute.xlu0 %1082
      %1084 = vrot.lane.b32.xlu0 %v989, 16
      %v1085 = vpop.permute.xlu0 %1084
      %vm1118 = vcmask 162944
      %1119 = vst.msk [vmem:[#allocation3] sm:$0xff] %vm1118, %v1023
      %1120 = vst.msk [vmem:[#allocation3 + $0x8] sm:$0xff] %vm1118, %v1025
      %1121 = vst.msk [vmem:[#allocation3 + $0x10] sm:$0xff] %vm1118, %v1027
      %1122 = vst.msk [vmem:[#allocation3 + $0x18] sm:$0xff] %vm1118, %v1029
      %1123 = vst.msk [vmem:[#allocation3 + $0x20] sm:$0xff] %vm1118, %v1031
      %1124 = vst.msk [vmem:[#allocation3 + $0x28] sm:$0xff] %vm1118, %v1033
      %1125 = vst.msk [vmem:[#allocation3 + $0x30] sm:$0xff] %vm1118, %v1035
      %1126 = vst.msk [vmem:[#allocation3 + $0x38] sm:$0xff] %vm1118, %v1037
      %1127 = vst.msk [vmem:[#allocation3 + $0x40] sm:$0xff] %vm1118, %v1039
      %1128 = vst.msk [vmem:[#allocation3 + $0x48] sm:$0xff] %vm1118, %v1041
      %1129 = vst.msk [vmem:[#allocation3 + $0x50] sm:$0xff] %vm1118, %v1043
      %1130 = vst.msk [vmem:[#allocation3 + $0x58] sm:$0xff] %vm1118, %v1045
      %1131 = vst.msk [vmem:[#allocation3 + $0x60] sm:$0xff] %vm1118, %v1047
      %1132 = vst.msk [vmem:[#allocation3 + $0x68] sm:$0xff] %vm1118, %v1049
      %1133 = vst.msk [vmem:[#allocation3 + $0x70] sm:$0xff] %vm1118, %v1051
      %1134 = vst.msk [vmem:[#allocation3 + $0x78] sm:$0xff] %vm1118, %v1053
      %1135 = vst.msk [vmem:[#allocation3 + $0x80] sm:$0xff] %vm1118, %v1055
      %1136 = vst.msk [vmem:[#allocation3 + $0x88] sm:$0xff] %vm1118, %v1057
      %1137 = vst.msk [vmem:[#allocation3 + $0x90] sm:$0xff] %vm1118, %v1059
      %1138 = vst.msk [vmem:[#allocation3 + $0x98] sm:$0xff] %vm1118, %v1061
      %1139 = vst.msk [vmem:[#allocation3 + $0xa0] sm:$0xff] %vm1118, %v1063
      %1140 = vst.msk [vmem:[#allocation3 + $0xa8] sm:$0xff] %vm1118, %v1065
      %1141 = vst.msk [vmem:[#allocation3 + $0xb0] sm:$0xff] %vm1118, %v1067
      %1142 = vst.msk [vmem:[#allocation3 + $0xb8] sm:$0xff] %vm1118, %v1069
      %1143 = vst.msk [vmem:[#allocation3 + $0xc0] sm:$0xff] %vm1118, %v1071
      %1144 = vst.msk [vmem:[#allocation3 + $0xc8] sm:$0xff] %vm1118, %v1073
      %1145 = vst.msk [vmem:[#allocation3 + $0xd0] sm:$0xff] %vm1118, %v1075
      %1146 = vst.msk [vmem:[#allocation3 + $0xd8] sm:$0xff] %vm1118, %v1077
      %1147 = vst.msk [vmem:[#allocation3 + $0xe0] sm:$0xff] %vm1118, %v1079
      %1148 = vst.msk [vmem:[#allocation3 + $0xe8] sm:$0xff] %vm1118, %v1081
      %1149 = vst.msk [vmem:[#allocation3 + $0xf0] sm:$0xff] %vm1118, %v1083
      %1150 = vst.msk [vmem:[#allocation3 + $0xf8] sm:$0xff] %vm1118, %v1085
      %v1151 = vld [vmem:[%s203 + $0x2] sm:$0xff]
      %v1152 = vld [vmem:[%s203 + $0xa] sm:$0xff]
      %v1153 = vld [vmem:[%s203 + $0x1a] sm:$0xff]
      %v1154 = vld [vmem:[%s203 + $0x22] sm:$0xff]
      %v1155 = vld [vmem:[%s203 + $0x32] sm:$0xff]
      %v1156 = vld [vmem:[%s203 + $0x3a] sm:$0xff]
      %v1157 = vld [vmem:[%s203 + $0x4a] sm:$0xff]
      %v1158 = vld [vmem:[%s203 + $0x52] sm:$0xff]
      %v1159 = vld [vmem:[%s203 + $0x62] sm:$0xff]
      %v1160 = vld [vmem:[%s203 + $0x6a] sm:$0xff]
      %v1161 = vld [vmem:[%s203 + $0x7a] sm:$0xff]
      %v1162 = vld [vmem:[%s203 + $0x82] sm:$0xff]
      %v1163 = vld [vmem:[%s203 + $0x92] sm:$0xff]
      %v1164 = vld [vmem:[%s203 + $0x9a] sm:$0xff]
      %v1165 = vld [vmem:[%s203 + $0xaa] sm:$0xff]
      %v1166 = vld [vmem:[%s203 + $0xb2] sm:$0xff]
      %v1167 = vld [vmem:[%s203 + $0xc2] sm:$0xff]
      %v1168 = vld [vmem:[%s203 + $0xca] sm:$0xff]
      %v1169 = vld [vmem:[%s203 + $0xda] sm:$0xff]
      %v1170 = vld [vmem:[%s203 + $0xe2] sm:$0xff]
      %v1171 = vld [vmem:[%s203 + $0xf2] sm:$0xff]
      %v1172 = vld [vmem:[%s203 + $0xfa] sm:$0xff]
      %v1173 = vld [vmem:[%s203 + $0x10a] sm:$0xff]
      %v1174 = vld [vmem:[%s203 + $0x112] sm:$0xff]
      %v1175 = vld [vmem:[%s203 + $0x122] sm:$0xff]
      %v1176 = vld [vmem:[%s203 + $0x12a] sm:$0xff]
      %v1177 = vld [vmem:[%s203 + $0x13a] sm:$0xff]
      %v1178 = vld [vmem:[%s203 + $0x142] sm:$0xff]
      %v1179 = vld [vmem:[%s203 + $0x152] sm:$0xff]
      %v1180 = vld [vmem:[%s203 + $0x15a] sm:$0xff]
      %v1181 = vld [vmem:[%s203 + $0x16a] sm:$0xff]
      %v1182 = vld [vmem:[%s203 + $0x172] sm:$0xff]
      %1215 = vrot.lane.b32.xlu0 %v1151, 20
      %v1216 = vpop.permute.xlu0 %1215
      %1217 = vrot.lane.b32.xlu0 %v1152, 20
      %v1218 = vpop.permute.xlu0 %1217
      %1219 = vrot.lane.b32.xlu0 %v1153, 20
      %v1220 = vpop.permute.xlu0 %1219
      %1221 = vrot.lane.b32.xlu0 %v1154, 20
      %v1222 = vpop.permute.xlu0 %1221
      %1223 = vrot.lane.b32.xlu0 %v1155, 20
      %v1224 = vpop.permute.xlu0 %1223
      %1225 = vrot.lane.b32.xlu0 %v1156, 20
      %v1226 = vpop.permute.xlu0 %1225
      %1227 = vrot.lane.b32.xlu0 %v1157, 20
      %v1228 = vpop.permute.xlu0 %1227
      %1229 = vrot.lane.b32.xlu0 %v1158, 20
      %v1230 = vpop.permute.xlu0 %1229
      %1231 = vrot.lane.b32.xlu0 %v1159, 20
      %v1232 = vpop.permute.xlu0 %1231
      %1233 = vrot.lane.b32.xlu0 %v1160, 20
      %v1234 = vpop.permute.xlu0 %1233
      %1235 = vrot.lane.b32.xlu0 %v1161, 20
      %v1236 = vpop.permute.xlu0 %1235
      %1237 = vrot.lane.b32.xlu0 %v1162, 20
      %v1238 = vpop.permute.xlu0 %1237
      %1239 = vrot.lane.b32.xlu0 %v1163, 20
      %v1240 = vpop.permute.xlu0 %1239
      %1241 = vrot.lane.b32.xlu0 %v1164, 20
      %v1242 = vpop.permute.xlu0 %1241
      %1243 = vrot.lane.b32.xlu0 %v1165, 20
      %v1244 = vpop.permute.xlu0 %1243
      %1245 = vrot.lane.b32.xlu0 %v1166, 20
      %v1246 = vpop.permute.xlu0 %1245
      %1247 = vrot.lane.b32.xlu0 %v1167, 20
      %v1248 = vpop.permute.xlu0 %1247
      %1249 = vrot.lane.b32.xlu0 %v1168, 20
      %v1250 = vpop.permute.xlu0 %1249
      %1251 = vrot.lane.b32.xlu0 %v1169, 20
      %v1252 = vpop.permute.xlu0 %1251
      %1253 = vrot.lane.b32.xlu0 %v1170, 20
      %v1254 = vpop.permute.xlu0 %1253
      %1255 = vrot.lane.b32.xlu0 %v1171, 20
      %v1256 = vpop.permute.xlu0 %1255
      %1257 = vrot.lane.b32.xlu0 %v1172, 20
      %v1258 = vpop.permute.xlu0 %1257
      %1259 = vrot.lane.b32.xlu0 %v1173, 20
      %v1260 = vpop.permute.xlu0 %1259
      %1261 = vrot.lane.b32.xlu0 %v1174, 20
      %v1262 = vpop.permute.xlu0 %1261
      %1263 = vrot.lane.b32.xlu0 %v1175, 20
      %v1264 = vpop.permute.xlu0 %1263
      %1265 = vrot.lane.b32.xlu0 %v1176, 20
      %v1266 = vpop.permute.xlu0 %1265
      %1267 = vrot.lane.b32.xlu0 %v1177, 20
      %v1268 = vpop.permute.xlu0 %1267
      %1269 = vrot.lane.b32.xlu0 %v1178, 20
      %v1270 = vpop.permute.xlu0 %1269
      %1271 = vrot.lane.b32.xlu0 %v1179, 20
      %v1272 = vpop.permute.xlu0 %1271
      %1273 = vrot.lane.b32.xlu0 %v1180, 20
      %v1274 = vpop.permute.xlu0 %1273
      %1275 = vrot.lane.b32.xlu0 %v1181, 20
      %v1276 = vpop.permute.xlu0 %1275
      %1277 = vrot.lane.b32.xlu0 %v1182, 20
      %v1278 = vpop.permute.xlu0 %1277
      %vm1311 = vcmask 195744
      %1312 = vst.msk [vmem:[#allocation3] sm:$0xff] %vm1311, %v1216
      %1313 = vst.msk [vmem:[#allocation3 + $0x8] sm:$0xff] %vm1311, %v1218
      %1314 = vst.msk [vmem:[#allocation3 + $0x10] sm:$0xff] %vm1311, %v1220
      %1315 = vst.msk [vmem:[#allocation3 + $0x18] sm:$0xff] %vm1311, %v1222
      %1316 = vst.msk [vmem:[#allocation3 + $0x20] sm:$0xff] %vm1311, %v1224
      %1317 = vst.msk [vmem:[#allocation3 + $0x28] sm:$0xff] %vm1311, %v1226
      %1318 = vst.msk [vmem:[#allocation3 + $0x30] sm:$0xff] %vm1311, %v1228
      %1319 = vst.msk [vmem:[#allocation3 + $0x38] sm:$0xff] %vm1311, %v1230
      %1320 = vst.msk [vmem:[#allocation3 + $0x40] sm:$0xff] %vm1311, %v1232
      %1321 = vst.msk [vmem:[#allocation3 + $0x48] sm:$0xff] %vm1311, %v1234
      %1322 = vst.msk [vmem:[#allocation3 + $0x50] sm:$0xff] %vm1311, %v1236
      %1323 = vst.msk [vmem:[#allocation3 + $0x58] sm:$0xff] %vm1311, %v1238
      %1324 = vst.msk [vmem:[#allocation3 + $0x60] sm:$0xff] %vm1311, %v1240
      %1325 = vst.msk [vmem:[#allocation3 + $0x68] sm:$0xff] %vm1311, %v1242
      %1326 = vst.msk [vmem:[#allocation3 + $0x70] sm:$0xff] %vm1311, %v1244
      %1327 = vst.msk [vmem:[#allocation3 + $0x78] sm:$0xff] %vm1311, %v1246
      %1328 = vst.msk [vmem:[#allocation3 + $0x80] sm:$0xff] %vm1311, %v1248
      %1329 = vst.msk [vmem:[#allocation3 + $0x88] sm:$0xff] %vm1311, %v1250
      %1330 = vst.msk [vmem:[#allocation3 + $0x90] sm:$0xff] %vm1311, %v1252
      %1331 = vst.msk [vmem:[#allocation3 + $0x98] sm:$0xff] %vm1311, %v1254
      %1332 = vst.msk [vmem:[#allocation3 + $0xa0] sm:$0xff] %vm1311, %v1256
      %1333 = vst.msk [vmem:[#allocation3 + $0xa8] sm:$0xff] %vm1311, %v1258
      %1334 = vst.msk [vmem:[#allocation3 + $0xb0] sm:$0xff] %vm1311, %v1260
      %1335 = vst.msk [vmem:[#allocation3 + $0xb8] sm:$0xff] %vm1311, %v1262
      %1336 = vst.msk [vmem:[#allocation3 + $0xc0] sm:$0xff] %vm1311, %v1264
      %1337 = vst.msk [vmem:[#allocation3 + $0xc8] sm:$0xff] %vm1311, %v1266
      %1338 = vst.msk [vmem:[#allocation3 + $0xd0] sm:$0xff] %vm1311, %v1268
      %1339 = vst.msk [vmem:[#allocation3 + $0xd8] sm:$0xff] %vm1311, %v1270
      %1340 = vst.msk [vmem:[#allocation3 + $0xe0] sm:$0xff] %vm1311, %v1272
      %1341 = vst.msk [vmem:[#allocation3 + $0xe8] sm:$0xff] %vm1311, %v1274
      %1342 = vst.msk [vmem:[#allocation3 + $0xf0] sm:$0xff] %vm1311, %v1276
      %1343 = vst.msk [vmem:[#allocation3 + $0xf8] sm:$0xff] %vm1311, %v1278
      %s1344 = scalar_lea.vmem [#allocation2], 48
      %v1345 = vld [vmem:[%s1344] sm:$0xff]
      %v1346 = vld [vmem:[%s1344 + $0x8] sm:$0xff]
      %v1347 = vld [vmem:[%s1344 + $0x18] sm:$0xff]
      %v1348 = vld [vmem:[%s1344 + $0x20] sm:$0xff]
      %v1349 = vld [vmem:[%s1344 + $0x30] sm:$0xff]
      %v1350 = vld [vmem:[%s1344 + $0x38] sm:$0xff]
      %v1351 = vld [vmem:[%s1344 + $0x48] sm:$0xff]
      %v1352 = vld [vmem:[%s1344 + $0x50] sm:$0xff]
      %v1353 = vld [vmem:[%s1344 + $0x60] sm:$0xff]
      %v1354 = vld [vmem:[%s1344 + $0x68] sm:$0xff]
      %v1355 = vld [vmem:[%s1344 + $0x78] sm:$0xff]
      %v1356 = vld [vmem:[%s1344 + $0x80] sm:$0xff]
      %v1357 = vld [vmem:[%s1344 + $0x90] sm:$0xff]
      %v1358 = vld [vmem:[%s1344 + $0x98] sm:$0xff]
      %v1359 = vld [vmem:[%s1344 + $0xa8] sm:$0xff]
      %v1360 = vld [vmem:[%s1344 + $0xb0] sm:$0xff]
      %v1361 = vld [vmem:[%s1344 + $0xc0] sm:$0xff]
      %v1362 = vld [vmem:[%s1344 + $0xc8] sm:$0xff]
      %v1363 = vld [vmem:[%s1344 + $0xd8] sm:$0xff]
      %v1364 = vld [vmem:[%s1344 + $0xe0] sm:$0xff]
      %v1365 = vld [vmem:[%s1344 + $0xf0] sm:$0xff]
      %v1366 = vld [vmem:[%s1344 + $0xf8] sm:$0xff]
      %v1367 = vld [vmem:[%s1344 + $0x108] sm:$0xff]
      %v1368 = vld [vmem:[%s1344 + $0x110] sm:$0xff]
      %v1369 = vld [vmem:[%s1344 + $0x120] sm:$0xff]
      %v1370 = vld [vmem:[%s1344 + $0x128] sm:$0xff]
      %v1371 = vld [vmem:[%s1344 + $0x138] sm:$0xff]
      %v1372 = vld [vmem:[%s1344 + $0x140] sm:$0xff]
      %v1373 = vld [vmem:[%s1344 + $0x150] sm:$0xff]
      %v1374 = vld [vmem:[%s1344 + $0x158] sm:$0xff]
      %v1375 = vld [vmem:[%s1344 + $0x168] sm:$0xff]
      %v1376 = vld [vmem:[%s1344 + $0x170] sm:$0xff]
      %1409 = vrot.lane.b32.xlu0 %v1345, 24
      %v1410 = vpop.permute.xlu0 %1409
      %1411 = vrot.lane.b32.xlu0 %v1346, 24
      %v1412 = vpop.permute.xlu0 %1411
      %1413 = vrot.lane.b32.xlu0 %v1347, 24
      %v1414 = vpop.permute.xlu0 %1413
      %1415 = vrot.lane.b32.xlu0 %v1348, 24
      %v1416 = vpop.permute.xlu0 %1415
      %1417 = vrot.lane.b32.xlu0 %v1349, 24
      %v1418 = vpop.permute.xlu0 %1417
      %1419 = vrot.lane.b32.xlu0 %v1350, 24
      %v1420 = vpop.permute.xlu0 %1419
      %1421 = vrot.lane.b32.xlu0 %v1351, 24
      %v1422 = vpop.permute.xlu0 %1421
      %1423 = vrot.lane.b32.xlu0 %v1352, 24
      %v1424 = vpop.permute.xlu0 %1423
      %1425 = vrot.lane.b32.xlu0 %v1353, 24
      %v1426 = vpop.permute.xlu0 %1425
      %1427 = vrot.lane.b32.xlu0 %v1354, 24
      %v1428 = vpop.permute.xlu0 %1427
      %1429 = vrot.lane.b32.xlu0 %v1355, 24
      %v1430 = vpop.permute.xlu0 %1429
      %1431 = vrot.lane.b32.xlu0 %v1356, 24
      %v1432 = vpop.permute.xlu0 %1431
      %1433 = vrot.lane.b32.xlu0 %v1357, 24
      %v1434 = vpop.permute.xlu0 %1433
      %1435 = vrot.lane.b32.xlu0 %v1358, 24
      %v1436 = vpop.permute.xlu0 %1435
      %1437 = vrot.lane.b32.xlu0 %v1359, 24
      %v1438 = vpop.permute.xlu0 %1437
      %1439 = vrot.lane.b32.xlu0 %v1360, 24
      %v1440 = vpop.permute.xlu0 %1439
      %1441 = vrot.lane.b32.xlu0 %v1361, 24
      %v1442 = vpop.permute.xlu0 %1441
      %1443 = vrot.lane.b32.xlu0 %v1362, 24
      %v1444 = vpop.permute.xlu0 %1443
      %1445 = vrot.lane.b32.xlu0 %v1363, 24
      %v1446 = vpop.permute.xlu0 %1445
      %1447 = vrot.lane.b32.xlu0 %v1364, 24
      %v1448 = vpop.permute.xlu0 %1447
      %1449 = vrot.lane.b32.xlu0 %v1365, 24
      %v1450 = vpop.permute.xlu0 %1449
      %1451 = vrot.lane.b32.xlu0 %v1366, 24
      %v1452 = vpop.permute.xlu0 %1451
      %1453 = vrot.lane.b32.xlu0 %v1367, 24
      %v1454 = vpop.permute.xlu0 %1453
      %1455 = vrot.lane.b32.xlu0 %v1368, 24
      %v1456 = vpop.permute.xlu0 %1455
      %1457 = vrot.lane.b32.xlu0 %v1369, 24
      %v1458 = vpop.permute.xlu0 %1457
      %1459 = vrot.lane.b32.xlu0 %v1370, 24
      %v1460 = vpop.permute.xlu0 %1459
      %1461 = vrot.lane.b32.xlu0 %v1371, 24
      %v1462 = vpop.permute.xlu0 %1461
      %1463 = vrot.lane.b32.xlu0 %v1372, 24
      %v1464 = vpop.permute.xlu0 %1463
      %1465 = vrot.lane.b32.xlu0 %v1373, 24
      %v1466 = vpop.permute.xlu0 %1465
      %1467 = vrot.lane.b32.xlu0 %v1374, 24
      %v1468 = vpop.permute.xlu0 %1467
      %1469 = vrot.lane.b32.xlu0 %v1375, 24
      %v1470 = vpop.permute.xlu0 %1469
      %1471 = vrot.lane.b32.xlu0 %v1376, 24
      %v1472 = vpop.permute.xlu0 %1471
      %vm1505 = vcmask 228544
      %1506 = vst.msk [vmem:[#allocation3] sm:$0xff] %vm1505, %v1410
      %1507 = vst.msk [vmem:[#allocation3 + $0x8] sm:$0xff] %vm1505, %v1412
      %1508 = vst.msk [vmem:[#allocation3 + $0x10] sm:$0xff] %vm1505, %v1414
      %1509 = vst.msk [vmem:[#allocation3 + $0x18] sm:$0xff] %vm1505, %v1416
      %1510 = vst.msk [vmem:[#allocation3 + $0x20] sm:$0xff] %vm1505, %v1418
      %1511 = vst.msk [vmem:[#allocation3 + $0x28] sm:$0xff] %vm1505, %v1420
      %1512 = vst.msk [vmem:[#allocation3 + $0x30] sm:$0xff] %vm1505, %v1422
      %1513 = vst.msk [vmem:[#allocation3 + $0x38] sm:$0xff] %vm1505, %v1424
      %1514 = vst.msk [vmem:[#allocation3 + $0x40] sm:$0xff] %vm1505, %v1426
      %1515 = vst.msk [vmem:[#allocation3 + $0x48] sm:$0xff] %vm1505, %v1428
      %1516 = vst.msk [vmem:[#allocation3 + $0x50] sm:$0xff] %vm1505, %v1430
      %1517 = vst.msk [vmem:[#allocation3 + $0x58] sm:$0xff] %vm1505, %v1432
      %1518 = vst.msk [vmem:[#allocation3 + $0x60] sm:$0xff] %vm1505, %v1434
      %1519 = vst.msk [vmem:[#allocation3 + $0x68] sm:$0xff] %vm1505, %v1436
      %1520 = vst.msk [vmem:[#allocation3 + $0x70] sm:$0xff] %vm1505, %v1438
      %1521 = vst.msk [vmem:[#allocation3 + $0x78] sm:$0xff] %vm1505, %v1440
      %1522 = vst.msk [vmem:[#allocation3 + $0x80] sm:$0xff] %vm1505, %v1442
      %1523 = vst.msk [vmem:[#allocation3 + $0x88] sm:$0xff] %vm1505, %v1444
      %1524 = vst.msk [vmem:[#allocation3 + $0x90] sm:$0xff] %vm1505, %v1446
      %1525 = vst.msk [vmem:[#allocation3 + $0x98] sm:$0xff] %vm1505, %v1448
      %1526 = vst.msk [vmem:[#allocation3 + $0xa0] sm:$0xff] %vm1505, %v1450
      %1527 = vst.msk [vmem:[#allocation3 + $0xa8] sm:$0xff] %vm1505, %v1452
      %1528 = vst.msk [vmem:[#allocation3 + $0xb0] sm:$0xff] %vm1505, %v1454
      %1529 = vst.msk [vmem:[#allocation3 + $0xb8] sm:$0xff] %vm1505, %v1456
      %1530 = vst.msk [vmem:[#allocation3 + $0xc0] sm:$0xff] %vm1505, %v1458
      %1531 = vst.msk [vmem:[#allocation3 + $0xc8] sm:$0xff] %vm1505, %v1460
      %1532 = vst.msk [vmem:[#allocation3 + $0xd0] sm:$0xff] %vm1505, %v1462
      %1533 = vst.msk [vmem:[#allocation3 + $0xd8] sm:$0xff] %vm1505, %v1464
      %1534 = vst.msk [vmem:[#allocation3 + $0xe0] sm:$0xff] %vm1505, %v1466
      %1535 = vst.msk [vmem:[#allocation3 + $0xe8] sm:$0xff] %vm1505, %v1468
      %1536 = vst.msk [vmem:[#allocation3 + $0xf0] sm:$0xff] %vm1505, %v1470
      %1537 = vst.msk [vmem:[#allocation3 + $0xf8] sm:$0xff] %vm1505, %v1472
      %v1538 = vld [vmem:[%s1344 + $0x1] sm:$0xff]
      %v1539 = vld [vmem:[%s1344 + $0x9] sm:$0xff]
      %v1540 = vld [vmem:[%s1344 + $0x19] sm:$0xff]
      %v1541 = vld [vmem:[%s1344 + $0x21] sm:$0xff]
      %v1542 = vld [vmem:[%s1344 + $0x31] sm:$0xff]
      %v1543 = vld [vmem:[%s1344 + $0x39] sm:$0xff]
      %v1544 = vld [vmem:[%s1344 + $0x49] sm:$0xff]
      %v1545 = vld [vmem:[%s1344 + $0x51] sm:$0xff]
      %v1546 = vld [vmem:[%s1344 + $0x61] sm:$0xff]
      %v1547 = vld [vmem:[%s1344 + $0x69] sm:$0xff]
      %v1548 = vld [vmem:[%s1344 + $0x79] sm:$0xff]
      %v1549 = vld [vmem:[%s1344 + $0x81] sm:$0xff]
      %v1550 = vld [vmem:[%s1344 + $0x91] sm:$0xff]
      %v1551 = vld [vmem:[%s1344 + $0x99] sm:$0xff]
      %v1552 = vld [vmem:[%s1344 + $0xa9] sm:$0xff]
      %v1553 = vld [vmem:[%s1344 + $0xb1] sm:$0xff]
      %v1554 = vld [vmem:[%s1344 + $0xc1] sm:$0xff]
      %v1555 = vld [vmem:[%s1344 + $0xc9] sm:$0xff]
      %v1556 = vld [vmem:[%s1344 + $0xd9] sm:$0xff]
      %v1557 = vld [vmem:[%s1344 + $0xe1] sm:$0xff]
      %v1558 = vld [vmem:[%s1344 + $0xf1] sm:$0xff]
      %v1559 = vld [vmem:[%s1344 + $0xf9] sm:$0xff]
      %v1560 = vld [vmem:[%s1344 + $0x109] sm:$0xff]
      %v1561 = vld [vmem:[%s1344 + $0x111] sm:$0xff]
      %v1562 = vld [vmem:[%s1344 + $0x121] sm:$0xff]
      %v1563 = vld [vmem:[%s1344 + $0x129] sm:$0xff]
      %v1564 = vld [vmem:[%s1344 + $0x139] sm:$0xff]
      %v1565 = vld [vmem:[%s1344 + $0x141] sm:$0xff]
      %v1566 = vld [vmem:[%s1344 + $0x151] sm:$0xff]
      %v1567 = vld [vmem:[%s1344 + $0x159] sm:$0xff]
      %v1568 = vld [vmem:[%s1344 + $0x169] sm:$0xff]
      %v1569 = vld [vmem:[%s1344 + $0x171] sm:$0xff]
      %1602 = vrot.lane.b32.xlu0 %v1538, 28
      %v1603 = vpop.permute.xlu0 %1602
      %1604 = vrot.lane.b32.xlu0 %v1539, 28
      %v1605 = vpop.permute.xlu0 %1604
      %1606 = vrot.lane.b32.xlu0 %v1540, 28
      %v1607 = vpop.permute.xlu0 %1606
      %1608 = vrot.lane.b32.xlu0 %v1541, 28
      %v1609 = vpop.permute.xlu0 %1608
      %1610 = vrot.lane.b32.xlu0 %v1542, 28
      %v1611 = vpop.permute.xlu0 %1610
      %1612 = vrot.lane.b32.xlu0 %v1543, 28
      %v1613 = vpop.permute.xlu0 %1612
      %1614 = vrot.lane.b32.xlu0 %v1544, 28
      %v1615 = vpop.permute.xlu0 %1614
      %1616 = vrot.lane.b32.xlu0 %v1545, 28
      %v1617 = vpop.permute.xlu0 %1616
      %1618 = vrot.lane.b32.xlu0 %v1546, 28
      %v1619 = vpop.permute.xlu0 %1618
      %1620 = vrot.lane.b32.xlu0 %v1547, 28
      %v1621 = vpop.permute.xlu0 %1620
      %1622 = vrot.lane.b32.xlu0 %v1548, 28
      %v1623 = vpop.permute.xlu0 %1622
      %1624 = vrot.lane.b32.xlu0 %v1549, 28
      %v1625 = vpop.permute.xlu0 %1624
      %1626 = vrot.lane.b32.xlu0 %v1550, 28
      %v1627 = vpop.permute.xlu0 %1626
      %1628 = vrot.lane.b32.xlu0 %v1551, 28
      %v1629 = vpop.permute.xlu0 %1628
      %1630 = vrot.lane.b32.xlu0 %v1552, 28
      %v1631 = vpop.permute.xlu0 %1630
      %1632 = vrot.lane.b32.xlu0 %v1553, 28
      %v1633 = vpop.permute.xlu0 %1632
      %1634 = vrot.lane.b32.xlu0 %v1554, 28
      %v1635 = vpop.permute.xlu0 %1634
      %1636 = vrot.lane.b32.xlu0 %v1555, 28
      %v1637 = vpop.permute.xlu0 %1636
      %1638 = vrot.lane.b32.xlu0 %v1556, 28
      %v1639 = vpop.permute.xlu0 %1638
      %1640 = vrot.lane.b32.xlu0 %v1557, 28
      %v1641 = vpop.permute.xlu0 %1640
      %1642 = vrot.lane.b32.xlu0 %v1558, 28
      %v1643 = vpop.permute.xlu0 %1642
      %1644 = vrot.lane.b32.xlu0 %v1559, 28
      %v1645 = vpop.permute.xlu0 %1644
      %1646 = vrot.lane.b32.xlu0 %v1560, 28
      %v1647 = vpop.permute.xlu0 %1646
      %1648 = vrot.lane.b32.xlu0 %v1561, 28
      %v1649 = vpop.permute.xlu0 %1648
      %1650 = vrot.lane.b32.xlu0 %v1562, 28
      %v1651 = vpop.permute.xlu0 %1650
      %1652 = vrot.lane.b32.xlu0 %v1563, 28
      %v1653 = vpop.permute.xlu0 %1652
      %1654 = vrot.lane.b32.xlu0 %v1564, 28
      %v1655 = vpop.permute.xlu0 %1654
      %1656 = vrot.lane.b32.xlu0 %v1565, 28
      %v1657 = vpop.permute.xlu0 %1656
      %1658 = vrot.lane.b32.xlu0 %v1566, 28
      %v1659 = vpop.permute.xlu0 %1658
      %1660 = vrot.lane.b32.xlu0 %v1567, 28
      %v1661 = vpop.permute.xlu0 %1660
      %1662 = vrot.lane.b32.xlu0 %v1568, 28
      %v1663 = vpop.permute.xlu0 %1662
      %1664 = vrot.lane.b32.xlu0 %v1569, 28
      %v1665 = vpop.permute.xlu0 %1664
      %vm1698 = vcmask 261344
      %1699 = vst.msk [vmem:[#allocation3] sm:$0xff] %vm1698, %v1603
      %1700 = vst.msk [vmem:[#allocation3 + $0x8] sm:$0xff] %vm1698, %v1605
      %1701 = vst.msk [vmem:[#allocation3 + $0x10] sm:$0xff] %vm1698, %v1607
      %1702 = vst.msk [vmem:[#allocation3 + $0x18] sm:$0xff] %vm1698, %v1609
      %1703 = vst.msk [vmem:[#allocation3 + $0x20] sm:$0xff] %vm1698, %v1611
      %1704 = vst.msk [vmem:[#allocation3 + $0x28] sm:$0xff] %vm1698, %v1613
      %1705 = vst.msk [vmem:[#allocation3 + $0x30] sm:$0xff] %vm1698, %v1615
      %1706 = vst.msk [vmem:[#allocation3 + $0x38] sm:$0xff] %vm1698, %v1617
      %1707 = vst.msk [vmem:[#allocation3 + $0x40] sm:$0xff] %vm1698, %v1619
      %1708 = vst.msk [vmem:[#allocation3 + $0x48] sm:$0xff] %vm1698, %v1621
      %1709 = vst.msk [vmem:[#allocation3 + $0x50] sm:$0xff] %vm1698, %v1623
      %1710 = vst.msk [vmem:[#allocation3 + $0x58] sm:$0xff] %vm1698, %v1625
      %1711 = vst.msk [vmem:[#allocation3 + $0x60] sm:$0xff] %vm1698, %v1627
      %1712 = vst.msk [vmem:[#allocation3 + $0x68] sm:$0xff] %vm1698, %v1629
      %1713 = vst.msk [vmem:[#allocation3 + $0x70] sm:$0xff] %vm1698, %v1631
      %1714 = vst.msk [vmem:[#allocation3 + $0x78] sm:$0xff] %vm1698, %v1633
      %1715 = vst.msk [vmem:[#allocation3 + $0x80] sm:$0xff] %vm1698, %v1635
      %1716 = vst.msk [vmem:[#allocation3 + $0x88] sm:$0xff] %vm1698, %v1637
      %1717 = vst.msk [vmem:[#allocation3 + $0x90] sm:$0xff] %vm1698, %v1639
      %1718 = vst.msk [vmem:[#allocation3 + $0x98] sm:$0xff] %vm1698, %v1641
      %1719 = vst.msk [vmem:[#allocation3 + $0xa0] sm:$0xff] %vm1698, %v1643
      %1720 = vst.msk [vmem:[#allocation3 + $0xa8] sm:$0xff] %vm1698, %v1645
      %1721 = vst.msk [vmem:[#allocation3 + $0xb0] sm:$0xff] %vm1698, %v1647
      %1722 = vst.msk [vmem:[#allocation3 + $0xb8] sm:$0xff] %vm1698, %v1649
      %1723 = vst.msk [vmem:[#allocation3 + $0xc0] sm:$0xff] %vm1698, %v1651
      %1724 = vst.msk [vmem:[#allocation3 + $0xc8] sm:$0xff] %vm1698, %v1653
      %1725 = vst.msk [vmem:[#allocation3 + $0xd0] sm:$0xff] %vm1698, %v1655
      %1726 = vst.msk [vmem:[#allocation3 + $0xd8] sm:$0xff] %vm1698, %v1657
      %1727 = vst.msk [vmem:[#allocation3 + $0xe0] sm:$0xff] %vm1698, %v1659
      %1728 = vst.msk [vmem:[#allocation3 + $0xe8] sm:$0xff] %vm1698, %v1661
      %1729 = vst.msk [vmem:[#allocation3 + $0xf0] sm:$0xff] %vm1698, %v1663
      %1730 = vst.msk [vmem:[#allocation3 + $0xf8] sm:$0xff] %vm1698, %v1665
      %v1731 = vld [vmem:[%s1344 + $0x2] sm:$0xff]
      %v1732 = vld [vmem:[%s1344 + $0xa] sm:$0xff]
      %v1733 = vld [vmem:[%s1344 + $0x1a] sm:$0xff]
      %v1734 = vld [vmem:[%s1344 + $0x22] sm:$0xff]
      %v1735 = vld [vmem:[%s1344 + $0x32] sm:$0xff]
      %v1736 = vld [vmem:[%s1344 + $0x3a] sm:$0xff]
      %v1737 = vld [vmem:[%s1344 + $0x4a] sm:$0xff]
      %v1738 = vld [vmem:[%s1344 + $0x52] sm:$0xff]
      %v1739 = vld [vmem:[%s1344 + $0x62] sm:$0xff]
      %v1740 = vld [vmem:[%s1344 + $0x6a] sm:$0xff]
      %v1741 = vld [vmem:[%s1344 + $0x7a] sm:$0xff]
      %v1742 = vld [vmem:[%s1344 + $0x82] sm:$0xff]
      %v1743 = vld [vmem:[%s1344 + $0x92] sm:$0xff]
      %v1744 = vld [vmem:[%s1344 + $0x9a] sm:$0xff]
      %v1745 = vld [vmem:[%s1344 + $0xaa] sm:$0xff]
      %v1746 = vld [vmem:[%s1344 + $0xb2] sm:$0xff]
      %v1747 = vld [vmem:[%s1344 + $0xc2] sm:$0xff]
      %v1748 = vld [vmem:[%s1344 + $0xca] sm:$0xff]
      %v1749 = vld [vmem:[%s1344 + $0xda] sm:$0xff]
      %v1750 = vld [vmem:[%s1344 + $0xe2] sm:$0xff]
      %v1751 = vld [vmem:[%s1344 + $0xf2] sm:$0xff]
      %v1752 = vld [vmem:[%s1344 + $0xfa] sm:$0xff]
      %v1753 = vld [vmem:[%s1344 + $0x10a] sm:$0xff]
      %v1754 = vld [vmem:[%s1344 + $0x112] sm:$0xff]
      %v1755 = vld [vmem:[%s1344 + $0x122] sm:$0xff]
      %v1756 = vld [vmem:[%s1344 + $0x12a] sm:$0xff]
      %v1757 = vld [vmem:[%s1344 + $0x13a] sm:$0xff]
      %v1758 = vld [vmem:[%s1344 + $0x142] sm:$0xff]
      %v1759 = vld [vmem:[%s1344 + $0x152] sm:$0xff]
      %v1760 = vld [vmem:[%s1344 + $0x15a] sm:$0xff]
      %v1761 = vld [vmem:[%s1344 + $0x16a] sm:$0xff]
      %v1762 = vld [vmem:[%s1344 + $0x172] sm:$0xff]
      %1795 = vrot.lane.b32.xlu0 %v1731, 32
      %v1796 = vpop.permute.xlu0 %1795
      %1797 = vrot.lane.b32.xlu0 %v1732, 32
      %v1798 = vpop.permute.xlu0 %1797
      %1799 = vrot.lane.b32.xlu0 %v1733, 32
      %v1800 = vpop.permute.xlu0 %1799
      %1801 = vrot.lane.b32.xlu0 %v1734, 32
      %v1802 = vpop.permute.xlu0 %1801
      %1803 = vrot.lane.b32.xlu0 %v1735, 32
      %v1804 = vpop.permute.xlu0 %1803
      %1805 = vrot.lane.b32.xlu0 %v1736, 32
      %v1806 = vpop.permute.xlu0 %1805
      %1807 = vrot.lane.b32.xlu0 %v1737, 32
      %v1808 = vpop.permute.xlu0 %1807
      %1809 = vrot.lane.b32.xlu0 %v1738, 32
      %v1810 = vpop.permute.xlu0 %1809
      %1811 = vrot.lane.b32.xlu0 %v1739, 32
      %v1812 = vpop.permute.xlu0 %1811
      %1813 = vrot.lane.b32.xlu0 %v1740, 32
      %v1814 = vpop.permute.xlu0 %1813
      %1815 = vrot.lane.b32.xlu0 %v1741, 32
      %v1816 = vpop.permute.xlu0 %1815
      %1817 = vrot.lane.b32.xlu0 %v1742, 32
      %v1818 = vpop.permute.xlu0 %1817
      %1819 = vrot.lane.b32.xlu0 %v1743, 32
      %v1820 = vpop.permute.xlu0 %1819
      %1821 = vrot.lane.b32.xlu0 %v1744, 32
      %v1822 = vpop.permute.xlu0 %1821
      %1823 = vrot.lane.b32.xlu0 %v1745, 32
      %v1824 = vpop.permute.xlu0 %1823
      %1825 = vrot.lane.b32.xlu0 %v1746, 32
      %v1826 = vpop.permute.xlu0 %1825
      %1827 = vrot.lane.b32.xlu0 %v1747, 32
      %v1828 = vpop.permute.xlu0 %1827
      %1829 = vrot.lane.b32.xlu0 %v1748, 32
      %v1830 = vpop.permute.xlu0 %1829
      %1831 = vrot.lane.b32.xlu0 %v1749, 32
      %v1832 = vpop.permute.xlu0 %1831
      %1833 = vrot.lane.b32.xlu0 %v1750, 32
      %v1834 = vpop.permute.xlu0 %1833
      %1835 = vrot.lane.b32.xlu0 %v1751, 32
      %v1836 = vpop.permute.xlu0 %1835
      %1837 = vrot.lane.b32.xlu0 %v1752, 32
      %v1838 = vpop.permute.xlu0 %1837
      %1839 = vrot.lane.b32.xlu0 %v1753, 32
      %v1840 = vpop.permute.xlu0 %1839
      %1841 = vrot.lane.b32.xlu0 %v1754, 32
      %v1842 = vpop.permute.xlu0 %1841
      %1843 = vrot.lane.b32.xlu0 %v1755, 32
      %v1844 = vpop.permute.xlu0 %1843
      %1845 = vrot.lane.b32.xlu0 %v1756, 32
      %v1846 = vpop.permute.xlu0 %1845
      %1847 = vrot.lane.b32.xlu0 %v1757, 32
      %v1848 = vpop.permute.xlu0 %1847
      %1849 = vrot.lane.b32.xlu0 %v1758, 32
      %v1850 = vpop.permute.xlu0 %1849
      %1851 = vrot.lane.b32.xlu0 %v1759, 32
      %v1852 = vpop.permute.xlu0 %1851
      %1853 = vrot.lane.b32.xlu0 %v1760, 32
      %v1854 = vpop.permute.xlu0 %1853
      %1855 = vrot.lane.b32.xlu0 %v1761, 32
      %v1856 = vpop.permute.xlu0 %1855
      %1857 = vrot.lane.b32.xlu0 %v1762, 32
      %v1858 = vpop.permute.xlu0 %1857
      %vm1891 = vcmask 294144
      %1892 = vst.msk [vmem:[#allocation3] sm:$0xff] %vm1891, %v1796
      %1893 = vst.msk [vmem:[#allocation3 + $0x8] sm:$0xff] %vm1891, %v1798
      %1894 = vst.msk [vmem:[#allocation3 + $0x10] sm:$0xff] %vm1891, %v1800
      %1895 = vst.msk [vmem:[#allocation3 + $0x18] sm:$0xff] %vm1891, %v1802
      %1896 = vst.msk [vmem:[#allocation3 + $0x20] sm:$0xff] %vm1891, %v1804
      %1897 = vst.msk [vmem:[#allocation3 + $0x28] sm:$0xff] %vm1891, %v1806
      %1898 = vst.msk [vmem:[#allocation3 + $0x30] sm:$0xff] %vm1891, %v1808
      %1899 = vst.msk [vmem:[#allocation3 + $0x38] sm:$0xff] %vm1891, %v1810
      %1900 = vst.msk [vmem:[#allocation3 + $0x40] sm:$0xff] %vm1891, %v1812
      %1901 = vst.msk [vmem:[#allocation3 + $0x48] sm:$0xff] %vm1891, %v1814
      %1902 = vst.msk [vmem:[#allocation3 + $0x50] sm:$0xff] %vm1891, %v1816
      %1903 = vst.msk [vmem:[#allocation3 + $0x58] sm:$0xff] %vm1891, %v1818
      %1904 = vst.msk [vmem:[#allocation3 + $0x60] sm:$0xff] %vm1891, %v1820
      %1905 = vst.msk [vmem:[#allocation3 + $0x68] sm:$0xff] %vm1891, %v1822
      %1906 = vst.msk [vmem:[#allocation3 + $0x70] sm:$0xff] %vm1891, %v1824
      %1907 = vst.msk [vmem:[#allocation3 + $0x78] sm:$0xff] %vm1891, %v1826
      %1908 = vst.msk [vmem:[#allocation3 + $0x80] sm:$0xff] %vm1891, %v1828
      %1909 = vst.msk [vmem:[#allocation3 + $0x88] sm:$0xff] %vm1891, %v1830
      %1910 = vst.msk [vmem:[#allocation3 + $0x90] sm:$0xff] %vm1891, %v1832
      %1911 = vst.msk [vmem:[#allocation3 + $0x98] sm:$0xff] %vm1891, %v1834
      %1912 = vst.msk [vmem:[#allocation3 + $0xa0] sm:$0xff] %vm1891, %v1836
      %1913 = vst.msk [vmem:[#allocation3 + $0xa8] sm:$0xff] %vm1891, %v1838
      %1914 = vst.msk [vmem:[#allocation3 + $0xb0] sm:$0xff] %vm1891, %v1840
      %1915 = vst.msk [vmem:[#allocation3 + $0xb8] sm:$0xff] %vm1891, %v1842
      %1916 = vst.msk [vmem:[#allocation3 + $0xc0] sm:$0xff] %vm1891, %v1844
      %1917 = vst.msk [vmem:[#allocation3 + $0xc8] sm:$0xff] %vm1891, %v1846
      %1918 = vst.msk [vmem:[#allocation3 + $0xd0] sm:$0xff] %vm1891, %v1848
      %1919 = vst.msk [vmem:[#allocation3 + $0xd8] sm:$0xff] %vm1891, %v1850
      %1920 = vst.msk [vmem:[#allocation3 + $0xe0] sm:$0xff] %vm1891, %v1852
      %1921 = vst.msk [vmem:[#allocation3 + $0xe8] sm:$0xff] %vm1891, %v1854
      %1922 = vst.msk [vmem:[#allocation3 + $0xf0] sm:$0xff] %vm1891, %v1856
      %1923 = vst.msk [vmem:[#allocation3 + $0xf8] sm:$0xff] %vm1891, %v1858
      %v1924 = vld [vmem:[#allocation3] sm:$0xff]
      %v1925 = vld [vmem:[#allocation3 + $0x8] sm:$0xff]
      %v1926 = vld [vmem:[#allocation3 + $0x10] sm:$0xff]
      %v1927 = vld [vmem:[#allocation3 + $0x18] sm:$0xff]
      %v1928 = vld [vmem:[#allocation3 + $0x20] sm:$0xff]
      %v1929 = vld [vmem:[#allocation3 + $0x28] sm:$0xff]
      %v1930 = vld [vmem:[#allocation3 + $0x30] sm:$0xff]
      %v1931 = vld [vmem:[#allocation3 + $0x38] sm:$0xff]
      %v1932 = vld [vmem:[#allocation3 + $0x40] sm:$0xff]
      %v1933 = vld [vmem:[#allocation3 + $0x48] sm:$0xff]
      %v1934 = vld [vmem:[#allocation3 + $0x50] sm:$0xff]
      %v1935 = vld [vmem:[#allocation3 + $0x58] sm:$0xff]
      %v1936 = vld [vmem:[#allocation3 + $0x60] sm:$0xff]
      %v1937 = vld [vmem:[#allocation3 + $0x68] sm:$0xff]
      %v1938 = vld [vmem:[#allocation3 + $0x70] sm:$0xff]
      %v1939 = vld [vmem:[#allocation3 + $0x78] sm:$0xff]
      %v1940 = vld [vmem:[#allocation3 + $0x80] sm:$0xff]
      %v1941 = vld [vmem:[#allocation3 + $0x88] sm:$0xff]
      %v1942 = vld [vmem:[#allocation3 + $0x90] sm:$0xff]
      %v1943 = vld [vmem:[#allocation3 + $0x98] sm:$0xff]
      %v1944 = vld [vmem:[#allocation3 + $0xa0] sm:$0xff]
      %v1945 = vld [vmem:[#allocation3 + $0xa8] sm:$0xff]
      %v1946 = vld [vmem:[#allocation3 + $0xb0] sm:$0xff]
      %v1947 = vld [vmem:[#allocation3 + $0xb8] sm:$0xff]
      %v1948 = vld [vmem:[#allocation3 + $0xc0] sm:$0xff]
      %v1949 = vld [vmem:[#allocation3 + $0xc8] sm:$0xff]
      %v1950 = vld [vmem:[#allocation3 + $0xd0] sm:$0xff]
      %v1951 = vld [vmem:[#allocation3 + $0xd8] sm:$0xff]
      %v1952 = vld [vmem:[#allocation3 + $0xe0] sm:$0xff]
      %v1953 = vld [vmem:[#allocation3 + $0xe8] sm:$0xff]
      %v1954 = vld [vmem:[#allocation3 + $0xf0] sm:$0xff]
      %v1955 = vld [vmem:[#allocation3 + $0xf8] sm:$0xff]
      %v1956 = vld [vmem:[%s1] sm:$0xff]
      %v1957 = vld [vmem:[%s1 + $0x8] sm:$0xff]
      %v1958 = vld [vmem:[%s1 + $0x10] sm:$0xff]
      %v1959 = vld [vmem:[%s1 + $0x18] sm:$0xff]
      %v1960 = vld [vmem:[%s1 + $0x20] sm:$0xf]
      %vm1961 = vcmask 293888
      %v1963 = vsel %vm1961, %v1924, 0
      %v1966 = vsel %vm1961, %v1925, 0
      %v1969 = vsel %vm1961, %v1926, 0
      %v1972 = vsel %vm1961, %v1927, 0
      %v1975 = vsel %vm1961, %v1928, 0
      %v1978 = vsel %vm1961, %v1929, 0
      %v1981 = vsel %vm1961, %v1930, 0
      %v1984 = vsel %vm1961, %v1931, 0
      %v1987 = vsel %vm1961, %v1932, 0
      %v1990 = vsel %vm1961, %v1933, 0
      %v1993 = vsel %vm1961, %v1934, 0
      %v1996 = vsel %vm1961, %v1935, 0
      %v1999 = vsel %vm1961, %v1936, 0
      %v2002 = vsel %vm1961, %v1937, 0
      %v2005 = vsel %vm1961, %v1938, 0
      %v2008 = vsel %vm1961, %v1939, 0
      %v2011 = vsel %vm1961, %v1940, 0
      %v2014 = vsel %vm1961, %v1941, 0
      %v2017 = vsel %vm1961, %v1942, 0
      %v2020 = vsel %vm1961, %v1943, 0
      %v2023 = vsel %vm1961, %v1944, 0
      %v2026 = vsel %vm1961, %v1945, 0
      %v2029 = vsel %vm1961, %v1946, 0
      %v2032 = vsel %vm1961, %v1947, 0
      %v2035 = vsel %vm1961, %v1948, 0
      %v2038 = vsel %vm1961, %v1949, 0
      %v2041 = vsel %vm1961, %v1950, 0
      %v2044 = vsel %vm1961, %v1951, 0
      %v2047 = vsel %vm1961, %v1952, 0
      %v2050 = vsel %vm1961, %v1953, 0
      %v2053 = vsel %vm1961, %v1954, 0
      %v2056 = vsel %vm1961, %v1955, 0
      %vm2058 = vcmask 1043456
      %v2060 = vsel %vm2058, %v1960, 0
      %2062 = vmatprep.subr.mxu0 0.0
      %2063 = vmatpush1.msra.mxu0 %v1956
      %2064 = vmatprep.subr.mxu0 0.0
      %2065 = vmatpush1.msra.mxu0 %v1957
      %2066 = vmatprep.subr.mxu0 0.0
      %2067 = vmatpush1.msra.mxu0 %v1958
      %2068 = vmatprep.subr.mxu0 0.0
      %2069 = vmatpush1.msra.mxu0 %v1959
      %2070 = vmatprep.subr.mxu0 0.0
      %2071 = vmatpush1.msra.mxu0 %v2060
      %2072 = vmatprep.subr.mxu0 0.0
      %2073 = vmatpush1.msra.mxu0 0.0
      %2074 = vmatprep.subr.mxu0 0.0
      %2075 = vmatpush1.msra.mxu0 0.0
      %2076 = vmatprep.subr.mxu0 0.0
      %2077 = vmatpush1.msra.mxu0 0.0
      %2078 = vmatprep.subr.mxu0 0.0
      %2079 = vmatpush1.msra.mxu0 0.0
      %2080 = vmatprep.subr.mxu0 0.0
      %2081 = vmatpush1.msra.mxu0 0.0
      %2082 = vmatprep.subr.mxu0 0.0
      %2083 = vmatpush1.msra.mxu0 0.0
      %2084 = vmatprep.subr.mxu0 0.0
      %2085 = vmatpush1.msra.mxu0 0.0
      %2086 = vmatprep.subr.mxu0 0.0
      %2087 = vmatpush1.msra.mxu0 0.0
      %2088 = vmatprep.subr.mxu0 0.0
      %2089 = vmatpush1.msra.mxu0 0.0
      %2090 = vmatprep.subr.mxu0 0.0
      %2091 = vmatpush1.msra.mxu0 0.0
      %2092 = vmatprep.subr.mxu0 0.0
      %2093 = vmatpush1.msra.mxu0 0.0
      %2094 = vmatprep.subr.mxu0 0.0
      %2095 = vmatpush1.msra.mxu0 0.0
      %2096 = vmatprep.subr.mxu0 0.0
      %2097 = vmatpush1.msra.mxu0 0.0
      %2098 = vmatprep.subr.mxu0 0.0
      %2099 = vmatpush1.msra.mxu0 0.0
      %2100 = vmatprep.subr.mxu0 0.0
      %2101 = vmatpush1.msra.mxu0 0.0
      %2102 = vmatprep.subr.mxu0 0.0
      %2103 = vmatpush1.msra.mxu0 0.0
      %2104 = vmatprep.subr.mxu0 0.0
      %2105 = vmatpush1.msra.mxu0 0.0
      %2106 = vmatprep.subr.mxu0 0.0
      %2107 = vmatpush1.msra.mxu0 0.0
      %2108 = vmatprep.subr.mxu0 0.0
      %2109 = vmatpush1.msra.mxu0 0.0
      %2110 = vmatprep.subr.mxu0 0.0
      %2111 = vmatpush1.msra.mxu0 0.0
      %2112 = vmatprep.subr.mxu0 0.0
      %2113 = vmatpush1.msra.mxu0 0.0
      %2114 = vmatprep.subr.mxu0 0.0
      %2115 = vmatpush1.msra.mxu0 0.0
      %2116 = vmatprep.subr.mxu0 0.0
      %2117 = vmatpush1.msra.mxu0 0.0
      %2118 = vmatprep.subr.mxu0 0.0
      %2119 = vmatpush1.msra.mxu0 0.0
      %2120 = vmatprep.subr.mxu0 0.0
      %2121 = vmatpush1.msra.mxu0 0.0
      %2122 = vmatprep.subr.mxu0 0.0
      %2123 = vmatpush1.msra.mxu0 0.0
      %2124 = vmatprep.subr.mxu0 0.0
      %2125 = vmatpush1.msra.mxu0 0.0
      %2126 = vmatprep.mubr.f32.mxu0 0.0
      %2127 = vmatmul.mubr.f32.gmra.mrb[0].mxu0 %v1963
      %v2128 = vpop.f32.mrb[0].mxu0
      %v2129 = vadd.f32 0.0, %v2128
      %v2130 = vpop.f32.mrb[0].mxu0
      %2131 = vmatprep.mubr.f32.mxu0 0.0
      %2132 = vmatmul.mubr.f32.gmra.mrb[0].mxu0 %v1966
      %v2133 = vpop.f32.mrb[0].mxu0
      %v2134 = vadd.f32 0.0, %v2133
      %v2135 = vpop.f32.mrb[0].mxu0
      %2136 = vmatprep.mubr.f32.mxu0 0.0
      %2137 = vmatmul.mubr.f32.gmra.mrb[0].mxu0 %v1969
      %v2138 = vpop.f32.mrb[0].mxu0
      %v2139 = vadd.f32 0.0, %v2138
      %v2140 = vpop.f32.mrb[0].mxu0
      %2141 = vmatprep.mubr.f32.mxu0 0.0
      %2142 = vmatmul.mubr.f32.gmra.mrb[0].mxu0 %v1972
      %v2143 = vpop.f32.mrb[0].mxu0
      %v2144 = vadd.f32 0.0, %v2143
      %v2145 = vpop.f32.mrb[0].mxu0
      %2146 = vmatprep.mubr.f32.mxu0 0.0
      %2147 = vmatmul.mubr.f32.gmra.mrb[0].mxu0 %v1975
      %v2148 = vpop.f32.mrb[0].mxu0
      %v2149 = vadd.f32 0.0, %v2148
      %v2150 = vpop.f32.mrb[0].mxu0
      %2151 = vmatprep.mubr.f32.mxu0 0.0
      %2152 = vmatmul.mubr.f32.gmra.mrb[0].mxu0 %v1978
      %v2153 = vpop.f32.mrb[0].mxu0
      %v2154 = vadd.f32 0.0, %v2153
      %v2155 = vpop.f32.mrb[0].mxu0
      %2156 = vmatprep.mubr.f32.mxu0 0.0
      %2157 = vmatmul.mubr.f32.gmra.mrb[0].mxu0 %v1981
      %v2158 = vpop.f32.mrb[0].mxu0
      %v2159 = vadd.f32 0.0, %v2158
      %v2160 = vpop.f32.mrb[0].mxu0
      %2161 = vmatprep.mubr.f32.mxu0 0.0
      %2162 = vmatmul.mubr.f32.gmra.mrb[0].mxu0 %v1984
      %v2163 = vpop.f32.mrb[0].mxu0
      %v2164 = vadd.f32 0.0, %v2163
      %v2165 = vpop.f32.mrb[0].mxu0
      %2166 = vmatprep.mubr.f32.mxu0 0.0
      %2167 = vmatmul.mubr.f32.gmra.mrb[0].mxu0 %v1987
      %v2168 = vpop.f32.mrb[0].mxu0
      %v2169 = vadd.f32 0.0, %v2168
      %v2170 = vpop.f32.mrb[0].mxu0
      %2171 = vmatprep.mubr.f32.mxu0 0.0
      %2172 = vmatmul.mubr.f32.gmra.mrb[0].mxu0 %v1990
      %v2173 = vpop.f32.mrb[0].mxu0
      %v2174 = vadd.f32 0.0, %v2173
      %v2175 = vpop.f32.mrb[0].mxu0
      %2176 = vmatprep.mubr.f32.mxu0 0.0
      %2177 = vmatmul.mubr.f32.gmra.mrb[0].mxu0 %v1993
      %v2178 = vpop.f32.mrb[0].mxu0
      %v2179 = vadd.f32 0.0, %v2178
      %v2180 = vpop.f32.mrb[0].mxu0
      %2181 = vmatprep.mubr.f32.mxu0 0.0
      %2182 = vmatmul.mubr.f32.gmra.mrb[0].mxu0 %v1996
      %v2183 = vpop.f32.mrb[0].mxu0
      %v2184 = vadd.f32 0.0, %v2183
      %v2185 = vpop.f32.mrb[0].mxu0
      %2186 = vmatprep.mubr.f32.mxu0 0.0
      %2187 = vmatmul.mubr.f32.gmra.mrb[0].mxu0 %v1999
      %v2188 = vpop.f32.mrb[0].mxu0
      %v2189 = vadd.f32 0.0, %v2188
      %v2190 = vpop.f32.mrb[0].mxu0
      %2191 = vmatprep.mubr.f32.mxu0 0.0
      %2192 = vmatmul.mubr.f32.gmra.mrb[0].mxu0 %v2002
      %v2193 = vpop.f32.mrb[0].mxu0
      %v2194 = vadd.f32 0.0, %v2193
      %v2195 = vpop.f32.mrb[0].mxu0
      %2196 = vmatprep.mubr.f32.mxu0 0.0
      %2197 = vmatmul.mubr.f32.gmra.mrb[0].mxu0 %v2005
      %v2198 = vpop.f32.mrb[0].mxu0
      %v2199 = vadd.f32 0.0, %v2198
      %v2200 = vpop.f32.mrb[0].mxu0
      %2201 = vmatprep.mubr.f32.mxu0 0.0
      %2202 = vmatmul.mubr.f32.gmra.mrb[0].mxu0 %v2008
      %v2203 = vpop.f32.mrb[0].mxu0
      %v2204 = vadd.f32 0.0, %v2203
      %v2205 = vpop.f32.mrb[0].mxu0
      %2206 = vmatprep.mubr.f32.mxu0 0.0
      %2207 = vmatmul.mubr.f32.gmra.mrb[0].mxu0 %v2011
      %v2208 = vpop.f32.mrb[0].mxu0
      %v2209 = vadd.f32 0.0, %v2208
      %v2210 = vpop.f32.mrb[0].mxu0
      %2211 = vmatprep.mubr.f32.mxu0 0.0
      %2212 = vmatmul.mubr.f32.gmra.mrb[0].mxu0 %v2014
      %v2213 = vpop.f32.mrb[0].mxu0
      %v2214 = vadd.f32 0.0, %v2213
      %v2215 = vpop.f32.mrb[0].mxu0
      %2216 = vmatprep.mubr.f32.mxu0 0.0
      %2217 = vmatmul.mubr.f32.gmra.mrb[0].mxu0 %v2017
      %v2218 = vpop.f32.mrb[0].mxu0
      %v2219 = vadd.f32 0.0, %v2218
      %v2220 = vpop.f32.mrb[0].mxu0
      %2221 = vmatprep.mubr.f32.mxu0 0.0
      %2222 = vmatmul.mubr.f32.gmra.mrb[0].mxu0 %v2020
      %v2223 = vpop.f32.mrb[0].mxu0
      %v2224 = vadd.f32 0.0, %v2223
      %v2225 = vpop.f32.mrb[0].mxu0
      %2226 = vmatprep.mubr.f32.mxu0 0.0
      %2227 = vmatmul.mubr.f32.gmra.mrb[0].mxu0 %v2023
      %v2228 = vpop.f32.mrb[0].mxu0
      %v2229 = vadd.f32 0.0, %v2228
      %v2230 = vpop.f32.mrb[0].mxu0
      %2231 = vmatprep.mubr.f32.mxu0 0.0
      %2232 = vmatmul.mubr.f32.gmra.mrb[0].mxu0 %v2026
      %v2233 = vpop.f32.mrb[0].mxu0
      %v2234 = vadd.f32 0.0, %v2233
      %v2235 = vpop.f32.mrb[0].mxu0
      %2236 = vmatprep.mubr.f32.mxu0 0.0
      %2237 = vmatmul.mubr.f32.gmra.mrb[0].mxu0 %v2029
      %v2238 = vpop.f32.mrb[0].mxu0
      %v2239 = vadd.f32 0.0, %v2238
      %v2240 = vpop.f32.mrb[0].mxu0
      %2241 = vmatprep.mubr.f32.mxu0 0.0
      %2242 = vmatmul.mubr.f32.gmra.mrb[0].mxu0 %v2032
      %v2243 = vpop.f32.mrb[0].mxu0
      %v2244 = vadd.f32 0.0, %v2243
      %v2245 = vpop.f32.mrb[0].mxu0
      %2246 = vmatprep.mubr.f32.mxu0 0.0
      %2247 = vmatmul.mubr.f32.gmra.mrb[0].mxu0 %v2035
      %v2248 = vpop.f32.mrb[0].mxu0
      %v2249 = vadd.f32 0.0, %v2248
      %v2250 = vpop.f32.mrb[0].mxu0
      %2251 = vmatprep.mubr.f32.mxu0 0.0
      %2252 = vmatmul.mubr.f32.gmra.mrb[0].mxu0 %v2038
      %v2253 = vpop.f32.mrb[0].mxu0
      %v2254 = vadd.f32 0.0, %v2253
      %v2255 = vpop.f32.mrb[0].mxu0
      %2256 = vmatprep.mubr.f32.mxu0 0.0
      %2257 = vmatmul.mubr.f32.gmra.mrb[0].mxu0 %v2041
      %v2258 = vpop.f32.mrb[0].mxu0
      %v2259 = vadd.f32 0.0, %v2258
      %v2260 = vpop.f32.mrb[0].mxu0
      %2261 = vmatprep.mubr.f32.mxu0 0.0
      %2262 = vmatmul.mubr.f32.gmra.mrb[0].mxu0 %v2044
      %v2263 = vpop.f32.mrb[0].mxu0
      %v2264 = vadd.f32 0.0, %v2263
      %v2265 = vpop.f32.mrb[0].mxu0
      %2266 = vmatprep.mubr.f32.mxu0 0.0
      %2267 = vmatmul.mubr.f32.gmra.mrb[0].mxu0 %v2047
      %v2268 = vpop.f32.mrb[0].mxu0
      %v2269 = vadd.f32 0.0, %v2268
      %v2270 = vpop.f32.mrb[0].mxu0
      %2271 = vmatprep.mubr.f32.mxu0 0.0
      %2272 = vmatmul.mubr.f32.gmra.mrb[0].mxu0 %v2050
      %v2273 = vpop.f32.mrb[0].mxu0
      %v2274 = vadd.f32 0.0, %v2273
      %v2275 = vpop.f32.mrb[0].mxu0
      %2276 = vmatprep.mubr.f32.mxu0 0.0
      %2277 = vmatmul.mubr.f32.gmra.mrb[0].mxu0 %v2053
      %v2278 = vpop.f32.mrb[0].mxu0
      %v2279 = vadd.f32 0.0, %v2278
      %v2280 = vpop.f32.mrb[0].mxu0
      %2281 = vmatprep.mubr.f32.mxu0 0.0
      %2282 = vmatmul.mubr.f32.gmra.mrb[0].mxu0 %v2056
      %v2283 = vpop.f32.mrb[0].mxu0
      %v2284 = vadd.f32 0.0, %v2283
      %v2285 = vpop.f32.mrb[0].mxu0
      %2286 = vdwg.mxu0
      %v2287 = vsel %vm204, %v2129, 0.0
      %v2288 = vsel %vm204, %v2139, 0.0
      %v2289 = vadd.f32 %v2287, %v2288
      %v2290 = vsel %vm204, %v2149, 0.0
      %v2291 = vadd.f32 %v2289, %v2290
      %v2292 = vsel %vm204, %v2159, 0.0
      %v2293 = vadd.f32 %v2291, %v2292
      %v2294 = vsel %vm204, %v2169, 0.0
      %v2295 = vadd.f32 %v2293, %v2294
      %v2296 = vsel %vm204, %v2179, 0.0
      %v2297 = vadd.f32 %v2295, %v2296
      %v2298 = vsel %vm204, %v2189, 0.0
      %v2299 = vadd.f32 %v2297, %v2298
      %v2300 = vsel %vm204, %v2199, 0.0
      %v2301 = vadd.f32 %v2299, %v2300
      %v2302 = vsel %vm204, %v2209, 0.0
      %v2303 = vadd.f32 %v2301, %v2302
      %v2304 = vsel %vm204, %v2219, 0.0
      %v2305 = vadd.f32 %v2303, %v2304
      %v2306 = vsel %vm204, %v2229, 0.0
      %v2307 = vadd.f32 %v2305, %v2306
      %v2308 = vsel %vm204, %v2239, 0.0
      %v2309 = vadd.f32 %v2307, %v2308
      %v2310 = vsel %vm204, %v2249, 0.0
      %v2311 = vadd.f32 %v2309, %v2310
      %v2312 = vsel %vm204, %v2259, 0.0
      %v2313 = vadd.f32 %v2311, %v2312
      %v2314 = vsel %vm204, %v2269, 0.0
      %v2315 = vadd.f32 %v2313, %v2314
      %v2316 = vsel %vm204, %v2279, 0.0
      %v2317 = vadd.f32 %v2315, %v2316
      %v2318 = vsel %vm204, %v2134, 0.0
      %v2319 = vsel %vm204, %v2144, 0.0
      %v2320 = vadd.f32 %v2318, %v2319
      %v2321 = vsel %vm204, %v2154, 0.0
      %v2322 = vadd.f32 %v2320, %v2321
      %v2323 = vsel %vm204, %v2164, 0.0
      %v2324 = vadd.f32 %v2322, %v2323
      %v2325 = vsel %vm204, %v2174, 0.0
      %v2326 = vadd.f32 %v2324, %v2325
      %v2327 = vsel %vm204, %v2184, 0.0
      %v2328 = vadd.f32 %v2326, %v2327
      %v2329 = vsel %vm204, %v2194, 0.0
      %v2330 = vadd.f32 %v2328, %v2329
      %v2331 = vsel %vm204, %v2204, 0.0
      %v2332 = vadd.f32 %v2330, %v2331
      %v2333 = vsel %vm204, %v2214, 0.0
      %v2334 = vadd.f32 %v2332, %v2333
      %v2335 = vsel %vm204, %v2224, 0.0
      %v2336 = vadd.f32 %v2334, %v2335
      %v2337 = vsel %vm204, %v2234, 0.0
      %v2338 = vadd.f32 %v2336, %v2337
      %v2339 = vsel %vm204, %v2244, 0.0
      %v2340 = vadd.f32 %v2338, %v2339
      %v2341 = vsel %vm204, %v2254, 0.0
      %v2342 = vadd.f32 %v2340, %v2341
      %v2343 = vsel %vm204, %v2264, 0.0
      %v2344 = vadd.f32 %v2342, %v2343
      %v2345 = vsel %vm204, %v2274, 0.0
      %v2346 = vadd.f32 %v2344, %v2345
      %v2347 = vsel %vm204, %v2284, 0.0
      %v2348 = vadd.f32 %v2346, %v2347
      %v2349 = vsel %vm204, %v2317, 0.0
      %v2350 = vsel %vm204, %v2348, 0.0
      %v2351 = vadd.f32 %v2349, %v2350
      %v2352 = vrot.slane %v2351, 4
      %v2353 = vadd.f32 %v2351, %v2352
      %v2354 = vrot.slane %v2353, 2
      %v2355 = vadd.f32 %v2353, %v2354
      %v2356 = vrot.slane %v2355, 1
      %v2357 = vadd.f32 %v2355, %v2356
      %v2358 = vmul.f32 %v2129, %v2129
      %v2359 = vmul.f32 %v2134, %v2134
      %v2360 = vmul.f32 %v2139, %v2139
      %v2361 = vmul.f32 %v2144, %v2144
      %v2362 = vmul.f32 %v2149, %v2149
      %v2363 = vmul.f32 %v2154, %v2154
      %v2364 = vmul.f32 %v2159, %v2159
      %v2365 = vmul.f32 %v2164, %v2164
      %v2366 = vmul.f32 %v2169, %v2169
      %v2367 = vmul.f32 %v2174, %v2174
      %v2368 = vmul.f32 %v2179, %v2179
      %v2369 = vmul.f32 %v2184, %v2184
      %v2370 = vmul.f32 %v2189, %v2189
      %v2371 = vmul.f32 %v2194, %v2194
      %v2372 = vmul.f32 %v2199, %v2199
      %v2373 = vmul.f32 %v2204, %v2204
      %v2374 = vmul.f32 %v2209, %v2209
      %v2375 = vmul.f32 %v2214, %v2214
      %v2376 = vmul.f32 %v2219, %v2219
      %v2377 = vmul.f32 %v2224, %v2224
      %v2378 = vmul.f32 %v2229, %v2229
      %v2379 = vmul.f32 %v2234, %v2234
      %v2380 = vmul.f32 %v2239, %v2239
      %v2381 = vmul.f32 %v2244, %v2244
      %v2382 = vmul.f32 %v2249, %v2249
      %v2383 = vmul.f32 %v2254, %v2254
      %v2384 = vmul.f32 %v2259, %v2259
      %v2385 = vmul.f32 %v2264, %v2264
      %v2386 = vmul.f32 %v2269, %v2269
      %v2387 = vmul.f32 %v2274, %v2274
      %v2388 = vmul.f32 %v2279, %v2279
      %v2389 = vmul.f32 %v2284, %v2284
      %v2390 = vsel %vm204, %v2358, 0.0
      %v2391 = vsel %vm204, %v2360, 0.0
      %v2392 = vadd.f32 %v2390, %v2391
      %v2393 = vsel %vm204, %v2362, 0.0
      %v2394 = vadd.f32 %v2392, %v2393
      %v2395 = vsel %vm204, %v2364, 0.0
      %v2396 = vadd.f32 %v2394, %v2395
      %v2397 = vsel %vm204, %v2366, 0.0
      %v2398 = vadd.f32 %v2396, %v2397
      %v2399 = vsel %vm204, %v2368, 0.0
      %v2400 = vadd.f32 %v2398, %v2399
      %v2401 = vsel %vm204, %v2370, 0.0
      %v2402 = vadd.f32 %v2400, %v2401
      %v2403 = vsel %vm204, %v2372, 0.0
      %v2404 = vadd.f32 %v2402, %v2403
      %v2405 = vsel %vm204, %v2374, 0.0
      %v2406 = vadd.f32 %v2404, %v2405
      %v2407 = vsel %vm204, %v2376, 0.0
      %v2408 = vadd.f32 %v2406, %v2407
      %v2409 = vsel %vm204, %v2378, 0.0
      %v2410 = vadd.f32 %v2408, %v2409
      %v2411 = vsel %vm204, %v2380, 0.0
      %v2412 = vadd.f32 %v2410, %v2411
      %v2413 = vsel %vm204, %v2382, 0.0
      %v2414 = vadd.f32 %v2412, %v2413
      %v2415 = vsel %vm204, %v2384, 0.0
      %v2416 = vadd.f32 %v2414, %v2415
      %v2417 = vsel %vm204, %v2386, 0.0
      %v2418 = vadd.f32 %v2416, %v2417
      %v2419 = vsel %vm204, %v2388, 0.0
      %v2420 = vadd.f32 %v2418, %v2419
      %v2421 = vsel %vm204, %v2359, 0.0
      %v2422 = vsel %vm204, %v2361, 0.0
      %v2423 = vadd.f32 %v2421, %v2422
      %v2424 = vsel %vm204, %v2363, 0.0
      %v2425 = vadd.f32 %v2423, %v2424
      %v2426 = vsel %vm204, %v2365, 0.0
      %v2427 = vadd.f32 %v2425, %v2426
      %v2428 = vsel %vm204, %v2367, 0.0
      %v2429 = vadd.f32 %v2427, %v2428
      %v2430 = vsel %vm204, %v2369, 0.0
      %v2431 = vadd.f32 %v2429, %v2430
      %v2432 = vsel %vm204, %v2371, 0.0
      %v2433 = vadd.f32 %v2431, %v2432
      %v2434 = vsel %vm204, %v2373, 0.0
      %v2435 = vadd.f32 %v2433, %v2434
      %v2436 = vsel %vm204, %v2375, 0.0
      %v2437 = vadd.f32 %v2435, %v2436
      %v2438 = vsel %vm204, %v2377, 0.0
      %v2439 = vadd.f32 %v2437, %v2438
      %v2440 = vsel %vm204, %v2379, 0.0
      %v2441 = vadd.f32 %v2439, %v2440
      %v2442 = vsel %vm204, %v2381, 0.0
      %v2443 = vadd.f32 %v2441, %v2442
      %v2444 = vsel %vm204, %v2383, 0.0
      %v2445 = vadd.f32 %v2443, %v2444
      %v2446 = vsel %vm204, %v2385, 0.0
      %v2447 = vadd.f32 %v2445, %v2446
      %v2448 = vsel %vm204, %v2387, 0.0
      %v2449 = vadd.f32 %v2447, %v2448
      %v2450 = vsel %vm204, %v2389, 0.0
      %v2451 = vadd.f32 %v2449, %v2450
      %v2452 = vsel %vm204, %v2420, 0.0
      %v2453 = vsel %vm204, %v2451, 0.0
      %v2454 = vadd.f32 %v2452, %v2453
      %v2455 = vrot.slane %v2454, 4
      %v2456 = vadd.f32 %v2454, %v2455
      %v2457 = vrot.slane %v2456, 2
      %v2458 = vadd.f32 %v2456, %v2457
      %v2459 = vrot.slane %v2458, 1
      %v2460 = vadd.f32 %v2458, %v2459
      %v2461 = vmul.f32 %v2357, 0.00390625
      %v2462 = vmul.f32 %v2460, 0.00390625
      %v2463 = vmul.f32 %v2461, %v2461
      %v2464 = vsub.f32 %v2462, %v2463
      %v2465 = vmax.f32 %v2464, 0.0
      %v2466 = vsub.f32 %v2129, %v2461
      %v2467 = vsub.f32 %v2134, %v2461
      %v2468 = vsub.f32 %v2139, %v2461
      %v2469 = vsub.f32 %v2144, %v2461
      %v2470 = vsub.f32 %v2149, %v2461
      %v2471 = vsub.f32 %v2154, %v2461
      %v2472 = vsub.f32 %v2159, %v2461
      %v2473 = vsub.f32 %v2164, %v2461
      %v2474 = vsub.f32 %v2169, %v2461
      %v2475 = vsub.f32 %v2174, %v2461
      %v2476 = vsub.f32 %v2179, %v2461
      %v2477 = vsub.f32 %v2184, %v2461
      %v2478 = vsub.f32 %v2189, %v2461
      %v2479 = vsub.f32 %v2194, %v2461
      %v2480 = vsub.f32 %v2199, %v2461
      %v2481 = vsub.f32 %v2204, %v2461
      %v2482 = vsub.f32 %v2209, %v2461
      %v2483 = vsub.f32 %v2214, %v2461
      %v2484 = vsub.f32 %v2219, %v2461
      %v2485 = vsub.f32 %v2224, %v2461
      %v2486 = vsub.f32 %v2229, %v2461
      %v2487 = vsub.f32 %v2234, %v2461
      %v2488 = vsub.f32 %v2239, %v2461
      %v2489 = vsub.f32 %v2244, %v2461
      %v2490 = vsub.f32 %v2249, %v2461
      %v2491 = vsub.f32 %v2254, %v2461
      %v2492 = vsub.f32 %v2259, %v2461
      %v2493 = vsub.f32 %v2264, %v2461
      %v2494 = vsub.f32 %v2269, %v2461
      %v2495 = vsub.f32 %v2274, %v2461
      %v2496 = vsub.f32 %v2279, %v2461
      %v2497 = vsub.f32 %v2284, %v2461
      %v2498 = vadd.f32 %v2465, 1e-05
      %v2499 = vrsqrt.pop %v2498
      %v2500 = vmul.f32 %v2466, %v2499
      %v2501 = vmul.f32 %v2467, %v2499
      %v2502 = vmul.f32 %v2468, %v2499
      %v2503 = vmul.f32 %v2469, %v2499
      %v2504 = vmul.f32 %v2470, %v2499
      %v2505 = vmul.f32 %v2471, %v2499
      %v2506 = vmul.f32 %v2472, %v2499
      %v2507 = vmul.f32 %v2473, %v2499
      %v2508 = vmul.f32 %v2474, %v2499
      %v2509 = vmul.f32 %v2475, %v2499
      %v2510 = vmul.f32 %v2476, %v2499
      %v2511 = vmul.f32 %v2477, %v2499
      %v2512 = vmul.f32 %v2478, %v2499
      %v2513 = vmul.f32 %v2479, %v2499
      %v2514 = vmul.f32 %v2480, %v2499
      %v2515 = vmul.f32 %v2481, %v2499
      %v2516 = vmul.f32 %v2482, %v2499
      %v2517 = vmul.f32 %v2483, %v2499
      %v2518 = vmul.f32 %v2484, %v2499
      %v2519 = vmul.f32 %v2485, %v2499
      %v2520 = vmul.f32 %v2486, %v2499
      %v2521 = vmul.f32 %v2487, %v2499
      %v2522 = vmul.f32 %v2488, %v2499
      %v2523 = vmul.f32 %v2489, %v2499
      %v2524 = vmul.f32 %v2490, %v2499
      %v2525 = vmul.f32 %v2491, %v2499
      %v2526 = vmul.f32 %v2492, %v2499
      %v2527 = vmul.f32 %v2493, %v2499
      %v2528 = vmul.f32 %v2494, %v2499
      %v2529 = vmul.f32 %v2495, %v2499
      %v2530 = vmul.f32 %v2496, %v2499
      %v2531 = vmul.f32 %v2497, %v2499
      %v2532 = vmax.f32 %v2500, 0.0
      %v2533 = vmax.f32 %v2501, 0.0
      %v2534 = vmax.f32 %v2502, 0.0
      %v2535 = vmax.f32 %v2503, 0.0
      %v2536 = vmax.f32 %v2504, 0.0
      %v2537 = vmax.f32 %v2505, 0.0
      %v2538 = vmax.f32 %v2506, 0.0
      %v2539 = vmax.f32 %v2507, 0.0
      %v2540 = vmax.f32 %v2508, 0.0
      %v2541 = vmax.f32 %v2509, 0.0
      %v2542 = vmax.f32 %v2510, 0.0
      %v2543 = vmax.f32 %v2511, 0.0
      %v2544 = vmax.f32 %v2512, 0.0
      %v2545 = vmax.f32 %v2513, 0.0
      %v2546 = vmax.f32 %v2514, 0.0
      %v2547 = vmax.f32 %v2515, 0.0
      %v2548 = vmax.f32 %v2516, 0.0
      %v2549 = vmax.f32 %v2517, 0.0
      %v2550 = vmax.f32 %v2518, 0.0
      %v2551 = vmax.f32 %v2519, 0.0
      %v2552 = vmax.f32 %v2520, 0.0
      %v2553 = vmax.f32 %v2521, 0.0
      %v2554 = vmax.f32 %v2522, 0.0
      %v2555 = vmax.f32 %v2523, 0.0
      %v2556 = vmax.f32 %v2524, 0.0
      %v2557 = vmax.f32 %v2525, 0.0
      %v2558 = vmax.f32 %v2526, 0.0
      %v2559 = vmax.f32 %v2527, 0.0
      %v2560 = vmax.f32 %v2528, 0.0
      %v2561 = vmax.f32 %v2529, 0.0
      %v2562 = vmax.f32 %v2530, 0.0
      %v2563 = vmax.f32 %v2531, 0.0
      %2564 = vst.msk [vmem:[%s203 + $0x1] sm:$0xff] %vm204, %v2532
      %2565 = vst.msk [vmem:[%s203 + $0x9] sm:$0xff] %vm204, %v2533
      %2566 = vst.msk [vmem:[%s203 + $0x19] sm:$0xff] %vm204, %v2534
      %2567 = vst.msk [vmem:[%s203 + $0x21] sm:$0xff] %vm204, %v2535
      %2568 = vst.msk [vmem:[%s203 + $0x31] sm:$0xff] %vm204, %v2536
      %2569 = vst.msk [vmem:[%s203 + $0x39] sm:$0xff] %vm204, %v2537
      %2570 = vst.msk [vmem:[%s203 + $0x49] sm:$0xff] %vm204, %v2538
      %2571 = vst.msk [vmem:[%s203 + $0x51] sm:$0xff] %vm204, %v2539
      %2572 = vst.msk [vmem:[%s203 + $0x61] sm:$0xff] %vm204, %v2540
      %2573 = vst.msk [vmem:[%s203 + $0x69] sm:$0xff] %vm204, %v2541
      %2574 = vst.msk [vmem:[%s203 + $0x79] sm:$0xff] %vm204, %v2542
      %2575 = vst.msk [vmem:[%s203 + $0x81] sm:$0xff] %vm204, %v2543
      %2576 = vst.msk [vmem:[%s203 + $0x91] sm:$0xff] %vm204, %v2544
      %2577 = vst.msk [vmem:[%s203 + $0x99] sm:$0xff] %vm204, %v2545
      %2578 = vst.msk [vmem:[%s203 + $0xa9] sm:$0xff] %vm204, %v2546
      %2579 = vst.msk [vmem:[%s203 + $0xb1] sm:$0xff] %vm204, %v2547
      %2580 = vst.msk [vmem:[%s203 + $0xc1] sm:$0xff] %vm204, %v2548
      %2581 = vst.msk [vmem:[%s203 + $0xc9] sm:$0xff] %vm204, %v2549
      %2582 = vst.msk [vmem:[%s203 + $0xd9] sm:$0xff] %vm204, %v2550
      %2583 = vst.msk [vmem:[%s203 + $0xe1] sm:$0xff] %vm204, %v2551
      %2584 = vst.msk [vmem:[%s203 + $0xf1] sm:$0xff] %vm204, %v2552
      %2585 = vst.msk [vmem:[%s203 + $0xf9] sm:$0xff] %vm204, %v2553
      %2586 = vst.msk [vmem:[%s203 + $0x109] sm:$0xff] %vm204, %v2554
      %2587 = vst.msk [vmem:[%s203 + $0x111] sm:$0xff] %vm204, %v2555
      %2588 = vst.msk [vmem:[%s203 + $0x121] sm:$0xff] %vm204, %v2556
      %2589 = vst.msk [vmem:[%s203 + $0x129] sm:$0xff] %vm204, %v2557
      %2590 = vst.msk [vmem:[%s203 + $0x139] sm:$0xff] %vm204, %v2558
      %2591 = vst.msk [vmem:[%s203 + $0x141] sm:$0xff] %vm204, %v2559
      %2592 = vst.msk [vmem:[%s203 + $0x151] sm:$0xff] %vm204, %v2560
      %2593 = vst.msk [vmem:[%s203 + $0x159] sm:$0xff] %vm204, %v2561
      %2594 = vst.msk [vmem:[%s203 + $0x169] sm:$0xff] %vm204, %v2562
      %2595 = vst.msk [vmem:[%s203 + $0x171] sm:$0xff] %vm204, %v2563
      %2596 = vst.msk [vmem:[#allocation2 + $0x1] sm:$0xff] %vm204, %v2534
      %2597 = vst.msk [vmem:[#allocation2 + $0x9] sm:$0xff] %vm204, %v2535
      %2598 = vst.msk [vmem:[%s239 + $0x1] sm:$0xff] %vm204, %v2560
      %2599 = vst.msk [vmem:[%s239 + $0x9] sm:$0xff] %vm204, %v2561
      %v2600 = vld [vmem:[#allocation2 + $0x2] sm:$0x1]
      %v2601 = vld [vmem:[#allocation2 + $0x1a] sm:$0x1]
      %v2602 = vld [vmem:[#allocation2 + $0x32] sm:$0x1]
      %v2603 = vld [vmem:[#allocation2 + $0x4a] sm:$0x1]
      %v2604 = vld [vmem:[#allocation2 + $0x62] sm:$0x1]
      %v2605 = vld [vmem:[#allocation2 + $0x7a] sm:$0x1]
      %v2606 = vld [vmem:[#allocation2 + $0x92] sm:$0x1]
      %v2607 = vld [vmem:[#allocation2 + $0xaa] sm:$0x1]
      %v2608 = vld [vmem:[#allocation2 + $0xc2] sm:$0x1]
      %v2609 = vld [vmem:[#allocation2 + $0xda] sm:$0x1]
      %v2610 = vld [vmem:[#allocation2 + $0xf2] sm:$0x1]
      %v2611 = vld [vmem:[#allocation2 + $0x10a] sm:$0x1]
      %v2612 = vld [vmem:[#allocation2 + $0x122] sm:$0x1]
      %v2613 = vld [vmem:[#allocation2 + $0x13a] sm:$0x1]
      %v2614 = vld [vmem:[#allocation2 + $0x152] sm:$0x1]
      %v2615 = vld [vmem:[#allocation2 + $0x16a] sm:$0x1]
      %v2616 = vld [vmem:[#allocation2 + $0x182] sm:$0x1]
      %v2617 = vld [vmem:[#allocation2 + $0x19a] sm:$0x1]
      %2618 = vst.msk [vmem:[#allocation2] sm:$0x1] %vm260, %v2600
      %2619 = vst.msk [vmem:[#allocation2 + $0x18] sm:$0x1] %vm260, %v2601
      %2620 = vst.msk [vmem:[#allocation2 + $0x30] sm:$0x1] %vm260, %v2602
      %2621 = vst.msk [vmem:[#allocation2 + $0x48] sm:$0x1] %vm260, %v2603
      %2622 = vst.msk [vmem:[#allocation2 + $0x60] sm:$0x1] %vm260, %v2604
      %2623 = vst.msk [vmem:[#allocation2 + $0x78] sm:$0x1] %vm260, %v2605
      %2624 = vst.msk [vmem:[#allocation2 + $0x90] sm:$0x1] %vm260, %v2606
      %2625 = vst.msk [vmem:[#allocation2 + $0xa8] sm:$0x1] %vm260, %v2607
      %2626 = vst.msk [vmem:[#allocation2 + $0xc0] sm:$0x1] %vm260, %v2608
      %2627 = vst.msk [vmem:[#allocation2 + $0xd8] sm:$0x1] %vm260, %v2609
      %2628 = vst.msk [vmem:[#allocation2 + $0xf0] sm:$0x1] %vm260, %v2610
      %2629 = vst.msk [vmem:[#allocation2 + $0x108] sm:$0x1] %vm260, %v2611
      %2630 = vst.msk [vmem:[#allocation2 + $0x120] sm:$0x1] %vm260, %v2612
      %2631 = vst.msk [vmem:[#allocation2 + $0x138] sm:$0x1] %vm260, %v2613
      %2632 = vst.msk [vmem:[#allocation2 + $0x150] sm:$0x1] %vm260, %v2614
      %2633 = vst.msk [vmem:[#allocation2 + $0x168] sm:$0x1] %vm260, %v2615
      %2634 = vst.msk [vmem:[#allocation2 + $0x180] sm:$0x1] %vm260, %v2616
      %2635 = vst.msk [vmem:[#allocation2 + $0x198] sm:$0x1] %vm260, %v2617
      %v2636 = vld [vmem:[#allocation2 + $0xf] sm:$0x1]
      %v2637 = vld [vmem:[#allocation2 + $0x27] sm:$0x1]
      %v2638 = vld [vmem:[#allocation2 + $0x3f] sm:$0x1]
      %v2639 = vld [vmem:[#allocation2 + $0x57] sm:$0x1]
      %v2640 = vld [vmem:[#allocation2 + $0x6f] sm:$0x1]
      %v2641 = vld [vmem:[#allocation2 + $0x87] sm:$0x1]
      %v2642 = vld [vmem:[#allocation2 + $0x9f] sm:$0x1]
      %v2643 = vld [vmem:[#allocation2 + $0xb7] sm:$0x1]
      %v2644 = vld [vmem:[#allocation2 + $0xcf] sm:$0x1]
      %v2645 = vld [vmem:[#allocation2 + $0xe7] sm:$0x1]
      %v2646 = vld [vmem:[#allocation2 + $0xff] sm:$0x1]
      %v2647 = vld [vmem:[#allocation2 + $0x117] sm:$0x1]
      %v2648 = vld [vmem:[#allocation2 + $0x12f] sm:$0x1]
      %v2649 = vld [vmem:[#allocation2 + $0x147] sm:$0x1]
      %v2650 = vld [vmem:[#allocation2 + $0x15f] sm:$0x1]
      %v2651 = vld [vmem:[#allocation2 + $0x177] sm:$0x1]
      %v2652 = vld [vmem:[#allocation2 + $0x18f] sm:$0x1]
      %v2653 = vld [vmem:[#allocation2 + $0x1a7] sm:$0x1]
      %2654 = vst.msk [vmem:[#allocation2 + $0x11] sm:$0x1] %vm260, %v2636
      %2655 = vst.msk [vmem:[#allocation2 + $0x29] sm:$0x1] %vm260, %v2637
      %2656 = vst.msk [vmem:[#allocation2 + $0x41] sm:$0x1] %vm260, %v2638
      %2657 = vst.msk [vmem:[#allocation2 + $0x59] sm:$0x1] %vm260, %v2639
      %2658 = vst.msk [vmem:[#allocation2 + $0x71] sm:$0x1] %vm260, %v2640
      %2659 = vst.msk [vmem:[#allocation2 + $0x89] sm:$0x1] %vm260, %v2641
      %2660 = vst.msk [vmem:[#allocation2 + $0xa1] sm:$0x1] %vm260, %v2642
      %2661 = vst.msk [vmem:[#allocation2 + $0xb9] sm:$0x1] %vm260, %v2643
      %2662 = vst.msk [vmem:[#allocation2 + $0xd1] sm:$0x1] %vm260, %v2644
      %2663 = vst.msk [vmem:[#allocation2 + $0xe9] sm:$0x1] %vm260, %v2645
      %2664 = vst.msk [vmem:[#allocation2 + $0x101] sm:$0x1] %vm260, %v2646
      %2665 = vst.msk [vmem:[#allocation2 + $0x119] sm:$0x1] %vm260, %v2647
      %2666 = vst.msk [vmem:[#allocation2 + $0x131] sm:$0x1] %vm260, %v2648
      %2667 = vst.msk [vmem:[#allocation2 + $0x149] sm:$0x1] %vm260, %v2649
      %2668 = vst.msk [vmem:[#allocation2 + $0x161] sm:$0x1] %vm260, %v2650
      %2669 = vst.msk [vmem:[#allocation2 + $0x179] sm:$0x1] %vm260, %v2651
      %2670 = vst.msk [vmem:[#allocation2 + $0x191] sm:$0x1] %vm260, %v2652
      %2671 = vst.msk [vmem:[#allocation2 + $0x1a9] sm:$0x1] %vm260, %v2653
      %v2672 = vld [vmem:[#allocation2] sm:$0xff]
      %v2673 = vld [vmem:[#allocation2 + $0x8] sm:$0xff]
      %v2674 = vld [vmem:[#allocation2 + $0x18] sm:$0xff]
      %v2675 = vld [vmem:[#allocation2 + $0x20] sm:$0xff]
      %v2676 = vld [vmem:[#allocation2 + $0x30] sm:$0xff]
      %v2677 = vld [vmem:[#allocation2 + $0x38] sm:$0xff]
      %v2678 = vld [vmem:[#allocation2 + $0x48] sm:$0xff]
      %v2679 = vld [vmem:[#allocation2 + $0x50] sm:$0xff]
      %v2680 = vld [vmem:[#allocation2 + $0x60] sm:$0xff]
      %v2681 = vld [vmem:[#allocation2 + $0x68] sm:$0xff]
      %v2682 = vld [vmem:[#allocation2 + $0x78] sm:$0xff]
      %v2683 = vld [vmem:[#allocation2 + $0x80] sm:$0xff]
      %v2684 = vld [vmem:[#allocation2 + $0x90] sm:$0xff]
      %v2685 = vld [vmem:[#allocation2 + $0x98] sm:$0xff]
      %v2686 = vld [vmem:[#allocation2 + $0xa8] sm:$0xff]
      %v2687 = vld [vmem:[#allocation2 + $0xb0] sm:$0xff]
      %v2688 = vld [vmem:[#allocation2 + $0xc0] sm:$0xff]
      %v2689 = vld [vmem:[#allocation2 + $0xc8] sm:$0xff]
      %v2690 = vld [vmem:[#allocation2 + $0xd8] sm:$0xff]
      %v2691 = vld [vmem:[#allocation2 + $0xe0] sm:$0xff]
      %v2692 = vld [vmem:[#allocation2 + $0xf0] sm:$0xff]
      %v2693 = vld [vmem:[#allocation2 + $0xf8] sm:$0xff]
      %v2694 = vld [vmem:[#allocation2 + $0x108] sm:$0xff]
      %v2695 = vld [vmem:[#allocation2 + $0x110] sm:$0xff]
      %v2696 = vld [vmem:[#allocation2 + $0x120] sm:$0xff]
      %v2697 = vld [vmem:[#allocation2 + $0x128] sm:$0xff]
      %v2698 = vld [vmem:[#allocation2 + $0x138] sm:$0xff]
      %v2699 = vld [vmem:[#allocation2 + $0x140] sm:$0xff]
      %v2700 = vld [vmem:[#allocation2 + $0x150] sm:$0xff]
      %v2701 = vld [vmem:[#allocation2 + $0x158] sm:$0xff]
      %v2702 = vld [vmem:[#allocation2 + $0x168] sm:$0xff]
      %v2703 = vld [vmem:[#allocation2 + $0x170] sm:$0xff]
      %2704 = vst.msk [vmem:[#allocation3] sm:$0xff] %vm204, %v2672
      %2705 = vst.msk [vmem:[#allocation3 + $0x8] sm:$0xff] %vm204, %v2673
      %2706 = vst.msk [vmem:[#allocation3 + $0x10] sm:$0xff] %vm204, %v2674
      %2707 = vst.msk [vmem:[#allocation3 + $0x18] sm:$0xff] %vm204, %v2675
      %2708 = vst.msk [vmem:[#allocation3 + $0x20] sm:$0xff] %vm204, %v2676
      %2709 = vst.msk [vmem:[#allocation3 + $0x28] sm:$0xff] %vm204, %v2677
      %2710 = vst.msk [vmem:[#allocation3 + $0x30] sm:$0xff] %vm204, %v2678
      %2711 = vst.msk [vmem:[#allocation3 + $0x38] sm:$0xff] %vm204, %v2679
      %2712 = vst.msk [vmem:[#allocation3 + $0x40] sm:$0xff] %vm204, %v2680
      %2713 = vst.msk [vmem:[#allocation3 + $0x48] sm:$0xff] %vm204, %v2681
      %2714 = vst.msk [vmem:[#allocation3 + $0x50] sm:$0xff] %vm204, %v2682
      %2715 = vst.msk [vmem:[#allocation3 + $0x58] sm:$0xff] %vm204, %v2683
      %2716 = vst.msk [vmem:[#allocation3 + $0x60] sm:$0xff] %vm204, %v2684
      %2717 = vst.msk [vmem:[#allocation3 + $0x68] sm:$0xff] %vm204, %v2685
      %2718 = vst.msk [vmem:[#allocation3 + $0x70] sm:$0xff] %vm204, %v2686
      %2719 = vst.msk [vmem:[#allocation3 + $0x78] sm:$0xff] %vm204, %v2687
      %2720 = vst.msk [vmem:[#allocation3 + $0x80] sm:$0xff] %vm204, %v2688
      %2721 = vst.msk [vmem:[#allocation3 + $0x88] sm:$0xff] %vm204, %v2689
      %2722 = vst.msk [vmem:[#allocation3 + $0x90] sm:$0xff] %vm204, %v2690
      %2723 = vst.msk [vmem:[#allocation3 + $0x98] sm:$0xff] %vm204, %v2691
      %2724 = vst.msk [vmem:[#allocation3 + $0xa0] sm:$0xff] %vm204, %v2692
      %2725 = vst.msk [vmem:[#allocation3 + $0xa8] sm:$0xff] %vm204, %v2693
      %2726 = vst.msk [vmem:[#allocation3 + $0xb0] sm:$0xff] %vm204, %v2694
      %2727 = vst.msk [vmem:[#allocation3 + $0xb8] sm:$0xff] %vm204, %v2695
      %2728 = vst.msk [vmem:[#allocation3 + $0xc0] sm:$0xff] %vm204, %v2696
      %2729 = vst.msk [vmem:[#allocation3 + $0xc8] sm:$0xff] %vm204, %v2697
      %2730 = vst.msk [vmem:[#allocation3 + $0xd0] sm:$0xff] %vm204, %v2698
      %2731 = vst.msk [vmem:[#allocation3 + $0xd8] sm:$0xff] %vm204, %v2699
      %2732 = vst.msk [vmem:[#allocation3 + $0xe0] sm:$0xff] %vm204, %v2700
      %2733 = vst.msk [vmem:[#allocation3 + $0xe8] sm:$0xff] %vm204, %v2701
      %2734 = vst.msk [vmem:[#allocation3 + $0xf0] sm:$0xff] %vm204, %v2702
      %2735 = vst.msk [vmem:[#allocation3 + $0xf8] sm:$0xff] %vm204, %v2703
      %v2736 = vld [vmem:[#allocation2 + $0x1] sm:$0xff]
      %v2737 = vld [vmem:[#allocation2 + $0x9] sm:$0xff]
      %v2738 = vld [vmem:[#allocation2 + $0x19] sm:$0xff]
      %v2739 = vld [vmem:[#allocation2 + $0x21] sm:$0xff]
      %v2740 = vld [vmem:[#allocation2 + $0x31] sm:$0xff]
      %v2741 = vld [vmem:[#allocation2 + $0x39] sm:$0xff]
      %v2742 = vld [vmem:[#allocation2 + $0x49] sm:$0xff]
      %v2743 = vld [vmem:[#allocation2 + $0x51] sm:$0xff]
      %v2744 = vld [vmem:[#allocation2 + $0x61] sm:$0xff]
      %v2745 = vld [vmem:[#allocation2 + $0x69] sm:$0xff]
      %v2746 = vld [vmem:[#allocation2 + $0x79] sm:$0xff]
      %v2747 = vld [vmem:[#allocation2 + $0x81] sm:$0xff]
      %v2748 = vld [vmem:[#allocation2 + $0x91] sm:$0xff]
      %v2749 = vld [vmem:[#allocation2 + $0x99] sm:$0xff]
      %v2750 = vld [vmem:[#allocation2 + $0xa9] sm:$0xff]
      %v2751 = vld [vmem:[#allocation2 + $0xb1] sm:$0xff]
      %v2752 = vld [vmem:[#allocation2 + $0xc1] sm:$0xff]
      %v2753 = vld [vmem:[#allocation2 + $0xc9] sm:$0xff]
      %v2754 = vld [vmem:[#allocation2 + $0xd9] sm:$0xff]
      %v2755 = vld [vmem:[#allocation2 + $0xe1] sm:$0xff]
      %v2756 = vld [vmem:[#allocation2 + $0xf1] sm:$0xff]
      %v2757 = vld [vmem:[#allocation2 + $0xf9] sm:$0xff]
      %v2758 = vld [vmem:[#allocation2 + $0x109] sm:$0xff]
      %v2759 = vld [vmem:[#allocation2 + $0x111] sm:$0xff]
      %v2760 = vld [vmem:[#allocation2 + $0x121] sm:$0xff]
      %v2761 = vld [vmem:[#allocation2 + $0x129] sm:$0xff]
      %v2762 = vld [vmem:[#allocation2 + $0x139] sm:$0xff]
      %v2763 = vld [vmem:[#allocation2 + $0x141] sm:$0xff]
      %v2764 = vld [vmem:[#allocation2 + $0x151] sm:$0xff]
      %v2765 = vld [vmem:[#allocation2 + $0x159] sm:$0xff]
      %v2766 = vld [vmem:[#allocation2 + $0x169] sm:$0xff]
      %v2767 = vld [vmem:[#allocation2 + $0x171] sm:$0xff]
      %2800 = vrot.lane.b32.xlu0 %v2736, 4
      %v2801 = vpop.permute.xlu0 %2800
      %2802 = vrot.lane.b32.xlu0 %v2737, 4
      %v2803 = vpop.permute.xlu0 %2802
      %2804 = vrot.lane.b32.xlu0 %v2738, 4
      %v2805 = vpop.permute.xlu0 %2804
      %2806 = vrot.lane.b32.xlu0 %v2739, 4
      %v2807 = vpop.permute.xlu0 %2806
      %2808 = vrot.lane.b32.xlu0 %v2740, 4
      %v2809 = vpop.permute.xlu0 %2808
      %2810 = vrot.lane.b32.xlu0 %v2741, 4
      %v2811 = vpop.permute.xlu0 %2810
      %2812 = vrot.lane.b32.xlu0 %v2742, 4
      %v2813 = vpop.permute.xlu0 %2812
      %2814 = vrot.lane.b32.xlu0 %v2743, 4
      %v2815 = vpop.permute.xlu0 %2814
      %2816 = vrot.lane.b32.xlu0 %v2744, 4
      %v2817 = vpop.permute.xlu0 %2816
      %2818 = vrot.lane.b32.xlu0 %v2745, 4
      %v2819 = vpop.permute.xlu0 %2818
      %2820 = vrot.lane.b32.xlu0 %v2746, 4
      %v2821 = vpop.permute.xlu0 %2820
      %2822 = vrot.lane.b32.xlu0 %v2747, 4
      %v2823 = vpop.permute.xlu0 %2822
      %2824 = vrot.lane.b32.xlu0 %v2748, 4
      %v2825 = vpop.permute.xlu0 %2824
      %2826 = vrot.lane.b32.xlu0 %v2749, 4
      %v2827 = vpop.permute.xlu0 %2826
      %2828 = vrot.lane.b32.xlu0 %v2750, 4
      %v2829 = vpop.permute.xlu0 %2828
      %2830 = vrot.lane.b32.xlu0 %v2751, 4
      %v2831 = vpop.permute.xlu0 %2830
      %2832 = vrot.lane.b32.xlu0 %v2752, 4
      %v2833 = vpop.permute.xlu0 %2832
      %2834 = vrot.lane.b32.xlu0 %v2753, 4
      %v2835 = vpop.permute.xlu0 %2834
      %2836 = vrot.lane.b32.xlu0 %v2754, 4
      %v2837 = vpop.permute.xlu0 %2836
      %2838 = vrot.lane.b32.xlu0 %v2755, 4
      %v2839 = vpop.permute.xlu0 %2838
      %2840 = vrot.lane.b32.xlu0 %v2756, 4
      %v2841 = vpop.permute.xlu0 %2840
      %2842 = vrot.lane.b32.xlu0 %v2757, 4
      %v2843 = vpop.permute.xlu0 %2842
      %2844 = vrot.lane.b32.xlu0 %v2758, 4
      %v2845 = vpop.permute.xlu0 %2844
      %2846 = vrot.lane.b32.xlu0 %v2759, 4
      %v2847 = vpop.permute.xlu0 %2846
      %2848 = vrot.lane.b32.xlu0 %v2760, 4
      %v2849 = vpop.permute.xlu0 %2848
      %2850 = vrot.lane.b32.xlu0 %v2761, 4
      %v2851 = vpop.permute.xlu0 %2850
      %2852 = vrot.lane.b32.xlu0 %v2762, 4
      %v2853 = vpop.permute.xlu0 %2852
      %2854 = vrot.lane.b32.xlu0 %v2763, 4
      %v2855 = vpop.permute.xlu0 %2854
      %2856 = vrot.lane.b32.xlu0 %v2764, 4
      %v2857 = vpop.permute.xlu0 %2856
      %2858 = vrot.lane.b32.xlu0 %v2765, 4
      %v2859 = vpop.permute.xlu0 %2858
      %2860 = vrot.lane.b32.xlu0 %v2766, 4
      %v2861 = vpop.permute.xlu0 %2860
      %2862 = vrot.lane.b32.xlu0 %v2767, 4
      %v2863 = vpop.permute.xlu0 %2862
      %2896 = vst.msk [vmem:[#allocation3] sm:$0xff] %vm539, %v2801
      %2897 = vst.msk [vmem:[#allocation3 + $0x8] sm:$0xff] %vm539, %v2803
      %2898 = vst.msk [vmem:[#allocation3 + $0x10] sm:$0xff] %vm539, %v2805
      %2899 = vst.msk [vmem:[#allocation3 + $0x18] sm:$0xff] %vm539, %v2807
      %2900 = vst.msk [vmem:[#allocation3 + $0x20] sm:$0xff] %vm539, %v2809
      %2901 = vst.msk [vmem:[#allocation3 + $0x28] sm:$0xff] %vm539, %v2811
      %2902 = vst.msk [vmem:[#allocation3 + $0x30] sm:$0xff] %vm539, %v2813
      %2903 = vst.msk [vmem:[#allocation3 + $0x38] sm:$0xff] %vm539, %v2815
      %2904 = vst.msk [vmem:[#allocation3 + $0x40] sm:$0xff] %vm539, %v2817
      %2905 = vst.msk [vmem:[#allocation3 + $0x48] sm:$0xff] %vm539, %v2819
      %2906 = vst.msk [vmem:[#allocation3 + $0x50] sm:$0xff] %vm539, %v2821
      %2907 = vst.msk [vmem:[#allocation3 + $0x58] sm:$0xff] %vm539, %v2823
      %2908 = vst.msk [vmem:[#allocation3 + $0x60] sm:$0xff] %vm539, %v2825
      %2909 = vst.msk [vmem:[#allocation3 + $0x68] sm:$0xff] %vm539, %v2827
      %2910 = vst.msk [vmem:[#allocation3 + $0x70] sm:$0xff] %vm539, %v2829
      %2911 = vst.msk [vmem:[#allocation3 + $0x78] sm:$0xff] %vm539, %v2831
      %2912 = vst.msk [vmem:[#allocation3 + $0x80] sm:$0xff] %vm539, %v2833
      %2913 = vst.msk [vmem:[#allocation3 + $0x88] sm:$0xff] %vm539, %v2835
      %2914 = vst.msk [vmem:[#allocation3 + $0x90] sm:$0xff] %vm539, %v2837
      %2915 = vst.msk [vmem:[#allocation3 + $0x98] sm:$0xff] %vm539, %v2839
      %2916 = vst.msk [vmem:[#allocation3 + $0xa0] sm:$0xff] %vm539, %v2841
      %2917 = vst.msk [vmem:[#allocation3 + $0xa8] sm:$0xff] %vm539, %v2843
      %2918 = vst.msk [vmem:[#allocation3 + $0xb0] sm:$0xff] %vm539, %v2845
      %2919 = vst.msk [vmem:[#allocation3 + $0xb8] sm:$0xff] %vm539, %v2847
      %2920 = vst.msk [vmem:[#allocation3 + $0xc0] sm:$0xff] %vm539, %v2849
      %2921 = vst.msk [vmem:[#allocation3 + $0xc8] sm:$0xff] %vm539, %v2851
      %2922 = vst.msk [vmem:[#allocation3 + $0xd0] sm:$0xff] %vm539, %v2853
      %2923 = vst.msk [vmem:[#allocation3 + $0xd8] sm:$0xff] %vm539, %v2855
      %2924 = vst.msk [vmem:[#allocation3 + $0xe0] sm:$0xff] %vm539, %v2857
      %2925 = vst.msk [vmem:[#allocation3 + $0xe8] sm:$0xff] %vm539, %v2859
      %2926 = vst.msk [vmem:[#allocation3 + $0xf0] sm:$0xff] %vm539, %v2861
      %2927 = vst.msk [vmem:[#allocation3 + $0xf8] sm:$0xff] %vm539, %v2863
      %v2928 = vld [vmem:[#allocation2 + $0x2] sm:$0xff]
      %v2929 = vld [vmem:[#allocation2 + $0xa] sm:$0xff]
      %v2930 = vld [vmem:[#allocation2 + $0x1a] sm:$0xff]
      %v2931 = vld [vmem:[#allocation2 + $0x22] sm:$0xff]
      %v2932 = vld [vmem:[#allocation2 + $0x32] sm:$0xff]
      %v2933 = vld [vmem:[#allocation2 + $0x3a] sm:$0xff]
      %v2934 = vld [vmem:[#allocation2 + $0x4a] sm:$0xff]
      %v2935 = vld [vmem:[#allocation2 + $0x52] sm:$0xff]
      %v2936 = vld [vmem:[#allocation2 + $0x62] sm:$0xff]
      %v2937 = vld [vmem:[#allocation2 + $0x6a] sm:$0xff]
      %v2938 = vld [vmem:[#allocation2 + $0x7a] sm:$0xff]
      %v2939 = vld [vmem:[#allocation2 + $0x82] sm:$0xff]
      %v2940 = vld [vmem:[#allocation2 + $0x92] sm:$0xff]
      %v2941 = vld [vmem:[#allocation2 + $0x9a] sm:$0xff]
      %v2942 = vld [vmem:[#allocation2 + $0xaa] sm:$0xff]
      %v2943 = vld [vmem:[#allocation2 + $0xb2] sm:$0xff]
      %v2944 = vld [vmem:[#allocation2 + $0xc2] sm:$0xff]
      %v2945 = vld [vmem:[#allocation2 + $0xca] sm:$0xff]
      %v2946 = vld [vmem:[#allocation2 + $0xda] sm:$0xff]
      %v2947 = vld [vmem:[#allocation2 + $0xe2] sm:$0xff]
      %v2948 = vld [vmem:[#allocation2 + $0xf2] sm:$0xff]
      %v2949 = vld [vmem:[#allocation2 + $0xfa] sm:$0xff]
      %v2950 = vld [vmem:[#allocation2 + $0x10a] sm:$0xff]
      %v2951 = vld [vmem:[#allocation2 + $0x112] sm:$0xff]
      %v2952 = vld [vmem:[#allocation2 + $0x122] sm:$0xff]
      %v2953 = vld [vmem:[#allocation2 + $0x12a] sm:$0xff]
      %v2954 = vld [vmem:[#allocation2 + $0x13a] sm:$0xff]
      %v2955 = vld [vmem:[#allocation2 + $0x142] sm:$0xff]
      %v2956 = vld [vmem:[#allocation2 + $0x152] sm:$0xff]
      %v2957 = vld [vmem:[#allocation2 + $0x15a] sm:$0xff]
      %v2958 = vld [vmem:[#allocation2 + $0x16a] sm:$0xff]
      %v2959 = vld [vmem:[#allocation2 + $0x172] sm:$0xff]
      %2992 = vrot.lane.b32.xlu0 %v2928, 8
      %v2993 = vpop.permute.xlu0 %2992
      %2994 = vrot.lane.b32.xlu0 %v2929, 8
      %v2995 = vpop.permute.xlu0 %2994
      %2996 = vrot.lane.b32.xlu0 %v2930, 8
      %v2997 = vpop.permute.xlu0 %2996
      %2998 = vrot.lane.b32.xlu0 %v2931, 8
      %v2999 = vpop.permute.xlu0 %2998
      %3000 = vrot.lane.b32.xlu0 %v2932, 8
      %v3001 = vpop.permute.xlu0 %3000
      %3002 = vrot.lane.b32.xlu0 %v2933, 8
      %v3003 = vpop.permute.xlu0 %3002
      %3004 = vrot.lane.b32.xlu0 %v2934, 8
      %v3005 = vpop.permute.xlu0 %3004
      %3006 = vrot.lane.b32.xlu0 %v2935, 8
      %v3007 = vpop.permute.xlu0 %3006
      %3008 = vrot.lane.b32.xlu0 %v2936, 8
      %v3009 = vpop.permute.xlu0 %3008
      %3010 = vrot.lane.b32.xlu0 %v2937, 8
      %v3011 = vpop.permute.xlu0 %3010
      %3012 = vrot.lane.b32.xlu0 %v2938, 8
      %v3013 = vpop.permute.xlu0 %3012
      %3014 = vrot.lane.b32.xlu0 %v2939, 8
      %v3015 = vpop.permute.xlu0 %3014
      %3016 = vrot.lane.b32.xlu0 %v2940, 8
      %v3017 = vpop.permute.xlu0 %3016
      %3018 = vrot.lane.b32.xlu0 %v2941, 8
      %v3019 = vpop.permute.xlu0 %3018
      %3020 = vrot.lane.b32.xlu0 %v2942, 8
      %v3021 = vpop.permute.xlu0 %3020
      %3022 = vrot.lane.b32.xlu0 %v2943, 8
      %v3023 = vpop.permute.xlu0 %3022
      %3024 = vrot.lane.b32.xlu0 %v2944, 8
      %v3025 = vpop.permute.xlu0 %3024
      %3026 = vrot.lane.b32.xlu0 %v2945, 8
      %v3027 = vpop.permute.xlu0 %3026
      %3028 = vrot.lane.b32.xlu0 %v2946, 8
      %v3029 = vpop.permute.xlu0 %3028
      %3030 = vrot.lane.b32.xlu0 %v2947, 8
      %v3031 = vpop.permute.xlu0 %3030
      %3032 = vrot.lane.b32.xlu0 %v2948, 8
      %v3033 = vpop.permute.xlu0 %3032
      %3034 = vrot.lane.b32.xlu0 %v2949, 8
      %v3035 = vpop.permute.xlu0 %3034
      %3036 = vrot.lane.b32.xlu0 %v2950, 8
      %v3037 = vpop.permute.xlu0 %3036
      %3038 = vrot.lane.b32.xlu0 %v2951, 8
      %v3039 = vpop.permute.xlu0 %3038
      %3040 = vrot.lane.b32.xlu0 %v2952, 8
      %v3041 = vpop.permute.xlu0 %3040
      %3042 = vrot.lane.b32.xlu0 %v2953, 8
      %v3043 = vpop.permute.xlu0 %3042
      %3044 = vrot.lane.b32.xlu0 %v2954, 8
      %v3045 = vpop.permute.xlu0 %3044
      %3046 = vrot.lane.b32.xlu0 %v2955, 8
      %v3047 = vpop.permute.xlu0 %3046
      %3048 = vrot.lane.b32.xlu0 %v2956, 8
      %v3049 = vpop.permute.xlu0 %3048
      %3050 = vrot.lane.b32.xlu0 %v2957, 8
      %v3051 = vpop.permute.xlu0 %3050
      %3052 = vrot.lane.b32.xlu0 %v2958, 8
      %v3053 = vpop.permute.xlu0 %3052
      %3054 = vrot.lane.b32.xlu0 %v2959, 8
      %v3055 = vpop.permute.xlu0 %3054
      %3088 = vst.msk [vmem:[#allocation3] sm:$0xff] %vm732, %v2993
      %3089 = vst.msk [vmem:[#allocation3 + $0x8] sm:$0xff] %vm732, %v2995
      %3090 = vst.msk [vmem:[#allocation3 + $0x10] sm:$0xff] %vm732, %v2997
      %3091 = vst.msk [vmem:[#allocation3 + $0x18] sm:$0xff] %vm732, %v2999
      %3092 = vst.msk [vmem:[#allocation3 + $0x20] sm:$0xff] %vm732, %v3001
      %3093 = vst.msk [vmem:[#allocation3 + $0x28] sm:$0xff] %vm732, %v3003
      %3094 = vst.msk [vmem:[#allocation3 + $0x30] sm:$0xff] %vm732, %v3005
      %3095 = vst.msk [vmem:[#allocation3 + $0x38] sm:$0xff] %vm732, %v3007
      %3096 = vst.msk [vmem:[#allocation3 + $0x40] sm:$0xff] %vm732, %v3009
      %3097 = vst.msk [vmem:[#allocation3 + $0x48] sm:$0xff] %vm732, %v3011
      %3098 = vst.msk [vmem:[#allocation3 + $0x50] sm:$0xff] %vm732, %v3013
      %3099 = vst.msk [vmem:[#allocation3 + $0x58] sm:$0xff] %vm732, %v3015
      %3100 = vst.msk [vmem:[#allocation3 + $0x60] sm:$0xff] %vm732, %v3017
      %3101 = vst.msk [vmem:[#allocation3 + $0x68] sm:$0xff] %vm732, %v3019
      %3102 = vst.msk [vmem:[#allocation3 + $0x70] sm:$0xff] %vm732, %v3021
      %3103 = vst.msk [vmem:[#allocation3 + $0x78] sm:$0xff] %vm732, %v3023
      %3104 = vst.msk [vmem:[#allocation3 + $0x80] sm:$0xff] %vm732, %v3025
      %3105 = vst.msk [vmem:[#allocation3 + $0x88] sm:$0xff] %vm732, %v3027
      %3106 = vst.msk [vmem:[#allocation3 + $0x90] sm:$0xff] %vm732, %v3029
      %3107 = vst.msk [vmem:[#allocation3 + $0x98] sm:$0xff] %vm732, %v3031
      %3108 = vst.msk [vmem:[#allocation3 + $0xa0] sm:$0xff] %vm732, %v3033
      %3109 = vst.msk [vmem:[#allocation3 + $0xa8] sm:$0xff] %vm732, %v3035
      %3110 = vst.msk [vmem:[#allocation3 + $0xb0] sm:$0xff] %vm732, %v3037
      %3111 = vst.msk [vmem:[#allocation3 + $0xb8] sm:$0xff] %vm732, %v3039
      %3112 = vst.msk [vmem:[#allocation3 + $0xc0] sm:$0xff] %vm732, %v3041
      %3113 = vst.msk [vmem:[#allocation3 + $0xc8] sm:$0xff] %vm732, %v3043
      %3114 = vst.msk [vmem:[#allocation3 + $0xd0] sm:$0xff] %vm732, %v3045
      %3115 = vst.msk [vmem:[#allocation3 + $0xd8] sm:$0xff] %vm732, %v3047
      %3116 = vst.msk [vmem:[#allocation3 + $0xe0] sm:$0xff] %vm732, %v3049
      %3117 = vst.msk [vmem:[#allocation3 + $0xe8] sm:$0xff] %vm732, %v3051
      %3118 = vst.msk [vmem:[#allocation3 + $0xf0] sm:$0xff] %vm732, %v3053
      %3119 = vst.msk [vmem:[#allocation3 + $0xf8] sm:$0xff] %vm732, %v3055
      %v3120 = vld [vmem:[%s203] sm:$0xff]
      %v3121 = vld [vmem:[%s203 + $0x8] sm:$0xff]
      %v3122 = vld [vmem:[%s203 + $0x18] sm:$0xff]
      %v3123 = vld [vmem:[%s203 + $0x20] sm:$0xff]
      %v3124 = vld [vmem:[%s203 + $0x30] sm:$0xff]
      %v3125 = vld [vmem:[%s203 + $0x38] sm:$0xff]
      %v3126 = vld [vmem:[%s203 + $0x48] sm:$0xff]
      %v3127 = vld [vmem:[%s203 + $0x50] sm:$0xff]
      %v3128 = vld [vmem:[%s203 + $0x60] sm:$0xff]
      %v3129 = vld [vmem:[%s203 + $0x68] sm:$0xff]
      %v3130 = vld [vmem:[%s203 + $0x78] sm:$0xff]
      %v3131 = vld [vmem:[%s203 + $0x80] sm:$0xff]
      %v3132 = vld [vmem:[%s203 + $0x90] sm:$0xff]
      %v3133 = vld [vmem:[%s203 + $0x98] sm:$0xff]
      %v3134 = vld [vmem:[%s203 + $0xa8] sm:$0xff]
      %v3135 = vld [vmem:[%s203 + $0xb0] sm:$0xff]
      %v3136 = vld [vmem:[%s203 + $0xc0] sm:$0xff]
      %v3137 = vld [vmem:[%s203 + $0xc8] sm:$0xff]
      %v3138 = vld [vmem:[%s203 + $0xd8] sm:$0xff]
      %v3139 = vld [vmem:[%s203 + $0xe0] sm:$0xff]
      %v3140 = vld [vmem:[%s203 + $0xf0] sm:$0xff]
      %v3141 = vld [vmem:[%s203 + $0xf8] sm:$0xff]
      %v3142 = vld [vmem:[%s203 + $0x108] sm:$0xff]
      %v3143 = vld [vmem:[%s203 + $0x110] sm:$0xff]
      %v3144 = vld [vmem:[%s203 + $0x120] sm:$0xff]
      %v3145 = vld [vmem:[%s203 + $0x128] sm:$0xff]
      %v3146 = vld [vmem:[%s203 + $0x138] sm:$0xff]
      %v3147 = vld [vmem:[%s203 + $0x140] sm:$0xff]
      %v3148 = vld [vmem:[%s203 + $0x150] sm:$0xff]
      %v3149 = vld [vmem:[%s203 + $0x158] sm:$0xff]
      %v3150 = vld [vmem:[%s203 + $0x168] sm:$0xff]
      %v3151 = vld [vmem:[%s203 + $0x170] sm:$0xff]
      %3184 = vrot.lane.b32.xlu0 %v3120, 12
      %v3185 = vpop.permute.xlu0 %3184
      %3186 = vrot.lane.b32.xlu0 %v3121, 12
      %v3187 = vpop.permute.xlu0 %3186
      %3188 = vrot.lane.b32.xlu0 %v3122, 12
      %v3189 = vpop.permute.xlu0 %3188
      %3190 = vrot.lane.b32.xlu0 %v3123, 12
      %v3191 = vpop.permute.xlu0 %3190
      %3192 = vrot.lane.b32.xlu0 %v3124, 12
      %v3193 = vpop.permute.xlu0 %3192
      %3194 = vrot.lane.b32.xlu0 %v3125, 12
      %v3195 = vpop.permute.xlu0 %3194
      %3196 = vrot.lane.b32.xlu0 %v3126, 12
      %v3197 = vpop.permute.xlu0 %3196
      %3198 = vrot.lane.b32.xlu0 %v3127, 12
      %v3199 = vpop.permute.xlu0 %3198
      %3200 = vrot.lane.b32.xlu0 %v3128, 12
      %v3201 = vpop.permute.xlu0 %3200
      %3202 = vrot.lane.b32.xlu0 %v3129, 12
      %v3203 = vpop.permute.xlu0 %3202
      %3204 = vrot.lane.b32.xlu0 %v3130, 12
      %v3205 = vpop.permute.xlu0 %3204
      %3206 = vrot.lane.b32.xlu0 %v3131, 12
      %v3207 = vpop.permute.xlu0 %3206
      %3208 = vrot.lane.b32.xlu0 %v3132, 12
      %v3209 = vpop.permute.xlu0 %3208
      %3210 = vrot.lane.b32.xlu0 %v3133, 12
      %v3211 = vpop.permute.xlu0 %3210
      %3212 = vrot.lane.b32.xlu0 %v3134, 12
      %v3213 = vpop.permute.xlu0 %3212
      %3214 = vrot.lane.b32.xlu0 %v3135, 12
      %v3215 = vpop.permute.xlu0 %3214
      %3216 = vrot.lane.b32.xlu0 %v3136, 12
      %v3217 = vpop.permute.xlu0 %3216
      %3218 = vrot.lane.b32.xlu0 %v3137, 12
      %v3219 = vpop.permute.xlu0 %3218
      %3220 = vrot.lane.b32.xlu0 %v3138, 12
      %v3221 = vpop.permute.xlu0 %3220
      %3222 = vrot.lane.b32.xlu0 %v3139, 12
      %v3223 = vpop.permute.xlu0 %3222
      %3224 = vrot.lane.b32.xlu0 %v3140, 12
      %v3225 = vpop.permute.xlu0 %3224
      %3226 = vrot.lane.b32.xlu0 %v3141, 12
      %v3227 = vpop.permute.xlu0 %3226
      %3228 = vrot.lane.b32.xlu0 %v3142, 12
      %v3229 = vpop.permute.xlu0 %3228
      %3230 = vrot.lane.b32.xlu0 %v3143, 12
      %v3231 = vpop.permute.xlu0 %3230
      %3232 = vrot.lane.b32.xlu0 %v3144, 12
      %v3233 = vpop.permute.xlu0 %3232
      %3234 = vrot.lane.b32.xlu0 %v3145, 12
      %v3235 = vpop.permute.xlu0 %3234
      %3236 = vrot.lane.b32.xlu0 %v3146, 12
      %v3237 = vpop.permute.xlu0 %3236
      %3238 = vrot.lane.b32.xlu0 %v3147, 12
      %v3239 = vpop.permute.xlu0 %3238
      %3240 = vrot.lane.b32.xlu0 %v3148, 12
      %v3241 = vpop.permute.xlu0 %3240
      %3242 = vrot.lane.b32.xlu0 %v3149, 12
      %v3243 = vpop.permute.xlu0 %3242
      %3244 = vrot.lane.b32.xlu0 %v3150, 12
      %v3245 = vpop.permute.xlu0 %3244
      %3246 = vrot.lane.b32.xlu0 %v3151, 12
      %v3247 = vpop.permute.xlu0 %3246
      %3280 = vst.msk [vmem:[#allocation3] sm:$0xff] %vm925, %v3185
      %3281 = vst.msk [vmem:[#allocation3 + $0x8] sm:$0xff] %vm925, %v3187
      %3282 = vst.msk [vmem:[#allocation3 + $0x10] sm:$0xff] %vm925, %v3189
      %3283 = vst.msk [vmem:[#allocation3 + $0x18] sm:$0xff] %vm925, %v3191
      %3284 = vst.msk [vmem:[#allocation3 + $0x20] sm:$0xff] %vm925, %v3193
      %3285 = vst.msk [vmem:[#allocation3 + $0x28] sm:$0xff] %vm925, %v3195
      %3286 = vst.msk [vmem:[#allocation3 + $0x30] sm:$0xff] %vm925, %v3197
      %3287 = vst.msk [vmem:[#allocation3 + $0x38] sm:$0xff] %vm925, %v3199
      %3288 = vst.msk [vmem:[#allocation3 + $0x40] sm:$0xff] %vm925, %v3201
      %3289 = vst.msk [vmem:[#allocation3 + $0x48] sm:$0xff] %vm925, %v3203
      %3290 = vst.msk [vmem:[#allocation3 + $0x50] sm:$0xff] %vm925, %v3205
      %3291 = vst.msk [vmem:[#allocation3 + $0x58] sm:$0xff] %vm925, %v3207
      %3292 = vst.msk [vmem:[#allocation3 + $0x60] sm:$0xff] %vm925, %v3209
      %3293 = vst.msk [vmem:[#allocation3 + $0x68] sm:$0xff] %vm925, %v3211
      %3294 = vst.msk [vmem:[#allocation3 + $0x70] sm:$0xff] %vm925, %v3213
      %3295 = vst.msk [vmem:[#allocation3 + $0x78] sm:$0xff] %vm925, %v3215
      %3296 = vst.msk [vmem:[#allocation3 + $0x80] sm:$0xff] %vm925, %v3217
      %3297 = vst.msk [vmem:[#allocation3 + $0x88] sm:$0xff] %vm925, %v3219
      %3298 = vst.msk [vmem:[#allocation3 + $0x90] sm:$0xff] %vm925, %v3221
      %3299 = vst.msk [vmem:[#allocation3 + $0x98] sm:$0xff] %vm925, %v3223
      %3300 = vst.msk [vmem:[#allocation3 + $0xa0] sm:$0xff] %vm925, %v3225
      %3301 = vst.msk [vmem:[#allocation3 + $0xa8] sm:$0xff] %vm925, %v3227
      %3302 = vst.msk [vmem:[#allocation3 + $0xb0] sm:$0xff] %vm925, %v3229
      %3303 = vst.msk [vmem:[#allocation3 + $0xb8] sm:$0xff] %vm925, %v3231
      %3304 = vst.msk [vmem:[#allocation3 + $0xc0] sm:$0xff] %vm925, %v3233
      %3305 = vst.msk [vmem:[#allocation3 + $0xc8] sm:$0xff] %vm925, %v3235
      %3306 = vst.msk [vmem:[#allocation3 + $0xd0] sm:$0xff] %vm925, %v3237
      %3307 = vst.msk [vmem:[#allocation3 + $0xd8] sm:$0xff] %vm925, %v3239
      %3308 = vst.msk [vmem:[#allocation3 + $0xe0] sm:$0xff] %vm925, %v3241
      %3309 = vst.msk [vmem:[#allocation3 + $0xe8] sm:$0xff] %vm925, %v3243
      %3310 = vst.msk [vmem:[#allocation3 + $0xf0] sm:$0xff] %vm925, %v3245
      %3311 = vst.msk [vmem:[#allocation3 + $0xf8] sm:$0xff] %vm925, %v3247
      %v3312 = vld [vmem:[%s203 + $0x1] sm:$0xff]
      %v3313 = vld [vmem:[%s203 + $0x9] sm:$0xff]
      %v3314 = vld [vmem:[%s203 + $0x19] sm:$0xff]
      %v3315 = vld [vmem:[%s203 + $0x21] sm:$0xff]
      %v3316 = vld [vmem:[%s203 + $0x31] sm:$0xff]
      %v3317 = vld [vmem:[%s203 + $0x39] sm:$0xff]
      %v3318 = vld [vmem:[%s203 + $0x49] sm:$0xff]
      %v3319 = vld [vmem:[%s203 + $0x51] sm:$0xff]
      %v3320 = vld [vmem:[%s203 + $0x61] sm:$0xff]
      %v3321 = vld [vmem:[%s203 + $0x69] sm:$0xff]
      %v3322 = vld [vmem:[%s203 + $0x79] sm:$0xff]
      %v3323 = vld [vmem:[%s203 + $0x81] sm:$0xff]
      %v3324 = vld [vmem:[%s203 + $0x91] sm:$0xff]
      %v3325 = vld [vmem:[%s203 + $0x99] sm:$0xff]
      %v3326 = vld [vmem:[%s203 + $0xa9] sm:$0xff]
      %v3327 = vld [vmem:[%s203 + $0xb1] sm:$0xff]
      %v3328 = vld [vmem:[%s203 + $0xc1] sm:$0xff]
      %v3329 = vld [vmem:[%s203 + $0xc9] sm:$0xff]
      %v3330 = vld [vmem:[%s203 + $0xd9] sm:$0xff]
      %v3331 = vld [vmem:[%s203 + $0xe1] sm:$0xff]
      %v3332 = vld [vmem:[%s203 + $0xf1] sm:$0xff]
      %v3333 = vld [vmem:[%s203 + $0xf9] sm:$0xff]
      %v3334 = vld [vmem:[%s203 + $0x109] sm:$0xff]
      %v3335 = vld [vmem:[%s203 + $0x111] sm:$0xff]
      %v3336 = vld [vmem:[%s203 + $0x121] sm:$0xff]
      %v3337 = vld [vmem:[%s203 + $0x129] sm:$0xff]
      %v3338 = vld [vmem:[%s203 + $0x139] sm:$0xff]
      %v3339 = vld [vmem:[%s203 + $0x141] sm:$0xff]
      %v3340 = vld [vmem:[%s203 + $0x151] sm:$0xff]
      %v3341 = vld [vmem:[%s203 + $0x159] sm:$0xff]
      %v3342 = vld [vmem:[%s203 + $0x169] sm:$0xff]
      %v3343 = vld [vmem:[%s203 + $0x171] sm:$0xff]
      %3376 = vrot.lane.b32.xlu0 %v3312, 16
      %v3377 = vpop.permute.xlu0 %3376
      %3378 = vrot.lane.b32.xlu0 %v3313, 16
      %v3379 = vpop.permute.xlu0 %3378
      %3380 = vrot.lane.b32.xlu0 %v3314, 16
      %v3381 = vpop.permute.xlu0 %3380
      %3382 = vrot.lane.b32.xlu0 %v3315, 16
      %v3383 = vpop.permute.xlu0 %3382
      %3384 = vrot.lane.b32.xlu0 %v3316, 16
      %v3385 = vpop.permute.xlu0 %3384
      %3386 = vrot.lane.b32.xlu0 %v3317, 16
      %v3387 = vpop.permute.xlu0 %3386
      %3388 = vrot.lane.b32.xlu0 %v3318, 16
      %v3389 = vpop.permute.xlu0 %3388
      %3390 = vrot.lane.b32.xlu0 %v3319, 16
      %v3391 = vpop.permute.xlu0 %3390
      %3392 = vrot.lane.b32.xlu0 %v3320, 16
      %v3393 = vpop.permute.xlu0 %3392
      %3394 = vrot.lane.b32.xlu0 %v3321, 16
      %v3395 = vpop.permute.xlu0 %3394
      %3396 = vrot.lane.b32.xlu0 %v3322, 16
      %v3397 = vpop.permute.xlu0 %3396
      %3398 = vrot.lane.b32.xlu0 %v3323, 16
      %v3399 = vpop.permute.xlu0 %3398
      %3400 = vrot.lane.b32.xlu0 %v3324, 16
      %v3401 = vpop.permute.xlu0 %3400
      %3402 = vrot.lane.b32.xlu0 %v3325, 16
      %v3403 = vpop.permute.xlu0 %3402
      %3404 = vrot.lane.b32.xlu0 %v3326, 16
      %v3405 = vpop.permute.xlu0 %3404
      %3406 = vrot.lane.b32.xlu0 %v3327, 16
      %v3407 = vpop.permute.xlu0 %3406
      %3408 = vrot.lane.b32.xlu0 %v3328, 16
      %v3409 = vpop.permute.xlu0 %3408
      %3410 = vrot.lane.b32.xlu0 %v3329, 16
      %v3411 = vpop.permute.xlu0 %3410
      %3412 = vrot.lane.b32.xlu0 %v3330, 16
      %v3413 = vpop.permute.xlu0 %3412
      %3414 = vrot.lane.b32.xlu0 %v3331, 16
      %v3415 = vpop.permute.xlu0 %3414
      %3416 = vrot.lane.b32.xlu0 %v3332, 16
      %v3417 = vpop.permute.xlu0 %3416
      %3418 = vrot.lane.b32.xlu0 %v3333, 16
      %v3419 = vpop.permute.xlu0 %3418
      %3420 = vrot.lane.b32.xlu0 %v3334, 16
      %v3421 = vpop.permute.xlu0 %3420
      %3422 = vrot.lane.b32.xlu0 %v3335, 16
      %v3423 = vpop.permute.xlu0 %3422
      %3424 = vrot.lane.b32.xlu0 %v3336, 16
      %v3425 = vpop.permute.xlu0 %3424
      %3426 = vrot.lane.b32.xlu0 %v3337, 16
      %v3427 = vpop.permute.xlu0 %3426
      %3428 = vrot.lane.b32.xlu0 %v3338, 16
      %v3429 = vpop.permute.xlu0 %3428
      %3430 = vrot.lane.b32.xlu0 %v3339, 16
      %v3431 = vpop.permute.xlu0 %3430
      %3432 = vrot.lane.b32.xlu0 %v3340, 16
      %v3433 = vpop.permute.xlu0 %3432
      %3434 = vrot.lane.b32.xlu0 %v3341, 16
      %v3435 = vpop.permute.xlu0 %3434
      %3436 = vrot.lane.b32.xlu0 %v3342, 16
      %v3437 = vpop.permute.xlu0 %3436
      %3438 = vrot.lane.b32.xlu0 %v3343, 16
      %v3439 = vpop.permute.xlu0 %3438
      %3472 = vst.msk [vmem:[#allocation3] sm:$0xff] %vm1118, %v3377
      %3473 = vst.msk [vmem:[#allocation3 + $0x8] sm:$0xff] %vm1118, %v3379
      %3474 = vst.msk [vmem:[#allocation3 + $0x10] sm:$0xff] %vm1118, %v3381
      %3475 = vst.msk [vmem:[#allocation3 + $0x18] sm:$0xff] %vm1118, %v3383
      %3476 = vst.msk [vmem:[#allocation3 + $0x20] sm:$0xff] %vm1118, %v3385
      %3477 = vst.msk [vmem:[#allocation3 + $0x28] sm:$0xff] %vm1118, %v3387
      %3478 = vst.msk [vmem:[#allocation3 + $0x30] sm:$0xff] %vm1118, %v3389
      %3479 = vst.msk [vmem:[#allocation3 + $0x38] sm:$0xff] %vm1118, %v3391
      %3480 = vst.msk [vmem:[#allocation3 + $0x40] sm:$0xff] %vm1118, %v3393
      %3481 = vst.msk [vmem:[#allocation3 + $0x48] sm:$0xff] %vm1118, %v3395
      %3482 = vst.msk [vmem:[#allocation3 + $0x50] sm:$0xff] %vm1118, %v3397
      %3483 = vst.msk [vmem:[#allocation3 + $0x58] sm:$0xff] %vm1118, %v3399
      %3484 = vst.msk [vmem:[#allocation3 + $0x60] sm:$0xff] %vm1118, %v3401
      %3485 = vst.msk [vmem:[#allocation3 + $0x68] sm:$0xff] %vm1118, %v3403
      %3486 = vst.msk [vmem:[#allocation3 + $0x70] sm:$0xff] %vm1118, %v3405
      %3487 = vst.msk [vmem:[#allocation3 + $0x78] sm:$0xff] %vm1118, %v3407
      %3488 = vst.msk [vmem:[#allocation3 + $0x80] sm:$0xff] %vm1118, %v3409
      %3489 = vst.msk [vmem:[#allocation3 + $0x88] sm:$0xff] %vm1118, %v3411
      %3490 = vst.msk [vmem:[#allocation3 + $0x90] sm:$0xff] %vm1118, %v3413
      %3491 = vst.msk [vmem:[#allocation3 + $0x98] sm:$0xff] %vm1118, %v3415
      %3492 = vst.msk [vmem:[#allocation3 + $0xa0] sm:$0xff] %vm1118, %v3417
      %3493 = vst.msk [vmem:[#allocation3 + $0xa8] sm:$0xff] %vm1118, %v3419
      %3494 = vst.msk [vmem:[#allocation3 + $0xb0] sm:$0xff] %vm1118, %v3421
      %3495 = vst.msk [vmem:[#allocation3 + $0xb8] sm:$0xff] %vm1118, %v3423
      %3496 = vst.msk [vmem:[#allocation3 + $0xc0] sm:$0xff] %vm1118, %v3425
      %3497 = vst.msk [vmem:[#allocation3 + $0xc8] sm:$0xff] %vm1118, %v3427
      %3498 = vst.msk [vmem:[#allocation3 + $0xd0] sm:$0xff] %vm1118, %v3429
      %3499 = vst.msk [vmem:[#allocation3 + $0xd8] sm:$0xff] %vm1118, %v3431
      %3500 = vst.msk [vmem:[#allocation3 + $0xe0] sm:$0xff] %vm1118, %v3433
      %3501 = vst.msk [vmem:[#allocation3 + $0xe8] sm:$0xff] %vm1118, %v3435
      %3502 = vst.msk [vmem:[#allocation3 + $0xf0] sm:$0xff] %vm1118, %v3437
      %3503 = vst.msk [vmem:[#allocation3 + $0xf8] sm:$0xff] %vm1118, %v3439
      %v3504 = vld [vmem:[%s203 + $0x2] sm:$0xff]
      %v3505 = vld [vmem:[%s203 + $0xa] sm:$0xff]
      %v3506 = vld [vmem:[%s203 + $0x1a] sm:$0xff]
      %v3507 = vld [vmem:[%s203 + $0x22] sm:$0xff]
      %v3508 = vld [vmem:[%s203 + $0x32] sm:$0xff]
      %v3509 = vld [vmem:[%s203 + $0x3a] sm:$0xff]
      %v3510 = vld [vmem:[%s203 + $0x4a] sm:$0xff]
      %v3511 = vld [vmem:[%s203 + $0x52] sm:$0xff]
      %v3512 = vld [vmem:[%s203 + $0x62] sm:$0xff]
      %v3513 = vld [vmem:[%s203 + $0x6a] sm:$0xff]
      %v3514 = vld [vmem:[%s203 + $0x7a] sm:$0xff]
      %v3515 = vld [vmem:[%s203 + $0x82] sm:$0xff]
      %v3516 = vld [vmem:[%s203 + $0x92] sm:$0xff]
      %v3517 = vld [vmem:[%s203 + $0x9a] sm:$0xff]
      %v3518 = vld [vmem:[%s203 + $0xaa] sm:$0xff]
      %v3519 = vld [vmem:[%s203 + $0xb2] sm:$0xff]
      %v3520 = vld [vmem:[%s203 + $0xc2] sm:$0xff]
      %v3521 = vld [vmem:[%s203 + $0xca] sm:$0xff]
      %v3522 = vld [vmem:[%s203 + $0xda] sm:$0xff]
      %v3523 = vld [vmem:[%s203 + $0xe2] sm:$0xff]
      %v3524 = vld [vmem:[%s203 + $0xf2] sm:$0xff]
      %v3525 = vld [vmem:[%s203 + $0xfa] sm:$0xff]
      %v3526 = vld [vmem:[%s203 + $0x10a] sm:$0xff]
      %v3527 = vld [vmem:[%s203 + $0x112] sm:$0xff]
      %v3528 = vld [vmem:[%s203 + $0x122] sm:$0xff]
      %v3529 = vld [vmem:[%s203 + $0x12a] sm:$0xff]
      %v3530 = vld [vmem:[%s203 + $0x13a] sm:$0xff]
      %v3531 = vld [vmem:[%s203 + $0x142] sm:$0xff]
      %v3532 = vld [vmem:[%s203 + $0x152] sm:$0xff]
      %v3533 = vld [vmem:[%s203 + $0x15a] sm:$0xff]
      %v3534 = vld [vmem:[%s203 + $0x16a] sm:$0xff]
      %v3535 = vld [vmem:[%s203 + $0x172] sm:$0xff]
      %3568 = vrot.lane.b32.xlu0 %v3504, 20
      %v3569 = vpop.permute.xlu0 %3568
      %3570 = vrot.lane.b32.xlu0 %v3505, 20
      %v3571 = vpop.permute.xlu0 %3570
      %3572 = vrot.lane.b32.xlu0 %v3506, 20
      %v3573 = vpop.permute.xlu0 %3572
      %3574 = vrot.lane.b32.xlu0 %v3507, 20
      %v3575 = vpop.permute.xlu0 %3574
      %3576 = vrot.lane.b32.xlu0 %v3508, 20
      %v3577 = vpop.permute.xlu0 %3576
      %3578 = vrot.lane.b32.xlu0 %v3509, 20
      %v3579 = vpop.permute.xlu0 %3578
      %3580 = vrot.lane.b32.xlu0 %v3510, 20
      %v3581 = vpop.permute.xlu0 %3580
      %3582 = vrot.lane.b32.xlu0 %v3511, 20
      %v3583 = vpop.permute.xlu0 %3582
      %3584 = vrot.lane.b32.xlu0 %v3512, 20
      %v3585 = vpop.permute.xlu0 %3584
      %3586 = vrot.lane.b32.xlu0 %v3513, 20
      %v3587 = vpop.permute.xlu0 %3586
      %3588 = vrot.lane.b32.xlu0 %v3514, 20
      %v3589 = vpop.permute.xlu0 %3588
      %3590 = vrot.lane.b32.xlu0 %v3515, 20
      %v3591 = vpop.permute.xlu0 %3590
      %3592 = vrot.lane.b32.xlu0 %v3516, 20
      %v3593 = vpop.permute.xlu0 %3592
      %3594 = vrot.lane.b32.xlu0 %v3517, 20
      %v3595 = vpop.permute.xlu0 %3594
      %3596 = vrot.lane.b32.xlu0 %v3518, 20
      %v3597 = vpop.permute.xlu0 %3596
      %3598 = vrot.lane.b32.xlu0 %v3519, 20
      %v3599 = vpop.permute.xlu0 %3598
      %3600 = vrot.lane.b32.xlu0 %v3520, 20
      %v3601 = vpop.permute.xlu0 %3600
      %3602 = vrot.lane.b32.xlu0 %v3521, 20
      %v3603 = vpop.permute.xlu0 %3602
      %3604 = vrot.lane.b32.xlu0 %v3522, 20
      %v3605 = vpop.permute.xlu0 %3604
      %3606 = vrot.lane.b32.xlu0 %v3523, 20
      %v3607 = vpop.permute.xlu0 %3606
      %3608 = vrot.lane.b32.xlu0 %v3524, 20
      %v3609 = vpop.permute.xlu0 %3608
      %3610 = vrot.lane.b32.xlu0 %v3525, 20
      %v3611 = vpop.permute.xlu0 %3610
      %3612 = vrot.lane.b32.xlu0 %v3526, 20
      %v3613 = vpop.permute.xlu0 %3612
      %3614 = vrot.lane.b32.xlu0 %v3527, 20
      %v3615 = vpop.permute.xlu0 %3614
      %3616 = vrot.lane.b32.xlu0 %v3528, 20
      %v3617 = vpop.permute.xlu0 %3616
      %3618 = vrot.lane.b32.xlu0 %v3529, 20
      %v3619 = vpop.permute.xlu0 %3618
      %3620 = vrot.lane.b32.xlu0 %v3530, 20
      %v3621 = vpop.permute.xlu0 %3620
      %3622 = vrot.lane.b32.xlu0 %v3531, 20
      %v3623 = vpop.permute.xlu0 %3622
      %3624 = vrot.lane.b32.xlu0 %v3532, 20
      %v3625 = vpop.permute.xlu0 %3624
      %3626 = vrot.lane.b32.xlu0 %v3533, 20
      %v3627 = vpop.permute.xlu0 %3626
      %3628 = vrot.lane.b32.xlu0 %v3534, 20
      %v3629 = vpop.permute.xlu0 %3628
      %3630 = vrot.lane.b32.xlu0 %v3535, 20
      %v3631 = vpop.permute.xlu0 %3630
      %3664 = vst.msk [vmem:[#allocation3] sm:$0xff] %vm1311, %v3569
      %3665 = vst.msk [vmem:[#allocation3 + $0x8] sm:$0xff] %vm1311, %v3571
      %3666 = vst.msk [vmem:[#allocation3 + $0x10] sm:$0xff] %vm1311, %v3573
      %3667 = vst.msk [vmem:[#allocation3 + $0x18] sm:$0xff] %vm1311, %v3575
      %3668 = vst.msk [vmem:[#allocation3 + $0x20] sm:$0xff] %vm1311, %v3577
      %3669 = vst.msk [vmem:[#allocation3 + $0x28] sm:$0xff] %vm1311, %v3579
      %3670 = vst.msk [vmem:[#allocation3 + $0x30] sm:$0xff] %vm1311, %v3581
      %3671 = vst.msk [vmem:[#allocation3 + $0x38] sm:$0xff] %vm1311, %v3583
      %3672 = vst.msk [vmem:[#allocation3 + $0x40] sm:$0xff] %vm1311, %v3585
      %3673 = vst.msk [vmem:[#allocation3 + $0x48] sm:$0xff] %vm1311, %v3587
      %3674 = vst.msk [vmem:[#allocation3 + $0x50] sm:$0xff] %vm1311, %v3589
      %3675 = vst.msk [vmem:[#allocation3 + $0x58] sm:$0xff] %vm1311, %v3591
      %3676 = vst.msk [vmem:[#allocation3 + $0x60] sm:$0xff] %vm1311, %v3593
      %3677 = vst.msk [vmem:[#allocation3 + $0x68] sm:$0xff] %vm1311, %v3595
      %3678 = vst.msk [vmem:[#allocation3 + $0x70] sm:$0xff] %vm1311, %v3597
      %3679 = vst.msk [vmem:[#allocation3 + $0x78] sm:$0xff] %vm1311, %v3599
      %3680 = vst.msk [vmem:[#allocation3 + $0x80] sm:$0xff] %vm1311, %v3601
      %3681 = vst.msk [vmem:[#allocation3 + $0x88] sm:$0xff] %vm1311, %v3603
      %3682 = vst.msk [vmem:[#allocation3 + $0x90] sm:$0xff] %vm1311, %v3605
      %3683 = vst.msk [vmem:[#allocation3 + $0x98] sm:$0xff] %vm1311, %v3607
      %3684 = vst.msk [vmem:[#allocation3 + $0xa0] sm:$0xff] %vm1311, %v3609
      %3685 = vst.msk [vmem:[#allocation3 + $0xa8] sm:$0xff] %vm1311, %v3611
      %3686 = vst.msk [vmem:[#allocation3 + $0xb0] sm:$0xff] %vm1311, %v3613
      %3687 = vst.msk [vmem:[#allocation3 + $0xb8] sm:$0xff] %vm1311, %v3615
      %3688 = vst.msk [vmem:[#allocation3 + $0xc0] sm:$0xff] %vm1311, %v3617
      %3689 = vst.msk [vmem:[#allocation3 + $0xc8] sm:$0xff] %vm1311, %v3619
      %3690 = vst.msk [vmem:[#allocation3 + $0xd0] sm:$0xff] %vm1311, %v3621
      %3691 = vst.msk [vmem:[#allocation3 + $0xd8] sm:$0xff] %vm1311, %v3623
      %3692 = vst.msk [vmem:[#allocation3 + $0xe0] sm:$0xff] %vm1311, %v3625
      %3693 = vst.msk [vmem:[#allocation3 + $0xe8] sm:$0xff] %vm1311, %v3627
      %3694 = vst.msk [vmem:[#allocation3 + $0xf0] sm:$0xff] %vm1311, %v3629
      %3695 = vst.msk [vmem:[#allocation3 + $0xf8] sm:$0xff] %vm1311, %v3631
      %v3696 = vld [vmem:[%s1344] sm:$0xff]
      %v3697 = vld [vmem:[%s1344 + $0x8] sm:$0xff]
      %v3698 = vld [vmem:[%s1344 + $0x18] sm:$0xff]
      %v3699 = vld [vmem:[%s1344 + $0x20] sm:$0xff]
      %v3700 = vld [vmem:[%s1344 + $0x30] sm:$0xff]
      %v3701 = vld [vmem:[%s1344 + $0x38] sm:$0xff]
      %v3702 = vld [vmem:[%s1344 + $0x48] sm:$0xff]
      %v3703 = vld [vmem:[%s1344 + $0x50] sm:$0xff]
      %v3704 = vld [vmem:[%s1344 + $0x60] sm:$0xff]
      %v3705 = vld [vmem:[%s1344 + $0x68] sm:$0xff]
      %v3706 = vld [vmem:[%s1344 + $0x78] sm:$0xff]
      %v3707 = vld [vmem:[%s1344 + $0x80] sm:$0xff]
      %v3708 = vld [vmem:[%s1344 + $0x90] sm:$0xff]
      %v3709 = vld [vmem:[%s1344 + $0x98] sm:$0xff]
      %v3710 = vld [vmem:[%s1344 + $0xa8] sm:$0xff]
      %v3711 = vld [vmem:[%s1344 + $0xb0] sm:$0xff]
      %v3712 = vld [vmem:[%s1344 + $0xc0] sm:$0xff]
      %v3713 = vld [vmem:[%s1344 + $0xc8] sm:$0xff]
      %v3714 = vld [vmem:[%s1344 + $0xd8] sm:$0xff]
      %v3715 = vld [vmem:[%s1344 + $0xe0] sm:$0xff]
      %v3716 = vld [vmem:[%s1344 + $0xf0] sm:$0xff]
      %v3717 = vld [vmem:[%s1344 + $0xf8] sm:$0xff]
      %v3718 = vld [vmem:[%s1344 + $0x108] sm:$0xff]
      %v3719 = vld [vmem:[%s1344 + $0x110] sm:$0xff]
      %v3720 = vld [vmem:[%s1344 + $0x120] sm:$0xff]
      %v3721 = vld [vmem:[%s1344 + $0x128] sm:$0xff]
      %v3722 = vld [vmem:[%s1344 + $0x138] sm:$0xff]
      %v3723 = vld [vmem:[%s1344 + $0x140] sm:$0xff]
      %v3724 = vld [vmem:[%s1344 + $0x150] sm:$0xff]
      %v3725 = vld [vmem:[%s1344 + $0x158] sm:$0xff]
      %v3726 = vld [vmem:[%s1344 + $0x168] sm:$0xff]
      %v3727 = vld [vmem:[%s1344 + $0x170] sm:$0xff]
      %3760 = vrot.lane.b32.xlu0 %v3696, 24
      %v3761 = vpop.permute.xlu0 %3760
      %3762 = vrot.lane.b32.xlu0 %v3697, 24
      %v3763 = vpop.permute.xlu0 %3762
      %3764 = vrot.lane.b32.xlu0 %v3698, 24
      %v3765 = vpop.permute.xlu0 %3764
      %3766 = vrot.lane.b32.xlu0 %v3699, 24
      %v3767 = vpop.permute.xlu0 %3766
      %3768 = vrot.lane.b32.xlu0 %v3700, 24
      %v3769 = vpop.permute.xlu0 %3768
      %3770 = vrot.lane.b32.xlu0 %v3701, 24
      %v3771 = vpop.permute.xlu0 %3770
      %3772 = vrot.lane.b32.xlu0 %v3702, 24
      %v3773 = vpop.permute.xlu0 %3772
      %3774 = vrot.lane.b32.xlu0 %v3703, 24
      %v3775 = vpop.permute.xlu0 %3774
      %3776 = vrot.lane.b32.xlu0 %v3704, 24
      %v3777 = vpop.permute.xlu0 %3776
      %3778 = vrot.lane.b32.xlu0 %v3705, 24
      %v3779 = vpop.permute.xlu0 %3778
      %3780 = vrot.lane.b32.xlu0 %v3706, 24
      %v3781 = vpop.permute.xlu0 %3780
      %3782 = vrot.lane.b32.xlu0 %v3707, 24
      %v3783 = vpop.permute.xlu0 %3782
      %3784 = vrot.lane.b32.xlu0 %v3708, 24
      %v3785 = vpop.permute.xlu0 %3784
      %3786 = vrot.lane.b32.xlu0 %v3709, 24
      %v3787 = vpop.permute.xlu0 %3786
      %3788 = vrot.lane.b32.xlu0 %v3710, 24
      %v3789 = vpop.permute.xlu0 %3788
      %3790 = vrot.lane.b32.xlu0 %v3711, 24
      %v3791 = vpop.permute.xlu0 %3790
      %3792 = vrot.lane.b32.xlu0 %v3712, 24
      %v3793 = vpop.permute.xlu0 %3792
      %3794 = vrot.lane.b32.xlu0 %v3713, 24
      %v3795 = vpop.permute.xlu0 %3794
      %3796 = vrot.lane.b32.xlu0 %v3714, 24
      %v3797 = vpop.permute.xlu0 %3796
      %3798 = vrot.lane.b32.xlu0 %v3715, 24
      %v3799 = vpop.permute.xlu0 %3798
      %3800 = vrot.lane.b32.xlu0 %v3716, 24
      %v3801 = vpop.permute.xlu0 %3800
      %3802 = vrot.lane.b32.xlu0 %v3717, 24
      %v3803 = vpop.permute.xlu0 %3802
      %3804 = vrot.lane.b32.xlu0 %v3718, 24
      %v3805 = vpop.permute.xlu0 %3804
      %3806 = vrot.lane.b32.xlu0 %v3719, 24
      %v3807 = vpop.permute.xlu0 %3806
      %3808 = vrot.lane.b32.xlu0 %v3720, 24
      %v3809 = vpop.permute.xlu0 %3808
      %3810 = vrot.lane.b32.xlu0 %v3721, 24
      %v3811 = vpop.permute.xlu0 %3810
      %3812 = vrot.lane.b32.xlu0 %v3722, 24
      %v3813 = vpop.permute.xlu0 %3812
      %3814 = vrot.lane.b32.xlu0 %v3723, 24
      %v3815 = vpop.permute.xlu0 %3814
      %3816 = vrot.lane.b32.xlu0 %v3724, 24
      %v3817 = vpop.permute.xlu0 %3816
      %3818 = vrot.lane.b32.xlu0 %v3725, 24
      %v3819 = vpop.permute.xlu0 %3818
      %3820 = vrot.lane.b32.xlu0 %v3726, 24
      %v3821 = vpop.permute.xlu0 %3820
      %3822 = vrot.lane.b32.xlu0 %v3727, 24
      %v3823 = vpop.permute.xlu0 %3822
      %3856 = vst.msk [vmem:[#allocation3] sm:$0xff] %vm1505, %v3761
      %3857 = vst.msk [vmem:[#allocation3 + $0x8] sm:$0xff] %vm1505, %v3763
      %3858 = vst.msk [vmem:[#allocation3 + $0x10] sm:$0xff] %vm1505, %v3765
      %3859 = vst.msk [vmem:[#allocation3 + $0x18] sm:$0xff] %vm1505, %v3767
      %3860 = vst.msk [vmem:[#allocation3 + $0x20] sm:$0xff] %vm1505, %v3769
      %3861 = vst.msk [vmem:[#allocation3 + $0x28] sm:$0xff] %vm1505, %v3771
      %3862 = vst.msk [vmem:[#allocation3 + $0x30] sm:$0xff] %vm1505, %v3773
      %3863 = vst.msk [vmem:[#allocation3 + $0x38] sm:$0xff] %vm1505, %v3775
      %3864 = vst.msk [vmem:[#allocation3 + $0x40] sm:$0xff] %vm1505, %v3777
      %3865 = vst.msk [vmem:[#allocation3 + $0x48] sm:$0xff] %vm1505, %v3779
      %3866 = vst.msk [vmem:[#allocation3 + $0x50] sm:$0xff] %vm1505, %v3781
      %3867 = vst.msk [vmem:[#allocation3 + $0x58] sm:$0xff] %vm1505, %v3783
      %3868 = vst.msk [vmem:[#allocation3 + $0x60] sm:$0xff] %vm1505, %v3785
      %3869 = vst.msk [vmem:[#allocation3 + $0x68] sm:$0xff] %vm1505, %v3787
      %3870 = vst.msk [vmem:[#allocation3 + $0x70] sm:$0xff] %vm1505, %v3789
      %3871 = vst.msk [vmem:[#allocation3 + $0x78] sm:$0xff] %vm1505, %v3791
      %3872 = vst.msk [vmem:[#allocation3 + $0x80] sm:$0xff] %vm1505, %v3793
      %3873 = vst.msk [vmem:[#allocation3 + $0x88] sm:$0xff] %vm1505, %v3795
      %3874 = vst.msk [vmem:[#allocation3 + $0x90] sm:$0xff] %vm1505, %v3797
      %3875 = vst.msk [vmem:[#allocation3 + $0x98] sm:$0xff] %vm1505, %v3799
      %3876 = vst.msk [vmem:[#allocation3 + $0xa0] sm:$0xff] %vm1505, %v3801
      %3877 = vst.msk [vmem:[#allocation3 + $0xa8] sm:$0xff] %vm1505, %v3803
      %3878 = vst.msk [vmem:[#allocation3 + $0xb0] sm:$0xff] %vm1505, %v3805
      %3879 = vst.msk [vmem:[#allocation3 + $0xb8] sm:$0xff] %vm1505, %v3807
      %3880 = vst.msk [vmem:[#allocation3 + $0xc0] sm:$0xff] %vm1505, %v3809
      %3881 = vst.msk [vmem:[#allocation3 + $0xc8] sm:$0xff] %vm1505, %v3811
      %3882 = vst.msk [vmem:[#allocation3 + $0xd0] sm:$0xff] %vm1505, %v3813
      %3883 = vst.msk [vmem:[#allocation3 + $0xd8] sm:$0xff] %vm1505, %v3815
      %3884 = vst.msk [vmem:[#allocation3 + $0xe0] sm:$0xff] %vm1505, %v3817
      %3885 = vst.msk [vmem:[#allocation3 + $0xe8] sm:$0xff] %vm1505, %v3819
      %3886 = vst.msk [vmem:[#allocation3 + $0xf0] sm:$0xff] %vm1505, %v3821
      %3887 = vst.msk [vmem:[#allocation3 + $0xf8] sm:$0xff] %vm1505, %v3823
      %v3888 = vld [vmem:[%s1344 + $0x1] sm:$0xff]
      %v3889 = vld [vmem:[%s1344 + $0x9] sm:$0xff]
      %v3890 = vld [vmem:[%s1344 + $0x19] sm:$0xff]
      %v3891 = vld [vmem:[%s1344 + $0x21] sm:$0xff]
      %v3892 = vld [vmem:[%s1344 + $0x31] sm:$0xff]
      %v3893 = vld [vmem:[%s1344 + $0x39] sm:$0xff]
      %v3894 = vld [vmem:[%s1344 + $0x49] sm:$0xff]
      %v3895 = vld [vmem:[%s1344 + $0x51] sm:$0xff]
      %v3896 = vld [vmem:[%s1344 + $0x61] sm:$0xff]
      %v3897 = vld [vmem:[%s1344 + $0x69] sm:$0xff]
      %v3898 = vld [vmem:[%s1344 + $0x79] sm:$0xff]
      %v3899 = vld [vmem:[%s1344 + $0x81] sm:$0xff]
      %v3900 = vld [vmem:[%s1344 + $0x91] sm:$0xff]
      %v3901 = vld [vmem:[%s1344 + $0x99] sm:$0xff]
      %v3902 = vld [vmem:[%s1344 + $0xa9] sm:$0xff]
      %v3903 = vld [vmem:[%s1344 + $0xb1] sm:$0xff]
      %v3904 = vld [vmem:[%s1344 + $0xc1] sm:$0xff]
      %v3905 = vld [vmem:[%s1344 + $0xc9] sm:$0xff]
      %v3906 = vld [vmem:[%s1344 + $0xd9] sm:$0xff]
      %v3907 = vld [vmem:[%s1344 + $0xe1] sm:$0xff]
      %v3908 = vld [vmem:[%s1344 + $0xf1] sm:$0xff]
      %v3909 = vld [vmem:[%s1344 + $0xf9] sm:$0xff]
      %v3910 = vld [vmem:[%s1344 + $0x109] sm:$0xff]
      %v3911 = vld [vmem:[%s1344 + $0x111] sm:$0xff]
      %v3912 = vld [vmem:[%s1344 + $0x121] sm:$0xff]
      %v3913 = vld [vmem:[%s1344 + $0x129] sm:$0xff]
      %v3914 = vld [vmem:[%s1344 + $0x139] sm:$0xff]
      %v3915 = vld [vmem:[%s1344 + $0x141] sm:$0xff]
      %v3916 = vld [vmem:[%s1344 + $0x151] sm:$0xff]
      %v3917 = vld [vmem:[%s1344 + $0x159] sm:$0xff]
      %v3918 = vld [vmem:[%s1344 + $0x169] sm:$0xff]
      %v3919 = vld [vmem:[%s1344 + $0x171] sm:$0xff]
      %3952 = vrot.lane.b32.xlu0 %v3888, 28
      %v3953 = vpop.permute.xlu0 %3952
      %3954 = vrot.lane.b32.xlu0 %v3889, 28
      %v3955 = vpop.permute.xlu0 %3954
      %3956 = vrot.lane.b32.xlu0 %v3890, 28
      %v3957 = vpop.permute.xlu0 %3956
      %3958 = vrot.lane.b32.xlu0 %v3891, 28
      %v3959 = vpop.permute.xlu0 %3958
      %3960 = vrot.lane.b32.xlu0 %v3892, 28
      %v3961 = vpop.permute.xlu0 %3960
      %3962 = vrot.lane.b32.xlu0 %v3893, 28
      %v3963 = vpop.permute.xlu0 %3962
      %3964 = vrot.lane.b32.xlu0 %v3894, 28
      %v3965 = vpop.permute.xlu0 %3964
      %3966 = vrot.lane.b32.xlu0 %v3895, 28
      %v3967 = vpop.permute.xlu0 %3966
      %3968 = vrot.lane.b32.xlu0 %v3896, 28
      %v3969 = vpop.permute.xlu0 %3968
      %3970 = vrot.lane.b32.xlu0 %v3897, 28
      %v3971 = vpop.permute.xlu0 %3970
      %3972 = vrot.lane.b32.xlu0 %v3898, 28
      %v3973 = vpop.permute.xlu0 %3972
      %3974 = vrot.lane.b32.xlu0 %v3899, 28
      %v3975 = vpop.permute.xlu0 %3974
      %3976 = vrot.lane.b32.xlu0 %v3900, 28
      %v3977 = vpop.permute.xlu0 %3976
      %3978 = vrot.lane.b32.xlu0 %v3901, 28
      %v3979 = vpop.permute.xlu0 %3978
      %3980 = vrot.lane.b32.xlu0 %v3902, 28
      %v3981 = vpop.permute.xlu0 %3980
      %3982 = vrot.lane.b32.xlu0 %v3903, 28
      %v3983 = vpop.permute.xlu0 %3982
      %3984 = vrot.lane.b32.xlu0 %v3904, 28
      %v3985 = vpop.permute.xlu0 %3984
      %3986 = vrot.lane.b32.xlu0 %v3905, 28
      %v3987 = vpop.permute.xlu0 %3986
      %3988 = vrot.lane.b32.xlu0 %v3906, 28
      %v3989 = vpop.permute.xlu0 %3988
      %3990 = vrot.lane.b32.xlu0 %v3907, 28
      %v3991 = vpop.permute.xlu0 %3990
      %3992 = vrot.lane.b32.xlu0 %v3908, 28
      %v3993 = vpop.permute.xlu0 %3992
      %3994 = vrot.lane.b32.xlu0 %v3909, 28
      %v3995 = vpop.permute.xlu0 %3994
      %3996 = vrot.lane.b32.xlu0 %v3910, 28
      %v3997 = vpop.permute.xlu0 %3996
      %3998 = vrot.lane.b32.xlu0 %v3911, 28
      %v3999 = vpop.permute.xlu0 %3998
      %4000 = vrot.lane.b32.xlu0 %v3912, 28
      %v4001 = vpop.permute.xlu0 %4000
      %4002 = vrot.lane.b32.xlu0 %v3913, 28
      %v4003 = vpop.permute.xlu0 %4002
      %4004 = vrot.lane.b32.xlu0 %v3914, 28
      %v4005 = vpop.permute.xlu0 %4004
      %4006 = vrot.lane.b32.xlu0 %v3915, 28
      %v4007 = vpop.permute.xlu0 %4006
      %4008 = vrot.lane.b32.xlu0 %v3916, 28
      %v4009 = vpop.permute.xlu0 %4008
      %4010 = vrot.lane.b32.xlu0 %v3917, 28
      %v4011 = vpop.permute.xlu0 %4010
      %4012 = vrot.lane.b32.xlu0 %v3918, 28
      %v4013 = vpop.permute.xlu0 %4012
      %4014 = vrot.lane.b32.xlu0 %v3919, 28
      %v4015 = vpop.permute.xlu0 %4014
      %4048 = vst.msk [vmem:[#allocation3] sm:$0xff] %vm1698, %v3953
      %4049 = vst.msk [vmem:[#allocation3 + $0x8] sm:$0xff] %vm1698, %v3955
      %4050 = vst.msk [vmem:[#allocation3 + $0x10] sm:$0xff] %vm1698, %v3957
      %4051 = vst.msk [vmem:[#allocation3 + $0x18] sm:$0xff] %vm1698, %v3959
      %4052 = vst.msk [vmem:[#allocation3 + $0x20] sm:$0xff] %vm1698, %v3961
      %4053 = vst.msk [vmem:[#allocation3 + $0x28] sm:$0xff] %vm1698, %v3963
      %4054 = vst.msk [vmem:[#allocation3 + $0x30] sm:$0xff] %vm1698, %v3965
      %4055 = vst.msk [vmem:[#allocation3 + $0x38] sm:$0xff] %vm1698, %v3967
      %4056 = vst.msk [vmem:[#allocation3 + $0x40] sm:$0xff] %vm1698, %v3969
      %4057 = vst.msk [vmem:[#allocation3 + $0x48] sm:$0xff] %vm1698, %v3971
      %4058 = vst.msk [vmem:[#allocation3 + $0x50] sm:$0xff] %vm1698, %v3973
      %4059 = vst.msk [vmem:[#allocation3 + $0x58] sm:$0xff] %vm1698, %v3975
      %4060 = vst.msk [vmem:[#allocation3 + $0x60] sm:$0xff] %vm1698, %v3977
      %4061 = vst.msk [vmem:[#allocation3 + $0x68] sm:$0xff] %vm1698, %v3979
      %4062 = vst.msk [vmem:[#allocation3 + $0x70] sm:$0xff] %vm1698, %v3981
      %4063 = vst.msk [vmem:[#allocation3 + $0x78] sm:$0xff] %vm1698, %v3983
      %4064 = vst.msk [vmem:[#allocation3 + $0x80] sm:$0xff] %vm1698, %v3985
      %4065 = vst.msk [vmem:[#allocation3 + $0x88] sm:$0xff] %vm1698, %v3987
      %4066 = vst.msk [vmem:[#allocation3 + $0x90] sm:$0xff] %vm1698, %v3989
      %4067 = vst.msk [vmem:[#allocation3 + $0x98] sm:$0xff] %vm1698, %v3991
      %4068 = vst.msk [vmem:[#allocation3 + $0xa0] sm:$0xff] %vm1698, %v3993
      %4069 = vst.msk [vmem:[#allocation3 + $0xa8] sm:$0xff] %vm1698, %v3995
      %4070 = vst.msk [vmem:[#allocation3 + $0xb0] sm:$0xff] %vm1698, %v3997
      %4071 = vst.msk [vmem:[#allocation3 + $0xb8] sm:$0xff] %vm1698, %v3999
      %4072 = vst.msk [vmem:[#allocation3 + $0xc0] sm:$0xff] %vm1698, %v4001
      %4073 = vst.msk [vmem:[#allocation3 + $0xc8] sm:$0xff] %vm1698, %v4003
      %4074 = vst.msk [vmem:[#allocation3 + $0xd0] sm:$0xff] %vm1698, %v4005
      %4075 = vst.msk [vmem:[#allocation3 + $0xd8] sm:$0xff] %vm1698, %v4007
      %4076 = vst.msk [vmem:[#allocation3 + $0xe0] sm:$0xff] %vm1698, %v4009
      %4077 = vst.msk [vmem:[#allocation3 + $0xe8] sm:$0xff] %vm1698, %v4011
      %4078 = vst.msk [vmem:[#allocation3 + $0xf0] sm:$0xff] %vm1698, %v4013
      %4079 = vst.msk [vmem:[#allocation3 + $0xf8] sm:$0xff] %vm1698, %v4015
      %v4080 = vld [vmem:[%s1344 + $0x2] sm:$0xff]
      %v4081 = vld [vmem:[%s1344 + $0xa] sm:$0xff]
      %v4082 = vld [vmem:[%s1344 + $0x1a] sm:$0xff]
      %v4083 = vld [vmem:[%s1344 + $0x22] sm:$0xff]
      %v4084 = vld [vmem:[%s1344 + $0x32] sm:$0xff]
      %v4085 = vld [vmem:[%s1344 + $0x3a] sm:$0xff]
      %v4086 = vld [vmem:[%s1344 + $0x4a] sm:$0xff]
      %v4087 = vld [vmem:[%s1344 + $0x52] sm:$0xff]
      %v4088 = vld [vmem:[%s1344 + $0x62] sm:$0xff]
      %v4089 = vld [vmem:[%s1344 + $0x6a] sm:$0xff]
      %v4090 = vld [vmem:[%s1344 + $0x7a] sm:$0xff]
      %v4091 = vld [vmem:[%s1344 + $0x82] sm:$0xff]
      %v4092 = vld [vmem:[%s1344 + $0x92] sm:$0xff]
      %v4093 = vld [vmem:[%s1344 + $0x9a] sm:$0xff]
      %v4094 = vld [vmem:[%s1344 + $0xaa] sm:$0xff]
      %v4095 = vld [vmem:[%s1344 + $0xb2] sm:$0xff]
      %v4096 = vld [vmem:[%s1344 + $0xc2] sm:$0xff]
      %v4097 = vld [vmem:[%s1344 + $0xca] sm:$0xff]
      %v4098 = vld [vmem:[%s1344 + $0xda] sm:$0xff]
      %v4099 = vld [vmem:[%s1344 + $0xe2] sm:$0xff]
      %v4100 = vld [vmem:[%s1344 + $0xf2] sm:$0xff]
      %v4101 = vld [vmem:[%s1344 + $0xfa] sm:$0xff]
      %v4102 = vld [vmem:[%s1344 + $0x10a] sm:$0xff]
      %v4103 = vld [vmem:[%s1344 + $0x112] sm:$0xff]
      %v4104 = vld [vmem:[%s1344 + $0x122] sm:$0xff]
      %v4105 = vld [vmem:[%s1344 + $0x12a] sm:$0xff]
      %v4106 = vld [vmem:[%s1344 + $0x13a] sm:$0xff]
      %v4107 = vld [vmem:[%s1344 + $0x142] sm:$0xff]
      %v4108 = vld [vmem:[%s1344 + $0x152] sm:$0xff]
      %v4109 = vld [vmem:[%s1344 + $0x15a] sm:$0xff]
      %v4110 = vld [vmem:[%s1344 + $0x16a] sm:$0xff]
      %v4111 = vld [vmem:[%s1344 + $0x172] sm:$0xff]
      %4144 = vrot.lane.b32.xlu0 %v4080, 32
      %v4145 = vpop.permute.xlu0 %4144
      %4146 = vrot.lane.b32.xlu0 %v4081, 32
      %v4147 = vpop.permute.xlu0 %4146
      %4148 = vrot.lane.b32.xlu0 %v4082, 32
      %v4149 = vpop.permute.xlu0 %4148
      %4150 = vrot.lane.b32.xlu0 %v4083, 32
      %v4151 = vpop.permute.xlu0 %4150
      %4152 = vrot.lane.b32.xlu0 %v4084, 32
      %v4153 = vpop.permute.xlu0 %4152
      %4154 = vrot.lane.b32.xlu0 %v4085, 32
      %v4155 = vpop.permute.xlu0 %4154
      %4156 = vrot.lane.b32.xlu0 %v4086, 32
      %v4157 = vpop.permute.xlu0 %4156
      %4158 = vrot.lane.b32.xlu0 %v4087, 32
      %v4159 = vpop.permute.xlu0 %4158
      %4160 = vrot.lane.b32.xlu0 %v4088, 32
      %v4161 = vpop.permute.xlu0 %4160
      %4162 = vrot.lane.b32.xlu0 %v4089, 32
      %v4163 = vpop.permute.xlu0 %4162
      %4164 = vrot.lane.b32.xlu0 %v4090, 32
      %v4165 = vpop.permute.xlu0 %4164
      %4166 = vrot.lane.b32.xlu0 %v4091, 32
      %v4167 = vpop.permute.xlu0 %4166
      %4168 = vrot.lane.b32.xlu0 %v4092, 32
      %v4169 = vpop.permute.xlu0 %4168
      %4170 = vrot.lane.b32.xlu0 %v4093, 32
      %v4171 = vpop.permute.xlu0 %4170
      %4172 = vrot.lane.b32.xlu0 %v4094, 32
      %v4173 = vpop.permute.xlu0 %4172
      %4174 = vrot.lane.b32.xlu0 %v4095, 32
      %v4175 = vpop.permute.xlu0 %4174
      %4176 = vrot.lane.b32.xlu0 %v4096, 32
      %v4177 = vpop.permute.xlu0 %4176
      %4178 = vrot.lane.b32.xlu0 %v4097, 32
      %v4179 = vpop.permute.xlu0 %4178
      %4180 = vrot.lane.b32.xlu0 %v4098, 32
      %v4181 = vpop.permute.xlu0 %4180
      %4182 = vrot.lane.b32.xlu0 %v4099, 32
      %v4183 = vpop.permute.xlu0 %4182
      %4184 = vrot.lane.b32.xlu0 %v4100, 32
      %v4185 = vpop.permute.xlu0 %4184
      %4186 = vrot.lane.b32.xlu0 %v4101, 32
      %v4187 = vpop.permute.xlu0 %4186
      %4188 = vrot.lane.b32.xlu0 %v4102, 32
      %v4189 = vpop.permute.xlu0 %4188
      %4190 = vrot.lane.b32.xlu0 %v4103, 32
      %v4191 = vpop.permute.xlu0 %4190
      %4192 = vrot.lane.b32.xlu0 %v4104, 32
      %v4193 = vpop.permute.xlu0 %4192
      %4194 = vrot.lane.b32.xlu0 %v4105, 32
      %v4195 = vpop.permute.xlu0 %4194
      %4196 = vrot.lane.b32.xlu0 %v4106, 32
      %v4197 = vpop.permute.xlu0 %4196
      %4198 = vrot.lane.b32.xlu0 %v4107, 32
      %v4199 = vpop.permute.xlu0 %4198
      %4200 = vrot.lane.b32.xlu0 %v4108, 32
      %v4201 = vpop.permute.xlu0 %4200
      %4202 = vrot.lane.b32.xlu0 %v4109, 32
      %v4203 = vpop.permute.xlu0 %4202
      %4204 = vrot.lane.b32.xlu0 %v4110, 32
      %v4205 = vpop.permute.xlu0 %4204
      %4206 = vrot.lane.b32.xlu0 %v4111, 32
      %v4207 = vpop.permute.xlu0 %4206
      %4240 = vst.msk [vmem:[#allocation3] sm:$0xff] %vm1891, %v4145
      %4241 = vst.msk [vmem:[#allocation3 + $0x8] sm:$0xff] %vm1891, %v4147
      %4242 = vst.msk [vmem:[#allocation3 + $0x10] sm:$0xff] %vm1891, %v4149
      %4243 = vst.msk [vmem:[#allocation3 + $0x18] sm:$0xff] %vm1891, %v4151
      %4244 = vst.msk [vmem:[#allocation3 + $0x20] sm:$0xff] %vm1891, %v4153
      %4245 = vst.msk [vmem:[#allocation3 + $0x28] sm:$0xff] %vm1891, %v4155
      %4246 = vst.msk [vmem:[#allocation3 + $0x30] sm:$0xff] %vm1891, %v4157
      %4247 = vst.msk [vmem:[#allocation3 + $0x38] sm:$0xff] %vm1891, %v4159
      %4248 = vst.msk [vmem:[#allocation3 + $0x40] sm:$0xff] %vm1891, %v4161
      %4249 = vst.msk [vmem:[#allocation3 + $0x48] sm:$0xff] %vm1891, %v4163
      %4250 = vst.msk [vmem:[#allocation3 + $0x50] sm:$0xff] %vm1891, %v4165
      %4251 = vst.msk [vmem:[#allocation3 + $0x58] sm:$0xff] %vm1891, %v4167
      %4252 = vst.msk [vmem:[#allocation3 + $0x60] sm:$0xff] %vm1891, %v4169
      %4253 = vst.msk [vmem:[#allocation3 + $0x68] sm:$0xff] %vm1891, %v4171
      %4254 = vst.msk [vmem:[#allocation3 + $0x70] sm:$0xff] %vm1891, %v4173
      %4255 = vst.msk [vmem:[#allocation3 + $0x78] sm:$0xff] %vm1891, %v4175
      %4256 = vst.msk [vmem:[#allocation3 + $0x80] sm:$0xff] %vm1891, %v4177
      %4257 = vst.msk [vmem:[#allocation3 + $0x88] sm:$0xff] %vm1891, %v4179
      %4258 = vst.msk [vmem:[#allocation3 + $0x90] sm:$0xff] %vm1891, %v4181
      %4259 = vst.msk [vmem:[#allocation3 + $0x98] sm:$0xff] %vm1891, %v4183
      %4260 = vst.msk [vmem:[#allocation3 + $0xa0] sm:$0xff] %vm1891, %v4185
      %4261 = vst.msk [vmem:[#allocation3 + $0xa8] sm:$0xff] %vm1891, %v4187
      %4262 = vst.msk [vmem:[#allocation3 + $0xb0] sm:$0xff] %vm1891, %v4189
      %4263 = vst.msk [vmem:[#allocation3 + $0xb8] sm:$0xff] %vm1891, %v4191
      %4264 = vst.msk [vmem:[#allocation3 + $0xc0] sm:$0xff] %vm1891, %v4193
      %4265 = vst.msk [vmem:[#allocation3 + $0xc8] sm:$0xff] %vm1891, %v4195
      %4266 = vst.msk [vmem:[#allocation3 + $0xd0] sm:$0xff] %vm1891, %v4197
      %4267 = vst.msk [vmem:[#allocation3 + $0xd8] sm:$0xff] %vm1891, %v4199
      %4268 = vst.msk [vmem:[#allocation3 + $0xe0] sm:$0xff] %vm1891, %v4201
      %4269 = vst.msk [vmem:[#allocation3 + $0xe8] sm:$0xff] %vm1891, %v4203
      %4270 = vst.msk [vmem:[#allocation3 + $0xf0] sm:$0xff] %vm1891, %v4205
      %4271 = vst.msk [vmem:[#allocation3 + $0xf8] sm:$0xff] %vm1891, %v4207
      %v4272 = vld [vmem:[#allocation3] sm:$0xff]
      %v4273 = vld [vmem:[#allocation3 + $0x8] sm:$0xff]
      %v4274 = vld [vmem:[#allocation3 + $0x10] sm:$0xff]
      %v4275 = vld [vmem:[#allocation3 + $0x18] sm:$0xff]
      %v4276 = vld [vmem:[#allocation3 + $0x20] sm:$0xff]
      %v4277 = vld [vmem:[#allocation3 + $0x28] sm:$0xff]
      %v4278 = vld [vmem:[#allocation3 + $0x30] sm:$0xff]
      %v4279 = vld [vmem:[#allocation3 + $0x38] sm:$0xff]
      %v4280 = vld [vmem:[#allocation3 + $0x40] sm:$0xff]
      %v4281 = vld [vmem:[#allocation3 + $0x48] sm:$0xff]
      %v4282 = vld [vmem:[#allocation3 + $0x50] sm:$0xff]
      %v4283 = vld [vmem:[#allocation3 + $0x58] sm:$0xff]
      %v4284 = vld [vmem:[#allocation3 + $0x60] sm:$0xff]
      %v4285 = vld [vmem:[#allocation3 + $0x68] sm:$0xff]
      %v4286 = vld [vmem:[#allocation3 + $0x70] sm:$0xff]
      %v4287 = vld [vmem:[#allocation3 + $0x78] sm:$0xff]
      %v4288 = vld [vmem:[#allocation3 + $0x80] sm:$0xff]
      %v4289 = vld [vmem:[#allocation3 + $0x88] sm:$0xff]
      %v4290 = vld [vmem:[#allocation3 + $0x90] sm:$0xff]
      %v4291 = vld [vmem:[#allocation3 + $0x98] sm:$0xff]
      %v4292 = vld [vmem:[#allocation3 + $0xa0] sm:$0xff]
      %v4293 = vld [vmem:[#allocation3 + $0xa8] sm:$0xff]
      %v4294 = vld [vmem:[#allocation3 + $0xb0] sm:$0xff]
      %v4295 = vld [vmem:[#allocation3 + $0xb8] sm:$0xff]
      %v4296 = vld [vmem:[#allocation3 + $0xc0] sm:$0xff]
      %v4297 = vld [vmem:[#allocation3 + $0xc8] sm:$0xff]
      %v4298 = vld [vmem:[#allocation3 + $0xd0] sm:$0xff]
      %v4299 = vld [vmem:[#allocation3 + $0xd8] sm:$0xff]
      %v4300 = vld [vmem:[#allocation3 + $0xe0] sm:$0xff]
      %v4301 = vld [vmem:[#allocation3 + $0xe8] sm:$0xff]
      %v4302 = vld [vmem:[#allocation3 + $0xf0] sm:$0xff]
      %v4303 = vld [vmem:[#allocation3 + $0xf8] sm:$0xff]
      %v4304 = vld [vmem:[%s2] sm:$0xff]
      %v4305 = vld [vmem:[%s2 + $0x8] sm:$0xff]
      %v4306 = vld [vmem:[%s2 + $0x10] sm:$0xff]
      %v4307 = vld [vmem:[%s2 + $0x18] sm:$0xff]
      %v4308 = vld [vmem:[%s2 + $0x20] sm:$0xf]
      %v4310 = vsel %vm1961, %v4272, 0
      %v4313 = vsel %vm1961, %v4273, 0
      %v4316 = vsel %vm1961, %v4274, 0
      %v4319 = vsel %vm1961, %v4275, 0
      %v4322 = vsel %vm1961, %v4276, 0
      %v4325 = vsel %vm1961, %v4277, 0
      %v4328 = vsel %vm1961, %v4278, 0
      %v4331 = vsel %vm1961, %v4279, 0
      %v4334 = vsel %vm1961, %v4280, 0
      %v4337 = vsel %vm1961, %v4281, 0
      %v4340 = vsel %vm1961, %v4282, 0
      %v4343 = vsel %vm1961, %v4283, 0
      %v4346 = vsel %vm1961, %v4284, 0
      %v4349 = vsel %vm1961, %v4285, 0
      %v4352 = vsel %vm1961, %v4286, 0
      %v4355 = vsel %vm1961, %v4287, 0
      %v4358 = vsel %vm1961, %v4288, 0
      %v4361 = vsel %vm1961, %v4289, 0
      %v4364 = vsel %vm1961, %v4290, 0
      %v4367 = vsel %vm1961, %v4291, 0
      %v4370 = vsel %vm1961, %v4292, 0
      %v4373 = vsel %vm1961, %v4293, 0
      %v4376 = vsel %vm1961, %v4294, 0
      %v4379 = vsel %vm1961, %v4295, 0
      %v4382 = vsel %vm1961, %v4296, 0
      %v4385 = vsel %vm1961, %v4297, 0
      %v4388 = vsel %vm1961, %v4298, 0
      %v4391 = vsel %vm1961, %v4299, 0
      %v4394 = vsel %vm1961, %v4300, 0
      %v4397 = vsel %vm1961, %v4301, 0
      %v4400 = vsel %vm1961, %v4302, 0
      %v4403 = vsel %vm1961, %v4303, 0
      %v4406 = vsel %vm2058, %v4308, 0
      %4408 = vmatprep.subr.mxu0 0.0
      %4409 = vmatpush1.msra.mxu0 %v4304
      %4410 = vmatprep.subr.mxu0 0.0
      %4411 = vmatpush1.msra.mxu0 %v4305
      %4412 = vmatprep.subr.mxu0 0.0
      %4413 = vmatpush1.msra.mxu0 %v4306
      %4414 = vmatprep.subr.mxu0 0.0
      %4415 = vmatpush1.msra.mxu0 %v4307
      %4416 = vmatprep.subr.mxu0 0.0
      %4417 = vmatpush1.msra.mxu0 %v4406
      %4418 = vmatprep.subr.mxu0 0.0
      %4419 = vmatpush1.msra.mxu0 0.0
      %4420 = vmatprep.subr.mxu0 0.0
      %4421 = vmatpush1.msra.mxu0 0.0
      %4422 = vmatprep.subr.mxu0 0.0
      %4423 = vmatpush1.msra.mxu0 0.0
      %4424 = vmatprep.subr.mxu0 0.0
      %4425 = vmatpush1.msra.mxu0 0.0
      %4426 = vmatprep.subr.mxu0 0.0
      %4427 = vmatpush1.msra.mxu0 0.0
      %4428 = vmatprep.subr.mxu0 0.0
      %4429 = vmatpush1.msra.mxu0 0.0
      %4430 = vmatprep.subr.mxu0 0.0
      %4431 = vmatpush1.msra.mxu0 0.0
      %4432 = vmatprep.subr.mxu0 0.0
      %4433 = vmatpush1.msra.mxu0 0.0
      %4434 = vmatprep.subr.mxu0 0.0
      %4435 = vmatpush1.msra.mxu0 0.0
      %4436 = vmatprep.subr.mxu0 0.0
      %4437 = vmatpush1.msra.mxu0 0.0
      %4438 = vmatprep.subr.mxu0 0.0
      %4439 = vmatpush1.msra.mxu0 0.0
      %4440 = vmatprep.subr.mxu0 0.0
      %4441 = vmatpush1.msra.mxu0 0.0
      %4442 = vmatprep.subr.mxu0 0.0
      %4443 = vmatpush1.msra.mxu0 0.0
      %4444 = vmatprep.subr.mxu0 0.0
      %4445 = vmatpush1.msra.mxu0 0.0
      %4446 = vmatprep.subr.mxu0 0.0
      %4447 = vmatpush1.msra.mxu0 0.0
      %4448 = vmatprep.subr.mxu0 0.0
      %4449 = vmatpush1.msra.mxu0 0.0
      %4450 = vmatprep.subr.mxu0 0.0
      %4451 = vmatpush1.msra.mxu0 0.0
      %4452 = vmatprep.subr.mxu0 0.0
      %4453 = vmatpush1.msra.mxu0 0.0
      %4454 = vmatprep.subr.mxu0 0.0
      %4455 = vmatpush1.msra.mxu0 0.0
      %4456 = vmatprep.subr.mxu0 0.0
      %4457 = vmatpush1.msra.mxu0 0.0
      %4458 = vmatprep.subr.mxu0 0.0
      %4459 = vmatpush1.msra.mxu0 0.0
      %4460 = vmatprep.subr.mxu0 0.0
      %4461 = vmatpush1.msra.mxu0 0.0
      %4462 = vmatprep.subr.mxu0 0.0
      %4463 = vmatpush1.msra.mxu0 0.0
      %4464 = vmatprep.subr.mxu0 0.0
      %4465 = vmatpush1.msra.mxu0 0.0
      %4466 = vmatprep.subr.mxu0 0.0
      %4467 = vmatpush1.msra.mxu0 0.0
      %4468 = vmatprep.subr.mxu0 0.0
      %4469 = vmatpush1.msra.mxu0 0.0
      %4470 = vmatprep.subr.mxu0 0.0
      %4471 = vmatpush1.msra.mxu0 0.0
      %4472 = vmatprep.mubr.f32.mxu0 0.0
      %4473 = vmatmul.mubr.f32.gmra.mrb[0].mxu0 %v4310
      %v4474 = vpop.f32.mrb[0].mxu0
      %v4475 = vadd.f32 0.0, %v4474
      %v4476 = vpop.f32.mrb[0].mxu0
      %4477 = vmatprep.mubr.f32.mxu0 0.0
      %4478 = vmatmul.mubr.f32.gmra.mrb[0].mxu0 %v4313
      %v4479 = vpop.f32.mrb[0].mxu0
      %v4480 = vadd.f32 0.0, %v4479
      %v4481 = vpop.f32.mrb[0].mxu0
      %4482 = vmatprep.mubr.f32.mxu0 0.0
      %4483 = vmatmul.mubr.f32.gmra.mrb[0].mxu0 %v4316
      %v4484 = vpop.f32.mrb[0].mxu0
      %v4485 = vadd.f32 0.0, %v4484
      %v4486 = vpop.f32.mrb[0].mxu0
      %4487 = vmatprep.mubr.f32.mxu0 0.0
      %4488 = vmatmul.mubr.f32.gmra.mrb[0].mxu0 %v4319
      %v4489 = vpop.f32.mrb[0].mxu0
      %v4490 = vadd.f32 0.0, %v4489
      %v4491 = vpop.f32.mrb[0].mxu0
      %4492 = vmatprep.mubr.f32.mxu0 0.0
      %4493 = vmatmul.mubr.f32.gmra.mrb[0].mxu0 %v4322
      %v4494 = vpop.f32.mrb[0].mxu0
      %v4495 = vadd.f32 0.0, %v4494
      %v4496 = vpop.f32.mrb[0].mxu0
      %4497 = vmatprep.mubr.f32.mxu0 0.0
      %4498 = vmatmul.mubr.f32.gmra.mrb[0].mxu0 %v4325
      %v4499 = vpop.f32.mrb[0].mxu0
      %v4500 = vadd.f32 0.0, %v4499
      %v4501 = vpop.f32.mrb[0].mxu0
      %4502 = vmatprep.mubr.f32.mxu0 0.0
      %4503 = vmatmul.mubr.f32.gmra.mrb[0].mxu0 %v4328
      %v4504 = vpop.f32.mrb[0].mxu0
      %v4505 = vadd.f32 0.0, %v4504
      %v4506 = vpop.f32.mrb[0].mxu0
      %4507 = vmatprep.mubr.f32.mxu0 0.0
      %4508 = vmatmul.mubr.f32.gmra.mrb[0].mxu0 %v4331
      %v4509 = vpop.f32.mrb[0].mxu0
      %v4510 = vadd.f32 0.0, %v4509
      %v4511 = vpop.f32.mrb[0].mxu0
      %4512 = vmatprep.mubr.f32.mxu0 0.0
      %4513 = vmatmul.mubr.f32.gmra.mrb[0].mxu0 %v4334
      %v4514 = vpop.f32.mrb[0].mxu0
      %v4515 = vadd.f32 0.0, %v4514
      %v4516 = vpop.f32.mrb[0].mxu0
      %4517 = vmatprep.mubr.f32.mxu0 0.0
      %4518 = vmatmul.mubr.f32.gmra.mrb[0].mxu0 %v4337
      %v4519 = vpop.f32.mrb[0].mxu0
      %v4520 = vadd.f32 0.0, %v4519
      %v4521 = vpop.f32.mrb[0].mxu0
      %4522 = vmatprep.mubr.f32.mxu0 0.0
      %4523 = vmatmul.mubr.f32.gmra.mrb[0].mxu0 %v4340
      %v4524 = vpop.f32.mrb[0].mxu0
      %v4525 = vadd.f32 0.0, %v4524
      %v4526 = vpop.f32.mrb[0].mxu0
      %4527 = vmatprep.mubr.f32.mxu0 0.0
      %4528 = vmatmul.mubr.f32.gmra.mrb[0].mxu0 %v4343
      %v4529 = vpop.f32.mrb[0].mxu0
      %v4530 = vadd.f32 0.0, %v4529
      %v4531 = vpop.f32.mrb[0].mxu0
      %4532 = vmatprep.mubr.f32.mxu0 0.0
      %4533 = vmatmul.mubr.f32.gmra.mrb[0].mxu0 %v4346
      %v4534 = vpop.f32.mrb[0].mxu0
      %v4535 = vadd.f32 0.0, %v4534
      %v4536 = vpop.f32.mrb[0].mxu0
      %4537 = vmatprep.mubr.f32.mxu0 0.0
      %4538 = vmatmul.mubr.f32.gmra.mrb[0].mxu0 %v4349
      %v4539 = vpop.f32.mrb[0].mxu0
      %v4540 = vadd.f32 0.0, %v4539
      %v4541 = vpop.f32.mrb[0].mxu0
      %4542 = vmatprep.mubr.f32.mxu0 0.0
      %4543 = vmatmul.mubr.f32.gmra.mrb[0].mxu0 %v4352
      %v4544 = vpop.f32.mrb[0].mxu0
      %v4545 = vadd.f32 0.0, %v4544
      %v4546 = vpop.f32.mrb[0].mxu0
      %4547 = vmatprep.mubr.f32.mxu0 0.0
      %4548 = vmatmul.mubr.f32.gmra.mrb[0].mxu0 %v4355
      %v4549 = vpop.f32.mrb[0].mxu0
      %v4550 = vadd.f32 0.0, %v4549
      %v4551 = vpop.f32.mrb[0].mxu0
      %4552 = vmatprep.mubr.f32.mxu0 0.0
      %4553 = vmatmul.mubr.f32.gmra.mrb[0].mxu0 %v4358
      %v4554 = vpop.f32.mrb[0].mxu0
      %v4555 = vadd.f32 0.0, %v4554
      %v4556 = vpop.f32.mrb[0].mxu0
      %4557 = vmatprep.mubr.f32.mxu0 0.0
      %4558 = vmatmul.mubr.f32.gmra.mrb[0].mxu0 %v4361
      %v4559 = vpop.f32.mrb[0].mxu0
      %v4560 = vadd.f32 0.0, %v4559
      %v4561 = vpop.f32.mrb[0].mxu0
      %4562 = vmatprep.mubr.f32.mxu0 0.0
      %4563 = vmatmul.mubr.f32.gmra.mrb[0].mxu0 %v4364
      %v4564 = vpop.f32.mrb[0].mxu0
      %v4565 = vadd.f32 0.0, %v4564
      %v4566 = vpop.f32.mrb[0].mxu0
      %4567 = vmatprep.mubr.f32.mxu0 0.0
      %4568 = vmatmul.mubr.f32.gmra.mrb[0].mxu0 %v4367
      %v4569 = vpop.f32.mrb[0].mxu0
      %v4570 = vadd.f32 0.0, %v4569
      %v4571 = vpop.f32.mrb[0].mxu0
      %4572 = vmatprep.mubr.f32.mxu0 0.0
      %4573 = vmatmul.mubr.f32.gmra.mrb[0].mxu0 %v4370
      %v4574 = vpop.f32.mrb[0].mxu0
      %v4575 = vadd.f32 0.0, %v4574
      %v4576 = vpop.f32.mrb[0].mxu0
      %4577 = vmatprep.mubr.f32.mxu0 0.0
      %4578 = vmatmul.mubr.f32.gmra.mrb[0].mxu0 %v4373
      %v4579 = vpop.f32.mrb[0].mxu0
      %v4580 = vadd.f32 0.0, %v4579
      %v4581 = vpop.f32.mrb[0].mxu0
      %4582 = vmatprep.mubr.f32.mxu0 0.0
      %4583 = vmatmul.mubr.f32.gmra.mrb[0].mxu0 %v4376
      %v4584 = vpop.f32.mrb[0].mxu0
      %v4585 = vadd.f32 0.0, %v4584
      %v4586 = vpop.f32.mrb[0].mxu0
      %4587 = vmatprep.mubr.f32.mxu0 0.0
      %4588 = vmatmul.mubr.f32.gmra.mrb[0].mxu0 %v4379
      %v4589 = vpop.f32.mrb[0].mxu0
      %v4590 = vadd.f32 0.0, %v4589
      %v4591 = vpop.f32.mrb[0].mxu0
      %4592 = vmatprep.mubr.f32.mxu0 0.0
      %4593 = vmatmul.mubr.f32.gmra.mrb[0].mxu0 %v4382
      %v4594 = vpop.f32.mrb[0].mxu0
      %v4595 = vadd.f32 0.0, %v4594
      %v4596 = vpop.f32.mrb[0].mxu0
      %4597 = vmatprep.mubr.f32.mxu0 0.0
      %4598 = vmatmul.mubr.f32.gmra.mrb[0].mxu0 %v4385
      %v4599 = vpop.f32.mrb[0].mxu0
      %v4600 = vadd.f32 0.0, %v4599
      %v4601 = vpop.f32.mrb[0].mxu0
      %4602 = vmatprep.mubr.f32.mxu0 0.0
      %4603 = vmatmul.mubr.f32.gmra.mrb[0].mxu0 %v4388
      %v4604 = vpop.f32.mrb[0].mxu0
      %v4605 = vadd.f32 0.0, %v4604
      %v4606 = vpop.f32.mrb[0].mxu0
      %4607 = vmatprep.mubr.f32.mxu0 0.0
      %4608 = vmatmul.mubr.f32.gmra.mrb[0].mxu0 %v4391
      %v4609 = vpop.f32.mrb[0].mxu0
      %v4610 = vadd.f32 0.0, %v4609
      %v4611 = vpop.f32.mrb[0].mxu0
      %4612 = vmatprep.mubr.f32.mxu0 0.0
      %4613 = vmatmul.mubr.f32.gmra.mrb[0].mxu0 %v4394
      %v4614 = vpop.f32.mrb[0].mxu0
      %v4615 = vadd.f32 0.0, %v4614
      %v4616 = vpop.f32.mrb[0].mxu0
      %4617 = vmatprep.mubr.f32.mxu0 0.0
      %4618 = vmatmul.mubr.f32.gmra.mrb[0].mxu0 %v4397
      %v4619 = vpop.f32.mrb[0].mxu0
      %v4620 = vadd.f32 0.0, %v4619
      %v4621 = vpop.f32.mrb[0].mxu0
      %4622 = vmatprep.mubr.f32.mxu0 0.0
      %4623 = vmatmul.mubr.f32.gmra.mrb[0].mxu0 %v4400
      %v4624 = vpop.f32.mrb[0].mxu0
      %v4625 = vadd.f32 0.0, %v4624
      %v4626 = vpop.f32.mrb[0].mxu0
      %4627 = vmatprep.mubr.f32.mxu0 0.0
      %4628 = vmatmul.mubr.f32.gmra.mrb[0].mxu0 %v4403
      %v4629 = vpop.f32.mrb[0].mxu0
      %v4630 = vadd.f32 0.0, %v4629
      %v4631 = vpop.f32.mrb[0].mxu0
      %4632 = vdwg.mxu0
      %v4633 = vsel %vm204, %v4475, 0.0
      %v4634 = vsel %vm204, %v4485, 0.0
      %v4635 = vadd.f32 %v4633, %v4634
      %v4636 = vsel %vm204, %v4495, 0.0
      %v4637 = vadd.f32 %v4635, %v4636
      %v4638 = vsel %vm204, %v4505, 0.0
      %v4639 = vadd.f32 %v4637, %v4638
      %v4640 = vsel %vm204, %v4515, 0.0
      %v4641 = vadd.f32 %v4639, %v4640
      %v4642 = vsel %vm204, %v4525, 0.0
      %v4643 = vadd.f32 %v4641, %v4642
      %v4644 = vsel %vm204, %v4535, 0.0
      %v4645 = vadd.f32 %v4643, %v4644
      %v4646 = vsel %vm204, %v4545, 0.0
      %v4647 = vadd.f32 %v4645, %v4646
      %v4648 = vsel %vm204, %v4555, 0.0
      %v4649 = vadd.f32 %v4647, %v4648
      %v4650 = vsel %vm204, %v4565, 0.0
      %v4651 = vadd.f32 %v4649, %v4650
      %v4652 = vsel %vm204, %v4575, 0.0
      %v4653 = vadd.f32 %v4651, %v4652
      %v4654 = vsel %vm204, %v4585, 0.0
      %v4655 = vadd.f32 %v4653, %v4654
      %v4656 = vsel %vm204, %v4595, 0.0
      %v4657 = vadd.f32 %v4655, %v4656
      %v4658 = vsel %vm204, %v4605, 0.0
      %v4659 = vadd.f32 %v4657, %v4658
      %v4660 = vsel %vm204, %v4615, 0.0
      %v4661 = vadd.f32 %v4659, %v4660
      %v4662 = vsel %vm204, %v4625, 0.0
      %v4663 = vadd.f32 %v4661, %v4662
      %v4664 = vsel %vm204, %v4480, 0.0
      %v4665 = vsel %vm204, %v4490, 0.0
      %v4666 = vadd.f32 %v4664, %v4665
      %v4667 = vsel %vm204, %v4500, 0.0
      %v4668 = vadd.f32 %v4666, %v4667
      %v4669 = vsel %vm204, %v4510, 0.0
      %v4670 = vadd.f32 %v4668, %v4669
      %v4671 = vsel %vm204, %v4520, 0.0
      %v4672 = vadd.f32 %v4670, %v4671
      %v4673 = vsel %vm204, %v4530, 0.0
      %v4674 = vadd.f32 %v4672, %v4673
      %v4675 = vsel %vm204, %v4540, 0.0
      %v4676 = vadd.f32 %v4674, %v4675
      %v4677 = vsel %vm204, %v4550, 0.0
      %v4678 = vadd.f32 %v4676, %v4677
      %v4679 = vsel %vm204, %v4560, 0.0
      %v4680 = vadd.f32 %v4678, %v4679
      %v4681 = vsel %vm204, %v4570, 0.0
      %v4682 = vadd.f32 %v4680, %v4681
      %v4683 = vsel %vm204, %v4580, 0.0
      %v4684 = vadd.f32 %v4682, %v4683
      %v4685 = vsel %vm204, %v4590, 0.0
      %v4686 = vadd.f32 %v4684, %v4685
      %v4687 = vsel %vm204, %v4600, 0.0
      %v4688 = vadd.f32 %v4686, %v4687
      %v4689 = vsel %vm204, %v4610, 0.0
      %v4690 = vadd.f32 %v4688, %v4689
      %v4691 = vsel %vm204, %v4620, 0.0
      %v4692 = vadd.f32 %v4690, %v4691
      %v4693 = vsel %vm204, %v4630, 0.0
      %v4694 = vadd.f32 %v4692, %v4693
      %v4695 = vsel %vm204, %v4663, 0.0
      %v4696 = vsel %vm204, %v4694, 0.0
      %v4697 = vadd.f32 %v4695, %v4696
      %v4698 = vrot.slane %v4697, 4
      %v4699 = vadd.f32 %v4697, %v4698
      %v4700 = vrot.slane %v4699, 2
      %v4701 = vadd.f32 %v4699, %v4700
      %v4702 = vrot.slane %v4701, 1
      %v4703 = vadd.f32 %v4701, %v4702
      %v4704 = vmul.f32 %v4475, %v4475
      %v4705 = vmul.f32 %v4480, %v4480
      %v4706 = vmul.f32 %v4485, %v4485
      %v4707 = vmul.f32 %v4490, %v4490
      %v4708 = vmul.f32 %v4495, %v4495
      %v4709 = vmul.f32 %v4500, %v4500
      %v4710 = vmul.f32 %v4505, %v4505
      %v4711 = vmul.f32 %v4510, %v4510
      %v4712 = vmul.f32 %v4515, %v4515
      %v4713 = vmul.f32 %v4520, %v4520
      %v4714 = vmul.f32 %v4525, %v4525
      %v4715 = vmul.f32 %v4530, %v4530
      %v4716 = vmul.f32 %v4535, %v4535
      %v4717 = vmul.f32 %v4540, %v4540
      %v4718 = vmul.f32 %v4545, %v4545
      %v4719 = vmul.f32 %v4550, %v4550
      %v4720 = vmul.f32 %v4555, %v4555
      %v4721 = vmul.f32 %v4560, %v4560
      %v4722 = vmul.f32 %v4565, %v4565
      %v4723 = vmul.f32 %v4570, %v4570
      %v4724 = vmul.f32 %v4575, %v4575
      %v4725 = vmul.f32 %v4580, %v4580
      %v4726 = vmul.f32 %v4585, %v4585
      %v4727 = vmul.f32 %v4590, %v4590
      %v4728 = vmul.f32 %v4595, %v4595
      %v4729 = vmul.f32 %v4600, %v4600
      %v4730 = vmul.f32 %v4605, %v4605
      %v4731 = vmul.f32 %v4610, %v4610
      %v4732 = vmul.f32 %v4615, %v4615
      %v4733 = vmul.f32 %v4620, %v4620
      %v4734 = vmul.f32 %v4625, %v4625
      %v4735 = vmul.f32 %v4630, %v4630
      %v4736 = vsel %vm204, %v4704, 0.0
      %v4737 = vsel %vm204, %v4706, 0.0
      %v4738 = vadd.f32 %v4736, %v4737
      %v4739 = vsel %vm204, %v4708, 0.0
      %v4740 = vadd.f32 %v4738, %v4739
      %v4741 = vsel %vm204, %v4710, 0.0
      %v4742 = vadd.f32 %v4740, %v4741
      %v4743 = vsel %vm204, %v4712, 0.0
      %v4744 = vadd.f32 %v4742, %v4743
      %v4745 = vsel %vm204, %v4714, 0.0
      %v4746 = vadd.f32 %v4744, %v4745
      %v4747 = vsel %vm204, %v4716, 0.0
      %v4748 = vadd.f32 %v4746, %v4747
      %v4749 = vsel %vm204, %v4718, 0.0
      %v4750 = vadd.f32 %v4748, %v4749
      %v4751 = vsel %vm204, %v4720, 0.0
      %v4752 = vadd.f32 %v4750, %v4751
      %v4753 = vsel %vm204, %v4722, 0.0
      %v4754 = vadd.f32 %v4752, %v4753
      %v4755 = vsel %vm204, %v4724, 0.0
      %v4756 = vadd.f32 %v4754, %v4755
      %v4757 = vsel %vm204, %v4726, 0.0
      %v4758 = vadd.f32 %v4756, %v4757
      %v4759 = vsel %vm204, %v4728, 0.0
      %v4760 = vadd.f32 %v4758, %v4759
      %v4761 = vsel %vm204, %v4730, 0.0
      %v4762 = vadd.f32 %v4760, %v4761
      %v4763 = vsel %vm204, %v4732, 0.0
      %v4764 = vadd.f32 %v4762, %v4763
      %v4765 = vsel %vm204, %v4734, 0.0
      %v4766 = vadd.f32 %v4764, %v4765
      %v4767 = vsel %vm204, %v4705, 0.0
      %v4768 = vsel %vm204, %v4707, 0.0
      %v4769 = vadd.f32 %v4767, %v4768
      %v4770 = vsel %vm204, %v4709, 0.0
      %v4771 = vadd.f32 %v4769, %v4770
      %v4772 = vsel %vm204, %v4711, 0.0
      %v4773 = vadd.f32 %v4771, %v4772
      %v4774 = vsel %vm204, %v4713, 0.0
      %v4775 = vadd.f32 %v4773, %v4774
      %v4776 = vsel %vm204, %v4715, 0.0
      %v4777 = vadd.f32 %v4775, %v4776
      %v4778 = vsel %vm204, %v4717, 0.0
      %v4779 = vadd.f32 %v4777, %v4778
      %v4780 = vsel %vm204, %v4719, 0.0
      %v4781 = vadd.f32 %v4779, %v4780
      %v4782 = vsel %vm204, %v4721, 0.0
      %v4783 = vadd.f32 %v4781, %v4782
      %v4784 = vsel %vm204, %v4723, 0.0
      %v4785 = vadd.f32 %v4783, %v4784
      %v4786 = vsel %vm204, %v4725, 0.0
      %v4787 = vadd.f32 %v4785, %v4786
      %v4788 = vsel %vm204, %v4727, 0.0
      %v4789 = vadd.f32 %v4787, %v4788
      %v4790 = vsel %vm204, %v4729, 0.0
      %v4791 = vadd.f32 %v4789, %v4790
      %v4792 = vsel %vm204, %v4731, 0.0
      %v4793 = vadd.f32 %v4791, %v4792
      %v4794 = vsel %vm204, %v4733, 0.0
      %v4795 = vadd.f32 %v4793, %v4794
      %v4796 = vsel %vm204, %v4735, 0.0
      %v4797 = vadd.f32 %v4795, %v4796
      %v4798 = vsel %vm204, %v4766, 0.0
      %v4799 = vsel %vm204, %v4797, 0.0
      %v4800 = vadd.f32 %v4798, %v4799
      %v4801 = vrot.slane %v4800, 4
      %v4802 = vadd.f32 %v4800, %v4801
      %v4803 = vrot.slane %v4802, 2
      %v4804 = vadd.f32 %v4802, %v4803
      %v4805 = vrot.slane %v4804, 1
      %v4806 = vadd.f32 %v4804, %v4805
      %v4807 = vmul.f32 %v4703, 0.00390625
      %v4808 = vmul.f32 %v4806, 0.00390625
      %v4809 = vmul.f32 %v4807, %v4807
      %v4810 = vsub.f32 %v4808, %v4809
      %v4811 = vmax.f32 %v4810, 0.0
      %v4812 = vsub.f32 %v4475, %v4807
      %v4813 = vsub.f32 %v4480, %v4807
      %v4814 = vsub.f32 %v4485, %v4807
      %v4815 = vsub.f32 %v4490, %v4807
      %v4816 = vsub.f32 %v4495, %v4807
      %v4817 = vsub.f32 %v4500, %v4807
      %v4818 = vsub.f32 %v4505, %v4807
      %v4819 = vsub.f32 %v4510, %v4807
      %v4820 = vsub.f32 %v4515, %v4807
      %v4821 = vsub.f32 %v4520, %v4807
      %v4822 = vsub.f32 %v4525, %v4807
      %v4823 = vsub.f32 %v4530, %v4807
      %v4824 = vsub.f32 %v4535, %v4807
      %v4825 = vsub.f32 %v4540, %v4807
      %v4826 = vsub.f32 %v4545, %v4807
      %v4827 = vsub.f32 %v4550, %v4807
      %v4828 = vsub.f32 %v4555, %v4807
      %v4829 = vsub.f32 %v4560, %v4807
      %v4830 = vsub.f32 %v4565, %v4807
      %v4831 = vsub.f32 %v4570, %v4807
      %v4832 = vsub.f32 %v4575, %v4807
      %v4833 = vsub.f32 %v4580, %v4807
      %v4834 = vsub.f32 %v4585, %v4807
      %v4835 = vsub.f32 %v4590, %v4807
      %v4836 = vsub.f32 %v4595, %v4807
      %v4837 = vsub.f32 %v4600, %v4807
      %v4838 = vsub.f32 %v4605, %v4807
      %v4839 = vsub.f32 %v4610, %v4807
      %v4840 = vsub.f32 %v4615, %v4807
      %v4841 = vsub.f32 %v4620, %v4807
      %v4842 = vsub.f32 %v4625, %v4807
      %v4843 = vsub.f32 %v4630, %v4807
      %v4844 = vadd.f32 %v4811, 1e-05
      %v4845 = vrsqrt.pop %v4844
      %v4846 = vmul.f32 %v4812, %v4845
      %v4847 = vmul.f32 %v4813, %v4845
      %v4848 = vmul.f32 %v4814, %v4845
      %v4849 = vmul.f32 %v4815, %v4845
      %v4850 = vmul.f32 %v4816, %v4845
      %v4851 = vmul.f32 %v4817, %v4845
      %v4852 = vmul.f32 %v4818, %v4845
      %v4853 = vmul.f32 %v4819, %v4845
      %v4854 = vmul.f32 %v4820, %v4845
      %v4855 = vmul.f32 %v4821, %v4845
      %v4856 = vmul.f32 %v4822, %v4845
      %v4857 = vmul.f32 %v4823, %v4845
      %v4858 = vmul.f32 %v4824, %v4845
      %v4859 = vmul.f32 %v4825, %v4845
      %v4860 = vmul.f32 %v4826, %v4845
      %v4861 = vmul.f32 %v4827, %v4845
      %v4862 = vmul.f32 %v4828, %v4845
      %v4863 = vmul.f32 %v4829, %v4845
      %v4864 = vmul.f32 %v4830, %v4845
      %v4865 = vmul.f32 %v4831, %v4845
      %v4866 = vmul.f32 %v4832, %v4845
      %v4867 = vmul.f32 %v4833, %v4845
      %v4868 = vmul.f32 %v4834, %v4845
      %v4869 = vmul.f32 %v4835, %v4845
      %v4870 = vmul.f32 %v4836, %v4845
      %v4871 = vmul.f32 %v4837, %v4845
      %v4872 = vmul.f32 %v4838, %v4845
      %v4873 = vmul.f32 %v4839, %v4845
      %v4874 = vmul.f32 %v4840, %v4845
      %v4875 = vmul.f32 %v4841, %v4845
      %v4876 = vmul.f32 %v4842, %v4845
      %v4877 = vmul.f32 %v4843, %v4845
      %v4878 = vadd.f32 %v171, %v4846
      %v4879 = vadd.f32 %v172, %v4847
      %v4880 = vadd.f32 %v173, %v4848
      %v4881 = vadd.f32 %v174, %v4849
      %v4882 = vadd.f32 %v175, %v4850
      %v4883 = vadd.f32 %v176, %v4851
      %v4884 = vadd.f32 %v177, %v4852
      %v4885 = vadd.f32 %v178, %v4853
      %v4886 = vadd.f32 %v179, %v4854
      %v4887 = vadd.f32 %v180, %v4855
      %v4888 = vadd.f32 %v181, %v4856
      %v4889 = vadd.f32 %v182, %v4857
      %v4890 = vadd.f32 %v183, %v4858
      %v4891 = vadd.f32 %v184, %v4859
      %v4892 = vadd.f32 %v185, %v4860
      %v4893 = vadd.f32 %v186, %v4861
      %v4894 = vadd.f32 %v187, %v4862
      %v4895 = vadd.f32 %v188, %v4863
      %v4896 = vadd.f32 %v189, %v4864
      %v4897 = vadd.f32 %v190, %v4865
      %v4898 = vadd.f32 %v191, %v4866
      %v4899 = vadd.f32 %v192, %v4867
      %v4900 = vadd.f32 %v193, %v4868
      %v4901 = vadd.f32 %v194, %v4869
      %v4902 = vadd.f32 %v195, %v4870
      %v4903 = vadd.f32 %v196, %v4871
      %v4904 = vadd.f32 %v197, %v4872
      %v4905 = vadd.f32 %v198, %v4873
      %v4906 = vadd.f32 %v199, %v4874
      %v4907 = vadd.f32 %v200, %v4875
      %v4908 = vadd.f32 %v201, %v4876
      %v4909 = vadd.f32 %v202, %v4877
      %4910 = vst.msk [vmem:[%s170] sm:$0xff] %vm204, %v4878
      %4911 = vst.msk [vmem:[%s170 + $0x8] sm:$0xff] %vm204, %v4879
      %4912 = vst.msk [vmem:[%s170 + $0x10] sm:$0xff] %vm204, %v4880
      %4913 = vst.msk [vmem:[%s170 + $0x18] sm:$0xff] %vm204, %v4881
      %4914 = vst.msk [vmem:[%s170 + $0x20] sm:$0xff] %vm204, %v4882
      %4915 = vst.msk [vmem:[%s170 + $0x28] sm:$0xff] %vm204, %v4883
      %4916 = vst.msk [vmem:[%s170 + $0x30] sm:$0xff] %vm204, %v4884
      %4917 = vst.msk [vmem:[%s170 + $0x38] sm:$0xff] %vm204, %v4885
      %4918 = vst.msk [vmem:[%s170 + $0x40] sm:$0xff] %vm204, %v4886
      %4919 = vst.msk [vmem:[%s170 + $0x48] sm:$0xff] %vm204, %v4887
      %4920 = vst.msk [vmem:[%s170 + $0x50] sm:$0xff] %vm204, %v4888
      %4921 = vst.msk [vmem:[%s170 + $0x58] sm:$0xff] %vm204, %v4889
      %4922 = vst.msk [vmem:[%s170 + $0x60] sm:$0xff] %vm204, %v4890
      %4923 = vst.msk [vmem:[%s170 + $0x68] sm:$0xff] %vm204, %v4891
      %4924 = vst.msk [vmem:[%s170 + $0x70] sm:$0xff] %vm204, %v4892
      %4925 = vst.msk [vmem:[%s170 + $0x78] sm:$0xff] %vm204, %v4893
      %4926 = vst.msk [vmem:[%s170 + $0x80] sm:$0xff] %vm204, %v4894
      %4927 = vst.msk [vmem:[%s170 + $0x88] sm:$0xff] %vm204, %v4895
      %4928 = vst.msk [vmem:[%s170 + $0x90] sm:$0xff] %vm204, %v4896
      %4929 = vst.msk [vmem:[%s170 + $0x98] sm:$0xff] %vm204, %v4897
      %4930 = vst.msk [vmem:[%s170 + $0xa0] sm:$0xff] %vm204, %v4898
      %4931 = vst.msk [vmem:[%s170 + $0xa8] sm:$0xff] %vm204, %v4899
      %4932 = vst.msk [vmem:[%s170 + $0xb0] sm:$0xff] %vm204, %v4900
      %4933 = vst.msk [vmem:[%s170 + $0xb8] sm:$0xff] %vm204, %v4901
      %4934 = vst.msk [vmem:[%s170 + $0xc0] sm:$0xff] %vm204, %v4902
      %4935 = vst.msk [vmem:[%s170 + $0xc8] sm:$0xff] %vm204, %v4903
      %4936 = vst.msk [vmem:[%s170 + $0xd0] sm:$0xff] %vm204, %v4904
      %4937 = vst.msk [vmem:[%s170 + $0xd8] sm:$0xff] %vm204, %v4905
      %4938 = vst.msk [vmem:[%s170 + $0xe0] sm:$0xff] %vm204, %v4906
      %4939 = vst.msk [vmem:[%s170 + $0xe8] sm:$0xff] %vm204, %v4907
      %4940 = vst.msk [vmem:[%s170 + $0xf0] sm:$0xff] %vm204, %v4908
      %4941 = vst.msk [vmem:[%s170 + $0xf8] sm:$0xff] %vm204, %v4909
      %p4942 = scmp.lt.s32.totalorder %s14, 1
      %s4943 = scalar_select %p4942, %s14, 1
      %s4944 = smul.addr %s4943, 32
      %s4945 = smul.addr %s4944, 8
      %s4946 = scalar_lea.vmem %s3, %s4945
      // Predicated region
      $region33: #{tpu_custom_call.1} parent=31 // pred_check
        %p4947 = pneg %p100
      $region34: #{tpu_custom_call.1} parent=31 // pred_check_branch
        %4949 = sbr.rel (%p4947) target = $region36
      $region35: #{tpu_custom_call.1} parent=31 // pred_region
        _
      $region36: #{tpu_custom_call.1} parent=31 // pred_fallthru
        _
    $region32: #{tpu_custom_call.1} parent=5 // pred_fallthru
      _
    %p4950 = scmp.le.s32.totalorder 2, %s9
    // Predicated region
    $region37: #{tpu_custom_call.1} parent=5 // pred_check
      %p4951 = pneg %p4950
    $region38: #{tpu_custom_call.1} parent=5 // pred_check_branch
      %4953 = sbr.rel (%p4951) target = $region40
    $region39: #{tpu_custom_call.1} parent=5 // pred_region
      %s4954 = ssub.s32 %s9, 2
      // Predicated region
      $region41: #{tpu_custom_call.1} parent=39 // pred_check
        %p4955 = pneg %p106
      $region42: #{tpu_custom_call.1} parent=39 // pred_check_branch
        %4957 = sbr.rel (%p4955) target = $region44
      $region43: #{tpu_custom_call.1} parent=39 // pred_region
        %p4958 = scmp.lt.s32.totalorder %s15, 1
        %s4959 = scalar_select %p4958, %s15, 1
        %s4960 = smul.addr %s4959, 32
        %s4961 = smul.addr %s4960, 8
        %s4962 = scalar_lea.vmem %s3, %s4961
      $region44: #{tpu_custom_call.1} parent=39 // pred_fallthru
        _
    $region40: #{tpu_custom_call.1} parent=5 // pred_fallthru
      _
  $region6: #{tpu_custom_call.1} parent=0 // loop_footer
    %s13 = sadd.s32 1, %s9
  $region7: #{tpu_custom_call.1} parent=0 // loop_footer_branch
    %8 = sbr.rel target = $region3
  $region8: #{tpu_custom_call.1} parent=0 // loop_exit
    _

</llo_original>
